<compile_context>
chip_gen: v7x
topology: tpu7x:2x2x1
jax: 0.10.0
libtpu: 0.0.40
codegen_flags: <defaults>
</compile_context>

<pallas_src>
import jax
import jax.numpy as jnp
import numpy as np
from jax.experimental import pallas as pl
from jax.experimental.pallas import tpu as pltpu

EMB = 64
CNN_CHANNELS = [1, 32, 32, 32, 32]
CNN_KERNELS = [4, 4, 2, 2]
CNN_STRIDES = [4, 4, 2, 2]          # stride == kernel for every layer

MAX_TILE_B = 64                     # batch-tile cap (VMEM-safe on v5e/v6e/v7x)


def _round_up(x, m):
    return ((x + m - 1) // m) * m


# ---------------------------------------------------------------------------
# Host-side weight packing.
#
# In-kernel activation layouts (per batch tile of TB samples):
#   A1: rows = p1*TB + b (p1<16), lane = (q1 % 4)*128 + (q1 // 4)*32 + c1  (512)
#   A2: rows = p2*TB + b (p2<4),  lane = (q2 % 2)*64  + (q2 // 2)*32 + c2  (128)
#   A3: rows = p3*TB + b (p3<2),  lane =  q3*32 + c3                       (64)
#   A4: rows = b,                 lane =  c4                               (32)
# Lane orders are chosen so the next layer's kernel-column offset (kw) is a
# contiguous, aligned lane slice; the q-blocking is absorbed into
# block-structured weight matrices built below (torch conv weight layout is
# [cout, cin, kh, kw]).
# ---------------------------------------------------------------------------
def _pack_conv1(w, b):
    # Conv2d(1, 32, k=4, s=4).  Returns W1big [4(kh), 64(j), 512], b1big [1,512]
    # W1big[kh, 4*q+kw, (q%4)*128 + (q//4)*32 + c] = w[c, 0, kh, kw]
    w = np.asarray(w, np.float32)
    b = np.asarray(b, np.float32)
    big = np.zeros((4, 64, 512), np.float32)
    for kh in range(4):
        for kw in range(4):
            for q in range(16):
                off = (q % 4) * 128 + (q // 4) * 32
                big[kh, 4 * q + kw, off:off + 32] = w[:, 0, kh, kw]
    return jnp.asarray(big), jnp.asarray(np.tile(b, 16).reshape(1, 512))


def _pack_conv2(w, b):
    # Conv2d(32, 32, k=4, s=4).  Returns W2big [16(kh*4+kw), 128, 128], b2big [1,128]
    # W2big[i, q*32 + cin, (q%2)*64 + (q//2)*32 + cout] = w[cout, cin, kh, kw]
    w = np.asarray(w, np.float32)
    b = np.asarray(b, np.float32)
    big = np.zeros((16, 128, 128), np.float32)
    for kh in range(4):
        for kw in range(4):
            blk = w[:, :, kh, kw].T            # [cin, cout]
            for q in range(4):
                off = (q % 2) * 64 + (q // 2) * 32
                big[kh * 4 + kw, q * 32:(q + 1) * 32, off:off + 32] = blk
    return jnp.asarray(big), jnp.asarray(np.tile(b, 4).reshape(1, 128))


def _pack_conv3(w, b):
    # Conv2d(32, 32, k=2, s=2).  Returns W3big [4(kh*2+kw), 64, 64], b3big [1,64]
    # W3big[i, q*32 + cin, q*32 + cout] = w[cout, cin, kh, kw]
    w = np.asarray(w, np.float32)
    b = np.asarray(b, np.float32)
    big = np.zeros((4, 64, 64), np.float32)
    for kh in range(2):
        for kw in range(2):
            blk = w[:, :, kh, kw].T
            for q in range(2):
                big[kh * 2 + kw, q * 32:(q + 1) * 32, q * 32:(q + 1) * 32] = blk
    return jnp.asarray(big), jnp.asarray(np.tile(b, 2).reshape(1, 64))


def _pack_conv4(w, b):
    # Conv2d(32, 32, k=2, s=2) on a 2x2 input (-> 1x1).  [4(kh*2+kw), 32, 32]
    w = np.asarray(w, np.float32)
    b = np.asarray(b, np.float32)
    stack = np.stack([w[:, :, kh, kw].T for kh in range(2) for kw in range(2)])
    return jnp.asarray(stack), jnp.asarray(b.reshape(1, 32))


# ---------------------------------------------------------------------------
# The fused Pallas kernel (one batch tile per grid step).
# ---------------------------------------------------------------------------
def _convncf_kernel(u3_ref, v_ref,
                    w1_ref, b1_ref, w2_ref, b2_ref, w3_ref, b3_ref,
                    w4_ref, b4_ref, fcw_ref, fcb_ref, o_ref):
    f32 = jnp.float32
    tb = v_ref.shape[0]                      # batch-tile size (multiple of 8)

    u3 = u3_ref[...]                         # [16(p1), TB, 4(kh)]  u3[p,b,k] = u[b,4p+k]
    v = v_ref[...]                           # [TB, 64]             v[b, j]

    # ---- layer 1: Conv2d(1, 32, k=4, s=4) on the (separable) 64x64 map ----
    acc1 = jnp.zeros((16 * tb, 512), f32)
    for kh in range(4):
        # Xkh[(p1,b), j] = u[b, 4*p1 + kh] * v[b, j]
        xkh = (u3[:, :, kh:kh + 1] * v[None, :, :]).reshape(16 * tb, 64)
        acc1 = acc1 + jnp.dot(xkh, w1_ref[kh], preferred_element_type=f32)
    a1 = jnp.maximum(acc1 + b1_ref[...], 0.0)          # [16*TB, 512]

    # ---- layer 2: Conv2d(32, 32, k=4, s=4), 16x16 -> 4x4 ----
    a1r = a1.reshape(4, 4, tb, 512)                    # [p2, kh, b, lane]
    acc2 = jnp.zeros((4 * tb, 128), f32)
    for kh in range(4):
        for kw in range(4):
            xs = a1r[:, kh, :, kw * 128:(kw + 1) * 128].reshape(4 * tb, 128)
            acc2 = acc2 + jnp.dot(xs, w2_ref[kh * 4 + kw],
                                  preferred_element_type=f32)
    a2 = jnp.maximum(acc2 + b2_ref[...], 0.0)          # [4*TB, 128]

    # ---- layer 3: Conv2d(32, 32, k=2, s=2), 4x4 -> 2x2 ----
    a2r = a2.reshape(2, 2, tb, 128)                    # [p3, kh, b, lane]
    acc3 = jnp.zeros((2 * tb, 64), f32)
    for kh in range(2):
        for kw in range(2):
            xs = a2r[:, kh, :, kw * 64:(kw + 1) * 64].reshape(2 * tb, 64)
            acc3 = acc3 + jnp.dot(xs, w3_ref[kh * 2 + kw],
                                  preferred_element_type=f32)
    a3 = jnp.maximum(acc3 + b3_ref[...], 0.0)          # [2*TB, 64]

    # ---- layer 4: Conv2d(32, 32, k=2, s=2), 2x2 -> 1x1 ----
    a3r = a3.reshape(2, tb, 64)                        # [kh, b, lane]
    acc4 = jnp.zeros((tb, 32), f32)
    for kh in range(2):
        for kw in range(2):
            xs = a3r[kh, :, kw * 32:(kw + 1) * 32]     # [TB, 32]
            acc4 = acc4 + jnp.dot(xs, w4_ref[kh * 2 + kw],
                                  preferred_element_type=f32)
    a4 = jnp.maximum(acc4 + b4_ref[...], 0.0)          # [TB, 32]

    # cnn_output.sum(axis=(2,3)) is the identity here (spatial 1x1).
    # ---- FC predict head (Linear(32 -> 1)); dropout is eval-mode identity ----
    pred = jnp.sum(a4 * fcw_ref[...], axis=-1, keepdims=True) + fcb_ref[...]
    o_ref[...] = pred                                  # [TB, 1]


# ---------------------------------------------------------------------------
# Wrapper
# ---------------------------------------------------------------------------
def convncf_forward(params, user, item):
    user_e = jnp.take(params["user_emb"], user, axis=0)      # [B, 64]
    item_e = jnp.take(params["item_emb"], item, axis=0)      # [B, 64]
    B = user_e.shape[0]

    tb = min(_round_up(max(B, 1), 8), MAX_TILE_B)
    b_pad = _round_up(B, tb)
    if b_pad != B:
        user_e = jnp.pad(user_e, ((0, b_pad - B), (0, 0)))
        item_e = jnp.pad(item_e, ((0, b_pad - B), (0, 0)))

    # Tiny pre-arrangement of the user embedding only (cheap XLA glue on [B,64]):
    # u3[p, b, k] = user_e[b, 4p + k]
    u3 = user_e.reshape(b_pad, 16, 4).transpose(1, 0, 2)      # [16, B_pad, 4]

    kp = params["kernel"]
    grid = (b_pad // tb,)

    out = pl.pallas_call(
        _convncf_kernel,
        out_shape=jax.ShapeDtypeStruct((b_pad, 1), jnp.float32),
        grid=grid,
        in_specs=[
            pl.BlockSpec((16, tb, 4), lambda t: (0, t, 0)),     # u3
            pl.BlockSpec((tb, EMB), lambda t: (t, 0)),          # item_e
            pl.BlockSpec((4, 64, 512), lambda t: (0, 0, 0)),    # W1big
            pl.BlockSpec((1, 512), lambda t: (0, 0)),           # b1big
            pl.BlockSpec((16, 128, 128), lambda t: (0, 0, 0)),  # W2big
            pl.BlockSpec((1, 128), lambda t: (0, 0)),           # b2big
            pl.BlockSpec((4, 64, 64), lambda t: (0, 0, 0)),     # W3big
            pl.BlockSpec((1, 64), lambda t: (0, 0)),            # b3big
            pl.BlockSpec((4, 32, 32), lambda t: (0, 0, 0)),     # W4
            pl.BlockSpec((1, 32), lambda t: (0, 0)),            # b4
            pl.BlockSpec((1, 32), lambda t: (0, 0)),            # fc_w
            pl.BlockSpec((1, 1), lambda t: (0, 0)),             # fc_b
        ],
        out_specs=pl.BlockSpec((tb, 1), lambda t: (t, 0)),
        compiler_params=pltpu.CompilerParams(
            dimension_semantics=("parallel",),
            vmem_limit_bytes=48 * 1024 * 1024,
        ),
    )(u3, item_e, kp["w1"], kp["b1"], kp["w2"], kp["b2"],
      kp["w3"], kp["b3"], kp["w4"], kp["b4"], kp["fc_w"], kp["fc_b"])

    return out[:B, 0]                                          # squeeze(-1) -> [B]


# ---------------------------------------------------------------------------
# Parameters (raw torch-layout weights + packed kernel-ready weights)
# ---------------------------------------------------------------------------
def init_params(key, n_users, n_items):
    keys = jax.random.split(key, 12)
    user_emb = jax.random.normal(keys[0], (n_users, EMB), jnp.float32) * 0.1
    item_emb = jax.random.normal(keys[1], (n_items, EMB), jnp.float32) * 0.1

    conv_w, conv_b = [], []
    for li in range(4):
        cin, cout, k = CNN_CHANNELS[li], CNN_CHANNELS[li + 1], CNN_KERNELS[li]
        conv_w.append(jax.random.normal(keys[2 + li], (cout, cin, k, k),
                                        jnp.float32) * 0.1)      # torch layout
        conv_b.append(jax.random.normal(keys[6 + li], (cout,), jnp.float32) * 0.01)
    fc_w = jax.random.normal(keys[10], (1, CNN_CHANNELS[-1]), jnp.float32) * 0.1
    fc_b = jax.random.normal(keys[11], (1,), jnp.float32) * 0.01

    w1, b1 = _pack_conv1(conv_w[0], conv_b[0])
    w2, b2 = _pack_conv2(conv_w[1], conv_b[1])
    w3, b3 = _pack_conv3(conv_w[2], conv_b[2])
    w4, b4 = _pack_conv4(conv_w[3], conv_b[3])

    return {
        "user_emb": user_emb,
        "item_emb": item_emb,
        "kernel": {
            "w1": w1, "b1": b1, "w2": w2, "b2": b2,
            "w3": w3, "b3": b3, "w4": w4, "b4": b4,
            "fc_w": fc_w, "fc_b": fc_b.reshape(1, 1),
        },
        "raw": {"conv_w": conv_w, "conv_b": conv_b, "fc_w": fc_w, "fc_b": fc_b},
    }


# ---------------------------------------------------------------------------
# Pure-JAX reference (same math as the PyTorch module, eval mode) for checking
# ---------------------------------------------------------------------------
def convncf_reference(params, user, item):
    raw = params["raw"]
    user_e = jnp.take(params["user_emb"], user, axis=0)
    item_e = jnp.take(params["item_emb"], item, axis=0)
    x = (user_e[:, :, None] * item_e[:, None, :])[..., None]   # [B,64,64,1] NHWC
    for li in range(4):
        w, b = raw["conv_w"][li], raw["conv_b"][li]
        k = CNN_KERNELS[li]
        B, H, W, C = x.shape
        ph, pw = H // k, W // k
        p = x.reshape(B, ph, k, pw, k, C).transpose(0, 1, 3, 5, 2, 4)
        p = p.reshape(B * ph * pw, C * k * k)
        wm = w.reshape(w.shape[0], -1).T                        # [(cin,kh,kw), cout]
        y = jnp.maximum(p @ wm + b[None, :], 0.0)
        x = y.reshape(B, ph, pw, w.shape[0])
    cnn_out = jnp.sum(x, axis=(1, 2))                           # [B, 32]
    pred = cnn_out @ raw["fc_w"].T + raw["fc_b"]
    return pred[:, 0]


if __name__ == "__main__":
    key = jax.random.PRNGKey(0)
    k_params, k_user, k_item = jax.random.split(key, 3)

    n_users, n_items, B = 128, 128, 8
    params = init_params(k_params, n_users, n_items)
    user = jax.random.randint(k_user, (B,), 0, n_users, dtype=jnp.int32)
    item = jax.random.randint(k_item, (B,), 0, n_items, dtype=jnp.int32)

    pred = jax.jit(convncf_forward)(params, user, item)
    jax.block_until_ready(pred)
    assert pred.shape == (B,) and pred.dtype == jnp.float32

    ref = convncf_reference(params, user, item)
    np.testing.assert_allclose(np.asarray(pred), np.asarray(ref),
                               rtol=5e-2, atol=1e-3)
    print("KERNEL_OK")
</pallas_src>

<mosaic_0001>
module attributes {stable_mosaic.version = 11 : i64} {
  func.func @_convncf_kernel(%arg0: i32, %arg1: memref<16x8x4xf32, #tpu.memory_space<vmem>>, %arg2: memref<8x64xf32, #tpu.memory_space<vmem>>, %arg3: memref<4x64x512xf32, #tpu.memory_space<vmem>>, %arg4: memref<1x512xf32, #tpu.memory_space<vmem>>, %arg5: memref<16x128x128xf32, #tpu.memory_space<vmem>>, %arg6: memref<1x128xf32, #tpu.memory_space<vmem>>, %arg7: memref<4x64x64xf32, #tpu.memory_space<vmem>>, %arg8: memref<1x64xf32, #tpu.memory_space<vmem>>, %arg9: memref<4x32x32xf32, #tpu.memory_space<vmem>>, %arg10: memref<1x32xf32, #tpu.memory_space<vmem>>, %arg11: memref<1x32xf32, #tpu.memory_space<vmem>>, %arg12: memref<1x1xf32, #tpu.memory_space<vmem>>, %arg13: memref<8x1xf32, #tpu.memory_space<vmem>>) attributes {dimension_semantics = [#tpu.dimension_semantics<parallel>], iteration_bounds = array<i64: 1>, scalar_prefetch = 0 : i64, scratch_operands = 0 : i64, tpu.core_type = #tpu.core_type<tc>, window_params = [{transform_indices = @transform_0, window_bounds = array<i64: 16, 8, 4>}, {transform_indices = @transform_1, window_bounds = array<i64: 8, 64>}, {pipeline_mode = #tpu.pipeline_mode<synchronous>, transform_indices = @transform_2, window_bounds = array<i64: 4, 64, 512>}, {pipeline_mode = #tpu.pipeline_mode<synchronous>, transform_indices = @transform_3, window_bounds = array<i64: 1, 512>}, {pipeline_mode = #tpu.pipeline_mode<synchronous>, transform_indices = @transform_4, window_bounds = array<i64: 16, 128, 128>}, {pipeline_mode = #tpu.pipeline_mode<synchronous>, transform_indices = @transform_5, window_bounds = array<i64: 1, 128>}, {pipeline_mode = #tpu.pipeline_mode<synchronous>, transform_indices = @transform_6, window_bounds = array<i64: 4, 64, 64>}, {pipeline_mode = #tpu.pipeline_mode<synchronous>, transform_indices = @transform_7, window_bounds = array<i64: 1, 64>}, {pipeline_mode = #tpu.pipeline_mode<synchronous>, transform_indices = @transform_8, window_bounds = array<i64: 4, 32, 32>}, {pipeline_mode = #tpu.pipeline_mode<synchronous>, transform_indices = @transform_9, window_bounds = array<i64: 1, 32>}, {pipeline_mode = #tpu.pipeline_mode<synchronous>, transform_indices = @transform_10, window_bounds = array<i64: 1, 32>}, {pipeline_mode = #tpu.pipeline_mode<synchronous>, transform_indices = @transform_11, window_bounds = array<i64: 1, 1>}, {transform_indices = @transform_12, window_bounds = array<i64: 8, 1>}]} {
    %c0 = arith.constant 0 : index
    %c0_0 = arith.constant 0 : index
    %c0_1 = arith.constant 0 : index
    %0 = vector.load %arg1[%c0, %c0_0, %c0_1] : memref<16x8x4xf32, #tpu.memory_space<vmem>>, vector<16x8x4xf32>
    %c0_2 = arith.constant 0 : index
    %c0_3 = arith.constant 0 : index
    %1 = vector.load %arg2[%c0_2, %c0_3] : memref<8x64xf32, #tpu.memory_space<vmem>>, vector<8x64xf32>
    %cst = arith.constant 0.000000e+00 : f32
    %2 = vector.broadcast %cst : f32 to vector<128x512xf32>
    %3 = vector.extract_strided_slice %0 {offsets = [0, 0, 0], sizes = [16, 8, 1], strides = [1, 1, 1]} : vector<16x8x4xf32> to vector<16x8x1xf32>
    %4 = vector.shape_cast %1 : vector<8x64xf32> to vector<1x8x64xf32>
    %5 = vector.broadcast %3 : vector<16x8x1xf32> to vector<16x8x64xf32>
    %6 = vector.broadcast %4 : vector<1x8x64xf32> to vector<16x8x64xf32>
    %7 = arith.mulf %5, %6 : vector<16x8x64xf32>
    %8 = vector.shape_cast %7 : vector<16x8x64xf32> to vector<128x64xf32>
    %c0_4 = arith.constant 0 : index
    %c0_5 = arith.constant 0 : index
    %c0_6 = arith.constant 0 : index
    %9 = vector.load %arg3[%c0_4, %c0_5, %c0_6] : memref<4x64x512xf32, #tpu.memory_space<vmem>>, vector<1x64x512xf32>
    %10 = vector.shape_cast %9 : vector<1x64x512xf32> to vector<64x512xf32>
    %cst_7 = arith.constant dense<0.000000e+00> : vector<128x512xf32>
    %11 = tpu.matmul %8, %10, %cst_7 {dimension_numbers = #tpu.dot_dimension_numbers<[1], [0], [0], [1], [0, 0, 1, 1], [], []>} : vector<128x64xf32>, vector<64x512xf32>, vector<128x512xf32> -> vector<128x512xf32>
    %12 = arith.addf %2, %11 : vector<128x512xf32>
    %13 = vector.extract_strided_slice %0 {offsets = [0, 0, 1], sizes = [16, 8, 1], strides = [1, 1, 1]} : vector<16x8x4xf32> to vector<16x8x1xf32>
    %14 = vector.shape_cast %1 : vector<8x64xf32> to vector<1x8x64xf32>
    %15 = vector.broadcast %13 : vector<16x8x1xf32> to vector<16x8x64xf32>
    %16 = vector.broadcast %14 : vector<1x8x64xf32> to vector<16x8x64xf32>
    %17 = arith.mulf %15, %16 : vector<16x8x64xf32>
    %18 = vector.shape_cast %17 : vector<16x8x64xf32> to vector<128x64xf32>
    %c1 = arith.constant 1 : index
    %c0_8 = arith.constant 0 : index
    %c0_9 = arith.constant 0 : index
    %19 = vector.load %arg3[%c1, %c0_8, %c0_9] : memref<4x64x512xf32, #tpu.memory_space<vmem>>, vector<1x64x512xf32>
    %20 = vector.shape_cast %19 : vector<1x64x512xf32> to vector<64x512xf32>
    %cst_10 = arith.constant dense<0.000000e+00> : vector<128x512xf32>
    %21 = tpu.matmul %18, %20, %cst_10 {dimension_numbers = #tpu.dot_dimension_numbers<[1], [0], [0], [1], [0, 0, 1, 1], [], []>} : vector<128x64xf32>, vector<64x512xf32>, vector<128x512xf32> -> vector<128x512xf32>
    %22 = arith.addf %12, %21 : vector<128x512xf32>
    %23 = vector.extract_strided_slice %0 {offsets = [0, 0, 2], sizes = [16, 8, 1], strides = [1, 1, 1]} : vector<16x8x4xf32> to vector<16x8x1xf32>
    %24 = vector.shape_cast %1 : vector<8x64xf32> to vector<1x8x64xf32>
    %25 = vector.broadcast %23 : vector<16x8x1xf32> to vector<16x8x64xf32>
    %26 = vector.broadcast %24 : vector<1x8x64xf32> to vector<16x8x64xf32>
    %27 = arith.mulf %25, %26 : vector<16x8x64xf32>
    %28 = vector.shape_cast %27 : vector<16x8x64xf32> to vector<128x64xf32>
    %c2 = arith.constant 2 : index
    %c0_11 = arith.constant 0 : index
    %c0_12 = arith.constant 0 : index
    %29 = vector.load %arg3[%c2, %c0_11, %c0_12] : memref<4x64x512xf32, #tpu.memory_space<vmem>>, vector<1x64x512xf32>
    %30 = vector.shape_cast %29 : vector<1x64x512xf32> to vector<64x512xf32>
    %cst_13 = arith.constant dense<0.000000e+00> : vector<128x512xf32>
    %31 = tpu.matmul %28, %30, %cst_13 {dimension_numbers = #tpu.dot_dimension_numbers<[1], [0], [0], [1], [0, 0, 1, 1], [], []>} : vector<128x64xf32>, vector<64x512xf32>, vector<128x512xf32> -> vector<128x512xf32>
    %32 = arith.addf %22, %31 : vector<128x512xf32>
    %33 = vector.extract_strided_slice %0 {offsets = [0, 0, 3], sizes = [16, 8, 1], strides = [1, 1, 1]} : vector<16x8x4xf32> to vector<16x8x1xf32>
    %34 = vector.shape_cast %1 : vector<8x64xf32> to vector<1x8x64xf32>
    %35 = vector.broadcast %33 : vector<16x8x1xf32> to vector<16x8x64xf32>
    %36 = vector.broadcast %34 : vector<1x8x64xf32> to vector<16x8x64xf32>
    %37 = arith.mulf %35, %36 : vector<16x8x64xf32>
    %38 = vector.shape_cast %37 : vector<16x8x64xf32> to vector<128x64xf32>
    %c3 = arith.constant 3 : index
    %c0_14 = arith.constant 0 : index
    %c0_15 = arith.constant 0 : index
    %39 = vector.load %arg3[%c3, %c0_14, %c0_15] : memref<4x64x512xf32, #tpu.memory_space<vmem>>, vector<1x64x512xf32>
    %40 = vector.shape_cast %39 : vector<1x64x512xf32> to vector<64x512xf32>
    %cst_16 = arith.constant dense<0.000000e+00> : vector<128x512xf32>
    %41 = tpu.matmul %38, %40, %cst_16 {dimension_numbers = #tpu.dot_dimension_numbers<[1], [0], [0], [1], [0, 0, 1, 1], [], []>} : vector<128x64xf32>, vector<64x512xf32>, vector<128x512xf32> -> vector<128x512xf32>
    %42 = arith.addf %32, %41 : vector<128x512xf32>
    %c0_17 = arith.constant 0 : index
    %c0_18 = arith.constant 0 : index
    %43 = vector.load %arg4[%c0_17, %c0_18] : memref<1x512xf32, #tpu.memory_space<vmem>>, vector<1x512xf32>
    %44 = vector.broadcast %43 : vector<1x512xf32> to vector<128x512xf32>
    %45 = arith.addf %42, %44 : vector<128x512xf32>
    %cst_19 = arith.constant 0.000000e+00 : f32
    %46 = vector.broadcast %cst_19 : f32 to vector<128x512xf32>
    %47 = arith.maximumf %45, %46 : vector<128x512xf32>
    %48 = vector.shape_cast %47 : vector<128x512xf32> to vector<4x4x8x512xf32>
    %cst_20 = arith.constant 0.000000e+00 : f32
    %49 = vector.broadcast %cst_20 : f32 to vector<32x128xf32>
    %50 = vector.extract_strided_slice %48 {offsets = [0, 0, 0, 0], sizes = [4, 1, 8, 128], strides = [1, 1, 1, 1]} : vector<4x4x8x512xf32> to vector<4x1x8x128xf32>
    %51 = vector.shape_cast %50 : vector<4x1x8x128xf32> to vector<4x8x128xf32>
    %52 = vector.shape_cast %51 : vector<4x8x128xf32> to vector<32x128xf32>
    %c0_21 = arith.constant 0 : index
    %c0_22 = arith.constant 0 : index
    %c0_23 = arith.constant 0 : index
    %53 = vector.load %arg5[%c0_21, %c0_22, %c0_23] : memref<16x128x128xf32, #tpu.memory_space<vmem>>, vector<1x128x128xf32>
    %54 = vector.shape_cast %53 : vector<1x128x128xf32> to vector<128x128xf32>
    %cst_24 = arith.constant dense<0.000000e+00> : vector<32x128xf32>
    %55 = tpu.matmul %52, %54, %cst_24 {dimension_numbers = #tpu.dot_dimension_numbers<[1], [0], [0], [1], [0, 0, 1, 1], [], []>} : vector<32x128xf32>, vector<128x128xf32>, vector<32x128xf32> -> vector<32x128xf32>
    %56 = arith.addf %49, %55 : vector<32x128xf32>
    %57 = vector.extract_strided_slice %48 {offsets = [0, 0, 0, 128], sizes = [4, 1, 8, 128], strides = [1, 1, 1, 1]} : vector<4x4x8x512xf32> to vector<4x1x8x128xf32>
    %58 = vector.shape_cast %57 : vector<4x1x8x128xf32> to vector<4x8x128xf32>
    %59 = vector.shape_cast %58 : vector<4x8x128xf32> to vector<32x128xf32>
    %c1_25 = arith.constant 1 : index
    %c0_26 = arith.constant 0 : index
    %c0_27 = arith.constant 0 : index
    %60 = vector.load %arg5[%c1_25, %c0_26, %c0_27] : memref<16x128x128xf32, #tpu.memory_space<vmem>>, vector<1x128x128xf32>
    %61 = vector.shape_cast %60 : vector<1x128x128xf32> to vector<128x128xf32>
    %cst_28 = arith.constant dense<0.000000e+00> : vector<32x128xf32>
    %62 = tpu.matmul %59, %61, %cst_28 {dimension_numbers = #tpu.dot_dimension_numbers<[1], [0], [0], [1], [0, 0, 1, 1], [], []>} : vector<32x128xf32>, vector<128x128xf32>, vector<32x128xf32> -> vector<32x128xf32>
    %63 = arith.addf %56, %62 : vector<32x128xf32>
    %64 = vector.extract_strided_slice %48 {offsets = [0, 0, 0, 256], sizes = [4, 1, 8, 128], strides = [1, 1, 1, 1]} : vector<4x4x8x512xf32> to vector<4x1x8x128xf32>
    %65 = vector.shape_cast %64 : vector<4x1x8x128xf32> to vector<4x8x128xf32>
    %66 = vector.shape_cast %65 : vector<4x8x128xf32> to vector<32x128xf32>
    %c2_29 = arith.constant 2 : index
    %c0_30 = arith.constant 0 : index
    %c0_31 = arith.constant 0 : index
    %67 = vector.load %arg5[%c2_29, %c0_30, %c0_31] : memref<16x128x128xf32, #tpu.memory_space<vmem>>, vector<1x128x128xf32>
    %68 = vector.shape_cast %67 : vector<1x128x128xf32> to vector<128x128xf32>
    %cst_32 = arith.constant dense<0.000000e+00> : vector<32x128xf32>
    %69 = tpu.matmul %66, %68, %cst_32 {dimension_numbers = #tpu.dot_dimension_numbers<[1], [0], [0], [1], [0, 0, 1, 1], [], []>} : vector<32x128xf32>, vector<128x128xf32>, vector<32x128xf32> -> vector<32x128xf32>
    %70 = arith.addf %63, %69 : vector<32x128xf32>
    %71 = vector.extract_strided_slice %48 {offsets = [0, 0, 0, 384], sizes = [4, 1, 8, 128], strides = [1, 1, 1, 1]} : vector<4x4x8x512xf32> to vector<4x1x8x128xf32>
    %72 = vector.shape_cast %71 : vector<4x1x8x128xf32> to vector<4x8x128xf32>
    %73 = vector.shape_cast %72 : vector<4x8x128xf32> to vector<32x128xf32>
    %c3_33 = arith.constant 3 : index
    %c0_34 = arith.constant 0 : index
    %c0_35 = arith.constant 0 : index
    %74 = vector.load %arg5[%c3_33, %c0_34, %c0_35] : memref<16x128x128xf32, #tpu.memory_space<vmem>>, vector<1x128x128xf32>
    %75 = vector.shape_cast %74 : vector<1x128x128xf32> to vector<128x128xf32>
    %cst_36 = arith.constant dense<0.000000e+00> : vector<32x128xf32>
    %76 = tpu.matmul %73, %75, %cst_36 {dimension_numbers = #tpu.dot_dimension_numbers<[1], [0], [0], [1], [0, 0, 1, 1], [], []>} : vector<32x128xf32>, vector<128x128xf32>, vector<32x128xf32> -> vector<32x128xf32>
    %77 = arith.addf %70, %76 : vector<32x128xf32>
    %78 = vector.extract_strided_slice %48 {offsets = [0, 1, 0, 0], sizes = [4, 1, 8, 128], strides = [1, 1, 1, 1]} : vector<4x4x8x512xf32> to vector<4x1x8x128xf32>
    %79 = vector.shape_cast %78 : vector<4x1x8x128xf32> to vector<4x8x128xf32>
    %80 = vector.shape_cast %79 : vector<4x8x128xf32> to vector<32x128xf32>
    %c4 = arith.constant 4 : index
    %c0_37 = arith.constant 0 : index
    %c0_38 = arith.constant 0 : index
    %81 = vector.load %arg5[%c4, %c0_37, %c0_38] : memref<16x128x128xf32, #tpu.memory_space<vmem>>, vector<1x128x128xf32>
    %82 = vector.shape_cast %81 : vector<1x128x128xf32> to vector<128x128xf32>
    %cst_39 = arith.constant dense<0.000000e+00> : vector<32x128xf32>
    %83 = tpu.matmul %80, %82, %cst_39 {dimension_numbers = #tpu.dot_dimension_numbers<[1], [0], [0], [1], [0, 0, 1, 1], [], []>} : vector<32x128xf32>, vector<128x128xf32>, vector<32x128xf32> -> vector<32x128xf32>
    %84 = arith.addf %77, %83 : vector<32x128xf32>
    %85 = vector.extract_strided_slice %48 {offsets = [0, 1, 0, 128], sizes = [4, 1, 8, 128], strides = [1, 1, 1, 1]} : vector<4x4x8x512xf32> to vector<4x1x8x128xf32>
    %86 = vector.shape_cast %85 : vector<4x1x8x128xf32> to vector<4x8x128xf32>
    %87 = vector.shape_cast %86 : vector<4x8x128xf32> to vector<32x128xf32>
    %c5 = arith.constant 5 : index
    %c0_40 = arith.constant 0 : index
    %c0_41 = arith.constant 0 : index
    %88 = vector.load %arg5[%c5, %c0_40, %c0_41] : memref<16x128x128xf32, #tpu.memory_space<vmem>>, vector<1x128x128xf32>
    %89 = vector.shape_cast %88 : vector<1x128x128xf32> to vector<128x128xf32>
    %cst_42 = arith.constant dense<0.000000e+00> : vector<32x128xf32>
    %90 = tpu.matmul %87, %89, %cst_42 {dimension_numbers = #tpu.dot_dimension_numbers<[1], [0], [0], [1], [0, 0, 1, 1], [], []>} : vector<32x128xf32>, vector<128x128xf32>, vector<32x128xf32> -> vector<32x128xf32>
    %91 = arith.addf %84, %90 : vector<32x128xf32>
    %92 = vector.extract_strided_slice %48 {offsets = [0, 1, 0, 256], sizes = [4, 1, 8, 128], strides = [1, 1, 1, 1]} : vector<4x4x8x512xf32> to vector<4x1x8x128xf32>
    %93 = vector.shape_cast %92 : vector<4x1x8x128xf32> to vector<4x8x128xf32>
    %94 = vector.shape_cast %93 : vector<4x8x128xf32> to vector<32x128xf32>
    %c6 = arith.constant 6 : index
    %c0_43 = arith.constant 0 : index
    %c0_44 = arith.constant 0 : index
    %95 = vector.load %arg5[%c6, %c0_43, %c0_44] : memref<16x128x128xf32, #tpu.memory_space<vmem>>, vector<1x128x128xf32>
    %96 = vector.shape_cast %95 : vector<1x128x128xf32> to vector<128x128xf32>
    %cst_45 = arith.constant dense<0.000000e+00> : vector<32x128xf32>
    %97 = tpu.matmul %94, %96, %cst_45 {dimension_numbers = #tpu.dot_dimension_numbers<[1], [0], [0], [1], [0, 0, 1, 1], [], []>} : vector<32x128xf32>, vector<128x128xf32>, vector<32x128xf32> -> vector<32x128xf32>
    %98 = arith.addf %91, %97 : vector<32x128xf32>
    %99 = vector.extract_strided_slice %48 {offsets = [0, 1, 0, 384], sizes = [4, 1, 8, 128], strides = [1, 1, 1, 1]} : vector<4x4x8x512xf32> to vector<4x1x8x128xf32>
    %100 = vector.shape_cast %99 : vector<4x1x8x128xf32> to vector<4x8x128xf32>
    %101 = vector.shape_cast %100 : vector<4x8x128xf32> to vector<32x128xf32>
    %c7 = arith.constant 7 : index
    %c0_46 = arith.constant 0 : index
    %c0_47 = arith.constant 0 : index
    %102 = vector.load %arg5[%c7, %c0_46, %c0_47] : memref<16x128x128xf32, #tpu.memory_space<vmem>>, vector<1x128x128xf32>
    %103 = vector.shape_cast %102 : vector<1x128x128xf32> to vector<128x128xf32>
    %cst_48 = arith.constant dense<0.000000e+00> : vector<32x128xf32>
    %104 = tpu.matmul %101, %103, %cst_48 {dimension_numbers = #tpu.dot_dimension_numbers<[1], [0], [0], [1], [0, 0, 1, 1], [], []>} : vector<32x128xf32>, vector<128x128xf32>, vector<32x128xf32> -> vector<32x128xf32>
    %105 = arith.addf %98, %104 : vector<32x128xf32>
    %106 = vector.extract_strided_slice %48 {offsets = [0, 2, 0, 0], sizes = [4, 1, 8, 128], strides = [1, 1, 1, 1]} : vector<4x4x8x512xf32> to vector<4x1x8x128xf32>
    %107 = vector.shape_cast %106 : vector<4x1x8x128xf32> to vector<4x8x128xf32>
    %108 = vector.shape_cast %107 : vector<4x8x128xf32> to vector<32x128xf32>
    %c8 = arith.constant 8 : index
    %c0_49 = arith.constant 0 : index
    %c0_50 = arith.constant 0 : index
    %109 = vector.load %arg5[%c8, %c0_49, %c0_50] : memref<16x128x128xf32, #tpu.memory_space<vmem>>, vector<1x128x128xf32>
    %110 = vector.shape_cast %109 : vector<1x128x128xf32> to vector<128x128xf32>
    %cst_51 = arith.constant dense<0.000000e+00> : vector<32x128xf32>
    %111 = tpu.matmul %108, %110, %cst_51 {dimension_numbers = #tpu.dot_dimension_numbers<[1], [0], [0], [1], [0, 0, 1, 1], [], []>} : vector<32x128xf32>, vector<128x128xf32>, vector<32x128xf32> -> vector<32x128xf32>
    %112 = arith.addf %105, %111 : vector<32x128xf32>
    %113 = vector.extract_strided_slice %48 {offsets = [0, 2, 0, 128], sizes = [4, 1, 8, 128], strides = [1, 1, 1, 1]} : vector<4x4x8x512xf32> to vector<4x1x8x128xf32>
    %114 = vector.shape_cast %113 : vector<4x1x8x128xf32> to vector<4x8x128xf32>
    %115 = vector.shape_cast %114 : vector<4x8x128xf32> to vector<32x128xf32>
    %c9 = arith.constant 9 : index
    %c0_52 = arith.constant 0 : index
    %c0_53 = arith.constant 0 : index
    %116 = vector.load %arg5[%c9, %c0_52, %c0_53] : memref<16x128x128xf32, #tpu.memory_space<vmem>>, vector<1x128x128xf32>
    %117 = vector.shape_cast %116 : vector<1x128x128xf32> to vector<128x128xf32>
    %cst_54 = arith.constant dense<0.000000e+00> : vector<32x128xf32>
    %118 = tpu.matmul %115, %117, %cst_54 {dimension_numbers = #tpu.dot_dimension_numbers<[1], [0], [0], [1], [0, 0, 1, 1], [], []>} : vector<32x128xf32>, vector<128x128xf32>, vector<32x128xf32> -> vector<32x128xf32>
    %119 = arith.addf %112, %118 : vector<32x128xf32>
    %120 = vector.extract_strided_slice %48 {offsets = [0, 2, 0, 256], sizes = [4, 1, 8, 128], strides = [1, 1, 1, 1]} : vector<4x4x8x512xf32> to vector<4x1x8x128xf32>
    %121 = vector.shape_cast %120 : vector<4x1x8x128xf32> to vector<4x8x128xf32>
    %122 = vector.shape_cast %121 : vector<4x8x128xf32> to vector<32x128xf32>
    %c10 = arith.constant 10 : index
    %c0_55 = arith.constant 0 : index
    %c0_56 = arith.constant 0 : index
    %123 = vector.load %arg5[%c10, %c0_55, %c0_56] : memref<16x128x128xf32, #tpu.memory_space<vmem>>, vector<1x128x128xf32>
    %124 = vector.shape_cast %123 : vector<1x128x128xf32> to vector<128x128xf32>
    %cst_57 = arith.constant dense<0.000000e+00> : vector<32x128xf32>
    %125 = tpu.matmul %122, %124, %cst_57 {dimension_numbers = #tpu.dot_dimension_numbers<[1], [0], [0], [1], [0, 0, 1, 1], [], []>} : vector<32x128xf32>, vector<128x128xf32>, vector<32x128xf32> -> vector<32x128xf32>
    %126 = arith.addf %119, %125 : vector<32x128xf32>
    %127 = vector.extract_strided_slice %48 {offsets = [0, 2, 0, 384], sizes = [4, 1, 8, 128], strides = [1, 1, 1, 1]} : vector<4x4x8x512xf32> to vector<4x1x8x128xf32>
    %128 = vector.shape_cast %127 : vector<4x1x8x128xf32> to vector<4x8x128xf32>
    %129 = vector.shape_cast %128 : vector<4x8x128xf32> to vector<32x128xf32>
    %c11 = arith.constant 11 : index
    %c0_58 = arith.constant 0 : index
    %c0_59 = arith.constant 0 : index
    %130 = vector.load %arg5[%c11, %c0_58, %c0_59] : memref<16x128x128xf32, #tpu.memory_space<vmem>>, vector<1x128x128xf32>
    %131 = vector.shape_cast %130 : vector<1x128x128xf32> to vector<128x128xf32>
    %cst_60 = arith.constant dense<0.000000e+00> : vector<32x128xf32>
    %132 = tpu.matmul %129, %131, %cst_60 {dimension_numbers = #tpu.dot_dimension_numbers<[1], [0], [0], [1], [0, 0, 1, 1], [], []>} : vector<32x128xf32>, vector<128x128xf32>, vector<32x128xf32> -> vector<32x128xf32>
    %133 = arith.addf %126, %132 : vector<32x128xf32>
    %134 = vector.extract_strided_slice %48 {offsets = [0, 3, 0, 0], sizes = [4, 1, 8, 128], strides = [1, 1, 1, 1]} : vector<4x4x8x512xf32> to vector<4x1x8x128xf32>
    %135 = vector.shape_cast %134 : vector<4x1x8x128xf32> to vector<4x8x128xf32>
    %136 = vector.shape_cast %135 : vector<4x8x128xf32> to vector<32x128xf32>
    %c12 = arith.constant 12 : index
    %c0_61 = arith.constant 0 : index
    %c0_62 = arith.constant 0 : index
    %137 = vector.load %arg5[%c12, %c0_61, %c0_62] : memref<16x128x128xf32, #tpu.memory_space<vmem>>, vector<1x128x128xf32>
    %138 = vector.shape_cast %137 : vector<1x128x128xf32> to vector<128x128xf32>
    %cst_63 = arith.constant dense<0.000000e+00> : vector<32x128xf32>
    %139 = tpu.matmul %136, %138, %cst_63 {dimension_numbers = #tpu.dot_dimension_numbers<[1], [0], [0], [1], [0, 0, 1, 1], [], []>} : vector<32x128xf32>, vector<128x128xf32>, vector<32x128xf32> -> vector<32x128xf32>
    %140 = arith.addf %133, %139 : vector<32x128xf32>
    %141 = vector.extract_strided_slice %48 {offsets = [0, 3, 0, 128], sizes = [4, 1, 8, 128], strides = [1, 1, 1, 1]} : vector<4x4x8x512xf32> to vector<4x1x8x128xf32>
    %142 = vector.shape_cast %141 : vector<4x1x8x128xf32> to vector<4x8x128xf32>
    %143 = vector.shape_cast %142 : vector<4x8x128xf32> to vector<32x128xf32>
    %c13 = arith.constant 13 : index
    %c0_64 = arith.constant 0 : index
    %c0_65 = arith.constant 0 : index
    %144 = vector.load %arg5[%c13, %c0_64, %c0_65] : memref<16x128x128xf32, #tpu.memory_space<vmem>>, vector<1x128x128xf32>
    %145 = vector.shape_cast %144 : vector<1x128x128xf32> to vector<128x128xf32>
    %cst_66 = arith.constant dense<0.000000e+00> : vector<32x128xf32>
    %146 = tpu.matmul %143, %145, %cst_66 {dimension_numbers = #tpu.dot_dimension_numbers<[1], [0], [0], [1], [0, 0, 1, 1], [], []>} : vector<32x128xf32>, vector<128x128xf32>, vector<32x128xf32> -> vector<32x128xf32>
    %147 = arith.addf %140, %146 : vector<32x128xf32>
    %148 = vector.extract_strided_slice %48 {offsets = [0, 3, 0, 256], sizes = [4, 1, 8, 128], strides = [1, 1, 1, 1]} : vector<4x4x8x512xf32> to vector<4x1x8x128xf32>
    %149 = vector.shape_cast %148 : vector<4x1x8x128xf32> to vector<4x8x128xf32>
    %150 = vector.shape_cast %149 : vector<4x8x128xf32> to vector<32x128xf32>
    %c14 = arith.constant 14 : index
    %c0_67 = arith.constant 0 : index
    %c0_68 = arith.constant 0 : index
    %151 = vector.load %arg5[%c14, %c0_67, %c0_68] : memref<16x128x128xf32, #tpu.memory_space<vmem>>, vector<1x128x128xf32>
    %152 = vector.shape_cast %151 : vector<1x128x128xf32> to vector<128x128xf32>
    %cst_69 = arith.constant dense<0.000000e+00> : vector<32x128xf32>
    %153 = tpu.matmul %150, %152, %cst_69 {dimension_numbers = #tpu.dot_dimension_numbers<[1], [0], [0], [1], [0, 0, 1, 1], [], []>} : vector<32x128xf32>, vector<128x128xf32>, vector<32x128xf32> -> vector<32x128xf32>
    %154 = arith.addf %147, %153 : vector<32x128xf32>
    %155 = vector.extract_strided_slice %48 {offsets = [0, 3, 0, 384], sizes = [4, 1, 8, 128], strides = [1, 1, 1, 1]} : vector<4x4x8x512xf32> to vector<4x1x8x128xf32>
    %156 = vector.shape_cast %155 : vector<4x1x8x128xf32> to vector<4x8x128xf32>
    %157 = vector.shape_cast %156 : vector<4x8x128xf32> to vector<32x128xf32>
    %c15 = arith.constant 15 : index
    %c0_70 = arith.constant 0 : index
    %c0_71 = arith.constant 0 : index
    %158 = vector.load %arg5[%c15, %c0_70, %c0_71] : memref<16x128x128xf32, #tpu.memory_space<vmem>>, vector<1x128x128xf32>
    %159 = vector.shape_cast %158 : vector<1x128x128xf32> to vector<128x128xf32>
    %cst_72 = arith.constant dense<0.000000e+00> : vector<32x128xf32>
    %160 = tpu.matmul %157, %159, %cst_72 {dimension_numbers = #tpu.dot_dimension_numbers<[1], [0], [0], [1], [0, 0, 1, 1], [], []>} : vector<32x128xf32>, vector<128x128xf32>, vector<32x128xf32> -> vector<32x128xf32>
    %161 = arith.addf %154, %160 : vector<32x128xf32>
    %c0_73 = arith.constant 0 : index
    %c0_74 = arith.constant 0 : index
    %162 = vector.load %arg6[%c0_73, %c0_74] : memref<1x128xf32, #tpu.memory_space<vmem>>, vector<1x128xf32>
    %163 = vector.broadcast %162 : vector<1x128xf32> to vector<32x128xf32>
    %164 = arith.addf %161, %163 : vector<32x128xf32>
    %cst_75 = arith.constant 0.000000e+00 : f32
    %165 = vector.broadcast %cst_75 : f32 to vector<32x128xf32>
    %166 = arith.maximumf %164, %165 : vector<32x128xf32>
    %167 = vector.shape_cast %166 : vector<32x128xf32> to vector<2x2x8x128xf32>
    %cst_76 = arith.constant 0.000000e+00 : f32
    %168 = vector.broadcast %cst_76 : f32 to vector<16x64xf32>
    %169 = vector.extract_strided_slice %167 {offsets = [0, 0, 0, 0], sizes = [2, 1, 8, 64], strides = [1, 1, 1, 1]} : vector<2x2x8x128xf32> to vector<2x1x8x64xf32>
    %170 = vector.shape_cast %169 : vector<2x1x8x64xf32> to vector<2x8x64xf32>
    %171 = vector.shape_cast %170 : vector<2x8x64xf32> to vector<16x64xf32>
    %c0_77 = arith.constant 0 : index
    %c0_78 = arith.constant 0 : index
    %c0_79 = arith.constant 0 : index
    %172 = vector.load %arg7[%c0_77, %c0_78, %c0_79] : memref<4x64x64xf32, #tpu.memory_space<vmem>>, vector<1x64x64xf32>
    %173 = vector.shape_cast %172 : vector<1x64x64xf32> to vector<64x64xf32>
    %cst_80 = arith.constant dense<0.000000e+00> : vector<16x64xf32>
    %174 = tpu.matmul %171, %173, %cst_80 {dimension_numbers = #tpu.dot_dimension_numbers<[1], [0], [0], [1], [0, 0, 1, 1], [], []>} : vector<16x64xf32>, vector<64x64xf32>, vector<16x64xf32> -> vector<16x64xf32>
    %175 = arith.addf %168, %174 : vector<16x64xf32>
    %176 = vector.extract_strided_slice %167 {offsets = [0, 0, 0, 64], sizes = [2, 1, 8, 64], strides = [1, 1, 1, 1]} : vector<2x2x8x128xf32> to vector<2x1x8x64xf32>
    %177 = vector.shape_cast %176 : vector<2x1x8x64xf32> to vector<2x8x64xf32>
    %178 = vector.shape_cast %177 : vector<2x8x64xf32> to vector<16x64xf32>
    %c1_81 = arith.constant 1 : index
    %c0_82 = arith.constant 0 : index
    %c0_83 = arith.constant 0 : index
    %179 = vector.load %arg7[%c1_81, %c0_82, %c0_83] : memref<4x64x64xf32, #tpu.memory_space<vmem>>, vector<1x64x64xf32>
    %180 = vector.shape_cast %179 : vector<1x64x64xf32> to vector<64x64xf32>
    %cst_84 = arith.constant dense<0.000000e+00> : vector<16x64xf32>
    %181 = tpu.matmul %178, %180, %cst_84 {dimension_numbers = #tpu.dot_dimension_numbers<[1], [0], [0], [1], [0, 0, 1, 1], [], []>} : vector<16x64xf32>, vector<64x64xf32>, vector<16x64xf32> -> vector<16x64xf32>
    %182 = arith.addf %175, %181 : vector<16x64xf32>
    %183 = vector.extract_strided_slice %167 {offsets = [0, 1, 0, 0], sizes = [2, 1, 8, 64], strides = [1, 1, 1, 1]} : vector<2x2x8x128xf32> to vector<2x1x8x64xf32>
    %184 = vector.shape_cast %183 : vector<2x1x8x64xf32> to vector<2x8x64xf32>
    %185 = vector.shape_cast %184 : vector<2x8x64xf32> to vector<16x64xf32>
    %c2_85 = arith.constant 2 : index
    %c0_86 = arith.constant 0 : index
    %c0_87 = arith.constant 0 : index
    %186 = vector.load %arg7[%c2_85, %c0_86, %c0_87] : memref<4x64x64xf32, #tpu.memory_space<vmem>>, vector<1x64x64xf32>
    %187 = vector.shape_cast %186 : vector<1x64x64xf32> to vector<64x64xf32>
    %cst_88 = arith.constant dense<0.000000e+00> : vector<16x64xf32>
    %188 = tpu.matmul %185, %187, %cst_88 {dimension_numbers = #tpu.dot_dimension_numbers<[1], [0], [0], [1], [0, 0, 1, 1], [], []>} : vector<16x64xf32>, vector<64x64xf32>, vector<16x64xf32> -> vector<16x64xf32>
    %189 = arith.addf %182, %188 : vector<16x64xf32>
    %190 = vector.extract_strided_slice %167 {offsets = [0, 1, 0, 64], sizes = [2, 1, 8, 64], strides = [1, 1, 1, 1]} : vector<2x2x8x128xf32> to vector<2x1x8x64xf32>
    %191 = vector.shape_cast %190 : vector<2x1x8x64xf32> to vector<2x8x64xf32>
    %192 = vector.shape_cast %191 : vector<2x8x64xf32> to vector<16x64xf32>
    %c3_89 = arith.constant 3 : index
    %c0_90 = arith.constant 0 : index
    %c0_91 = arith.constant 0 : index
    %193 = vector.load %arg7[%c3_89, %c0_90, %c0_91] : memref<4x64x64xf32, #tpu.memory_space<vmem>>, vector<1x64x64xf32>
    %194 = vector.shape_cast %193 : vector<1x64x64xf32> to vector<64x64xf32>
    %cst_92 = arith.constant dense<0.000000e+00> : vector<16x64xf32>
    %195 = tpu.matmul %192, %194, %cst_92 {dimension_numbers = #tpu.dot_dimension_numbers<[1], [0], [0], [1], [0, 0, 1, 1], [], []>} : vector<16x64xf32>, vector<64x64xf32>, vector<16x64xf32> -> vector<16x64xf32>
    %196 = arith.addf %189, %195 : vector<16x64xf32>
    %c0_93 = arith.constant 0 : index
    %c0_94 = arith.constant 0 : index
    %197 = vector.load %arg8[%c0_93, %c0_94] : memref<1x64xf32, #tpu.memory_space<vmem>>, vector<1x64xf32>
    %198 = vector.broadcast %197 : vector<1x64xf32> to vector<16x64xf32>
    %199 = arith.addf %196, %198 : vector<16x64xf32>
    %cst_95 = arith.constant 0.000000e+00 : f32
    %200 = vector.broadcast %cst_95 : f32 to vector<16x64xf32>
    %201 = arith.maximumf %199, %200 : vector<16x64xf32>
    %202 = vector.shape_cast %201 : vector<16x64xf32> to vector<2x8x64xf32>
    %cst_96 = arith.constant 0.000000e+00 : f32
    %203 = vector.broadcast %cst_96 : f32 to vector<8x32xf32>
    %204 = vector.extract_strided_slice %202 {offsets = [0, 0, 0], sizes = [1, 8, 32], strides = [1, 1, 1]} : vector<2x8x64xf32> to vector<1x8x32xf32>
    %205 = vector.shape_cast %204 : vector<1x8x32xf32> to vector<8x32xf32>
    %c0_97 = arith.constant 0 : index
    %c0_98 = arith.constant 0 : index
    %c0_99 = arith.constant 0 : index
    %206 = vector.load %arg9[%c0_97, %c0_98, %c0_99] : memref<4x32x32xf32, #tpu.memory_space<vmem>>, vector<1x32x32xf32>
    %207 = vector.shape_cast %206 : vector<1x32x32xf32> to vector<32x32xf32>
    %cst_100 = arith.constant dense<0.000000e+00> : vector<8x32xf32>
    %208 = tpu.matmul %205, %207, %cst_100 {dimension_numbers = #tpu.dot_dimension_numbers<[1], [0], [0], [1], [0, 0, 1, 1], [], []>} : vector<8x32xf32>, vector<32x32xf32>, vector<8x32xf32> -> vector<8x32xf32>
    %209 = arith.addf %203, %208 : vector<8x32xf32>
    %210 = vector.extract_strided_slice %202 {offsets = [0, 0, 32], sizes = [1, 8, 32], strides = [1, 1, 1]} : vector<2x8x64xf32> to vector<1x8x32xf32>
    %211 = vector.shape_cast %210 : vector<1x8x32xf32> to vector<8x32xf32>
    %c1_101 = arith.constant 1 : index
    %c0_102 = arith.constant 0 : index
    %c0_103 = arith.constant 0 : index
    %212 = vector.load %arg9[%c1_101, %c0_102, %c0_103] : memref<4x32x32xf32, #tpu.memory_space<vmem>>, vector<1x32x32xf32>
    %213 = vector.shape_cast %212 : vector<1x32x32xf32> to vector<32x32xf32>
    %cst_104 = arith.constant dense<0.000000e+00> : vector<8x32xf32>
    %214 = tpu.matmul %211, %213, %cst_104 {dimension_numbers = #tpu.dot_dimension_numbers<[1], [0], [0], [1], [0, 0, 1, 1], [], []>} : vector<8x32xf32>, vector<32x32xf32>, vector<8x32xf32> -> vector<8x32xf32>
    %215 = arith.addf %209, %214 : vector<8x32xf32>
    %216 = vector.extract_strided_slice %202 {offsets = [1, 0, 0], sizes = [1, 8, 32], strides = [1, 1, 1]} : vector<2x8x64xf32> to vector<1x8x32xf32>
    %217 = vector.shape_cast %216 : vector<1x8x32xf32> to vector<8x32xf32>
    %c2_105 = arith.constant 2 : index
    %c0_106 = arith.constant 0 : index
    %c0_107 = arith.constant 0 : index
    %218 = vector.load %arg9[%c2_105, %c0_106, %c0_107] : memref<4x32x32xf32, #tpu.memory_space<vmem>>, vector<1x32x32xf32>
    %219 = vector.shape_cast %218 : vector<1x32x32xf32> to vector<32x32xf32>
    %cst_108 = arith.constant dense<0.000000e+00> : vector<8x32xf32>
    %220 = tpu.matmul %217, %219, %cst_108 {dimension_numbers = #tpu.dot_dimension_numbers<[1], [0], [0], [1], [0, 0, 1, 1], [], []>} : vector<8x32xf32>, vector<32x32xf32>, vector<8x32xf32> -> vector<8x32xf32>
    %221 = arith.addf %215, %220 : vector<8x32xf32>
    %222 = vector.extract_strided_slice %202 {offsets = [1, 0, 32], sizes = [1, 8, 32], strides = [1, 1, 1]} : vector<2x8x64xf32> to vector<1x8x32xf32>
    %223 = vector.shape_cast %222 : vector<1x8x32xf32> to vector<8x32xf32>
    %c3_109 = arith.constant 3 : index
    %c0_110 = arith.constant 0 : index
    %c0_111 = arith.constant 0 : index
    %224 = vector.load %arg9[%c3_109, %c0_110, %c0_111] : memref<4x32x32xf32, #tpu.memory_space<vmem>>, vector<1x32x32xf32>
    %225 = vector.shape_cast %224 : vector<1x32x32xf32> to vector<32x32xf32>
    %cst_112 = arith.constant dense<0.000000e+00> : vector<8x32xf32>
    %226 = tpu.matmul %223, %225, %cst_112 {dimension_numbers = #tpu.dot_dimension_numbers<[1], [0], [0], [1], [0, 0, 1, 1], [], []>} : vector<8x32xf32>, vector<32x32xf32>, vector<8x32xf32> -> vector<8x32xf32>
    %227 = arith.addf %221, %226 : vector<8x32xf32>
    %c0_113 = arith.constant 0 : index
    %c0_114 = arith.constant 0 : index
    %228 = vector.load %arg10[%c0_113, %c0_114] : memref<1x32xf32, #tpu.memory_space<vmem>>, vector<1x32xf32>
    %229 = vector.broadcast %228 : vector<1x32xf32> to vector<8x32xf32>
    %230 = arith.addf %227, %229 : vector<8x32xf32>
    %cst_115 = arith.constant 0.000000e+00 : f32
    %231 = vector.broadcast %cst_115 : f32 to vector<8x32xf32>
    %232 = arith.maximumf %230, %231 : vector<8x32xf32>
    %c0_116 = arith.constant 0 : index
    %c0_117 = arith.constant 0 : index
    %233 = vector.load %arg11[%c0_116, %c0_117] : memref<1x32xf32, #tpu.memory_space<vmem>>, vector<1x32xf32>
    %234 = vector.broadcast %233 : vector<1x32xf32> to vector<8x32xf32>
    %235 = arith.mulf %232, %234 : vector<8x32xf32>
    %cst_118 = arith.constant dense<0.000000e+00> : vector<8xf32>
    %236 = vector.multi_reduction <add>, %235, %cst_118 [1] : vector<8x32xf32> to vector<8xf32>
    %237 = vector.shape_cast %236 : vector<8xf32> to vector<8x1xf32>
    %c0_119 = arith.constant 0 : index
    %c0_120 = arith.constant 0 : index
    %238 = vector.load %arg12[%c0_119, %c0_120] : memref<1x1xf32, #tpu.memory_space<vmem>>, vector<1x1xf32>
    %239 = vector.broadcast %238 : vector<1x1xf32> to vector<8x1xf32>
    %240 = arith.addf %237, %239 : vector<8x1xf32>
    %c0_121 = arith.constant 0 : index
    %c0_122 = arith.constant 0 : index
    %241 = vector.load %arg13[%c0_121, %c0_122] : memref<8x1xf32, #tpu.memory_space<vmem>>, vector<8x1xf32>
    tpu.vector_store %arg13[%c0_121, %c0_122], %240 {strides = array<i32>} : memref<8x1xf32, #tpu.memory_space<vmem>>, vector<8x1xf32>,
    return
  }
  func.func @transform_0(%arg0: i32) -> (i32, i32, i32) {
    %c0_i32 = arith.constant 0 : i32
    %c0_i32_0 = arith.constant 0 : i32
    %c0_i32_1 = arith.constant 0 : i32
    return %c0_i32, %arg0, %c0_i32_0 : i32, i32, i32
  }
  func.func @transform_1(%arg0: i32) -> (i32, i32) {
    %c0_i32 = arith.constant 0 : i32
    %c0_i32_0 = arith.constant 0 : i32
    return %arg0, %c0_i32 : i32, i32
  }
  func.func @transform_2(%arg0: i32) -> (i32, i32, i32) {
    %c0_i32 = arith.constant 0 : i32
    %c0_i32_0 = arith.constant 0 : i32
    %c0_i32_1 = arith.constant 0 : i32
    %c0_i32_2 = arith.constant 0 : i32
    return %c0_i32, %c0_i32_0, %c0_i32_1 : i32, i32, i32
  }
  func.func @transform_3(%arg0: i32) -> (i32, i32) {
    %c0_i32 = arith.constant 0 : i32
    %c0_i32_0 = arith.constant 0 : i32
    %c0_i32_1 = arith.constant 0 : i32
    return %c0_i32, %c0_i32_0 : i32, i32
  }
  func.func @transform_4(%arg0: i32) -> (i32, i32, i32) {
    %c0_i32 = arith.constant 0 : i32
    %c0_i32_0 = arith.constant 0 : i32
    %c0_i32_1 = arith.constant 0 : i32
    %c0_i32_2 = arith.constant 0 : i32
    return %c0_i32, %c0_i32_0, %c0_i32_1 : i32, i32, i32
  }
  func.func @transform_5(%arg0: i32) -> (i32, i32) {
    %c0_i32 = arith.constant 0 : i32
    %c0_i32_0 = arith.constant 0 : i32
    %c0_i32_1 = arith.constant 0 : i32
    return %c0_i32, %c0_i32_0 : i32, i32
  }
  func.func @transform_6(%arg0: i32) -> (i32, i32, i32) {
    %c0_i32 = arith.constant 0 : i32
    %c0_i32_0 = arith.constant 0 : i32
    %c0_i32_1 = arith.constant 0 : i32
    %c0_i32_2 = arith.constant 0 : i32
    return %c0_i32, %c0_i32_0, %c0_i32_1 : i32, i32, i32
  }
  func.func @transform_7(%arg0: i32) -> (i32, i32) {
    %c0_i32 = arith.constant 0 : i32
    %c0_i32_0 = arith.constant 0 : i32
    %c0_i32_1 = arith.constant 0 : i32
    return %c0_i32, %c0_i32_0 : i32, i32
  }
  func.func @transform_8(%arg0: i32) -> (i32, i32, i32) {
    %c0_i32 = arith.constant 0 : i32
    %c0_i32_0 = arith.constant 0 : i32
    %c0_i32_1 = arith.constant 0 : i32
    %c0_i32_2 = arith.constant 0 : i32
    return %c0_i32, %c0_i32_0, %c0_i32_1 : i32, i32, i32
  }
  func.func @transform_9(%arg0: i32) -> (i32, i32) {
    %c0_i32 = arith.constant 0 : i32
    %c0_i32_0 = arith.constant 0 : i32
    %c0_i32_1 = arith.constant 0 : i32
    return %c0_i32, %c0_i32_0 : i32, i32
  }
  func.func @transform_10(%arg0: i32) -> (i32, i32) {
    %c0_i32 = arith.constant 0 : i32
    %c0_i32_0 = arith.constant 0 : i32
    %c0_i32_1 = arith.constant 0 : i32
    return %c0_i32, %c0_i32_0 : i32, i32
  }
  func.func @transform_11(%arg0: i32) -> (i32, i32) {
    %c0_i32 = arith.constant 0 : i32
    %c0_i32_0 = arith.constant 0 : i32
    %c0_i32_1 = arith.constant 0 : i32
    return %c0_i32, %c0_i32_0 : i32, i32
  }
  func.func @transform_12(%arg0: i32) -> (i32, i32) {
    %c0_i32 = arith.constant 0 : i32
    %c0_i32_0 = arith.constant 0 : i32
    return %arg0, %c0_i32 : i32, i32
  }
}

</mosaic_0001>

<llo_original>
// kernel: convncf_forward.1
$region0: #{convncf_forward.1}
  #allocation0 [shape = 'u32[]', space=smem, size = 0x4, offset = 0x4, fixed_abs, tag = 'smem constant byte address 0x4 - core index']
  #allocation1 [shape = 'u32[144,128]{1,0:T(1,128)}', space=vmem, size = 0x12000, scoped, tag = 'internal scratch']
  #allocation2 [shape = 'f32[1,1]{1,0:T(1,128)S(1)}', space=vmem, size = 0x200, scoped, tag = 'scoped memory for convncf_forward.1']
  %s0 = inlined_call_operand.vmem [shape: f32[16,8,4], index: 0, kind: input, shape index: {}]
  %s1 = inlined_call_operand.vmem [shape: f32[8,64], index: 1, kind: input, shape index: {}]
  %s2 = inlined_call_operand.hbm [shape: f32[4,64,512], index: 2, kind: input, shape index: {}]
  %s3 = inlined_call_operand.vmem [shape: f32[1,512], index: 3, kind: input, shape index: {}]
  %s4 = inlined_call_operand.hbm [shape: f32[16,128,128], index: 4, kind: input, shape index: {}]
  %s5 = inlined_call_operand.vmem [shape: f32[1,128], index: 5, kind: input, shape index: {}]
  %s6 = inlined_call_operand.vmem [shape: f32[4,64,64], index: 6, kind: input, shape index: {}]
  %s7 = inlined_call_operand.vmem [shape: f32[1,64], index: 7, kind: input, shape index: {}]
  %s8 = inlined_call_operand.vmem [shape: f32[4,32,32], index: 8, kind: input, shape index: {}]
  %s9 = inlined_call_operand.vmem [shape: f32[1,32], index: 9, kind: input, shape index: {}]
  %s10 = inlined_call_operand.vmem [shape: f32[1,32], index: 10, kind: input, shape index: {}]
  %s11 = inlined_call_operand.<no memory space> [shape: f32[1,1], index: 11, kind: input, shape index: {}]
  %s12 = inlined_call_operand.vmem [shape: f32[8,1], index: 12, kind: output, shape index: {}]
  %s13 = sld [smem:[#allocation0]]
  $region66: #{convncf_forward.1} parent=0
    _
  %s15 = ssub.s32 1, %s13
  %s16 = scalar_select 0, %s15, %s13
  %v17 = vstv %s11
  %18 = vst [vmem:[#allocation2] sm:$0x1] %v17
  $region1: #{convncf_forward.1} parent=0
    #allocation3 [shape = 'u8[524288]{0}', space=vmem, size = 0x80000, scoped, tag = 'input window, operand 2, single buffered']
    #allocation4 [shape = 's32[1]{0}', space=sflag, size = 0x4, scoped, tag = 'scoped memory for convncf_forward.1']
    #allocation5 [shape = 'u8[1048576]{0}', space=vmem, size = 0x100000, scoped, tag = 'input window, operand 4, single buffered']
    #allocation6 [shape = 's32[1]{0}', space=sflag, size = 0x4, scoped, tag = 'scoped memory for convncf_forward.1']
    %19 = vsyncpa [#allocation4], 0
    %20 = vsyncpa [#allocation6], 0
    // Predicated region
    $region2: #{convncf_forward.1} parent=1 // pred_check
      _
    $region3: #{convncf_forward.1} parent=1 // pred_check_branch
      %22 = sbr.rel (0) target = $region5
    $region4: #{convncf_forward.1} parent=1 // pred_region
      _
    $region5: #{convncf_forward.1} parent=1 // pred_fallthru
      _
    // Predicated region
    $region6: #{convncf_forward.1} parent=1 // pred_check
      _
    $region7: #{convncf_forward.1} parent=1 // pred_check_branch
      %24 = sbr.rel (0) target = $region9
    $region8: #{convncf_forward.1} parent=1 // pred_region
      _
    $region9: #{convncf_forward.1} parent=1 // pred_fallthru
      _
    // Predicated region
    $region10: #{convncf_forward.1} parent=1 // pred_check
      _
    $region11: #{convncf_forward.1} parent=1 // pred_check_branch
      %26 = sbr.rel (0) target = $region13
    $region12: #{convncf_forward.1} parent=1 // pred_region
      %s28 = ssub.s32 16384, 16384
      %29 = vsyncadd [#allocation4], %s28
      %s30 = sshll.u32 [#allocation3], 4
      %s31 = int_to_ptr.vmem [resolvable:$true] %s30
      %36 = dma.hbm_to_vmem [thread:$0]  %s2, 16384, %s31, [#allocation4], 512, 512, 32
    $region13: #{convncf_forward.1} parent=1 // pred_fallthru
      _
    // Predicated region
    $region14: #{convncf_forward.1} parent=1 // pred_check
      _
    $region15: #{convncf_forward.1} parent=1 // pred_check_branch
      %38 = sbr.rel (0) target = $region17
    $region16: #{convncf_forward.1} parent=1 // pred_region
      _
    $region17: #{convncf_forward.1} parent=1 // pred_fallthru
      _
    // Predicated region
    $region18: #{convncf_forward.1} parent=1 // pred_check
      _
    $region19: #{convncf_forward.1} parent=1 // pred_check_branch
      %40 = sbr.rel (0) target = $region21
    $region20: #{convncf_forward.1} parent=1 // pred_region
      %s42 = ssub.s32 32768, 32768
      %43 = vsyncadd [#allocation6], %s42
      %s44 = sshll.u32 [#allocation5], 4
      %s45 = int_to_ptr.vmem [resolvable:$true] %s44
      %50 = dma.hbm_to_vmem [thread:$0]  %s4, 32768, %s45, [#allocation6], 128, 128, 8
    $region21: #{convncf_forward.1} parent=1 // pred_fallthru
      _
    // Predicated region
    $region22: #{convncf_forward.1} parent=1 // pred_check
      _
    $region23: #{convncf_forward.1} parent=1 // pred_check_branch
      %52 = sbr.rel (0) target = $region25
    $region24: #{convncf_forward.1} parent=1 // pred_region
      _
    $region25: #{convncf_forward.1} parent=1 // pred_fallthru
      _
    // Predicated region
    $region26: #{convncf_forward.1} parent=1 // pred_check
      _
    $region27: #{convncf_forward.1} parent=1 // pred_check_branch
      %54 = sbr.rel (0) target = $region29
    $region28: #{convncf_forward.1} parent=1 // pred_region
      _
    $region29: #{convncf_forward.1} parent=1 // pred_fallthru
      _
    // Predicated region
    $region30: #{convncf_forward.1} parent=1 // pred_check
      _
    $region31: #{convncf_forward.1} parent=1 // pred_check_branch
      %56 = sbr.rel (0) target = $region33
    $region32: #{convncf_forward.1} parent=1 // pred_region
      _
    $region33: #{convncf_forward.1} parent=1 // pred_fallthru
      _
    // Predicated region
    $region34: #{convncf_forward.1} parent=1 // pred_check
      _
    $region35: #{convncf_forward.1} parent=1 // pred_check_branch
      %58 = sbr.rel (0) target = $region37
    $region36: #{convncf_forward.1} parent=1 // pred_region
      _
    $region37: #{convncf_forward.1} parent=1 // pred_fallthru
      _
    // Predicated region
    $region38: #{convncf_forward.1} parent=1 // pred_check
      _
    $region39: #{convncf_forward.1} parent=1 // pred_check_branch
      %60 = sbr.rel (0) target = $region41
    $region40: #{convncf_forward.1} parent=1 // pred_region
      _
    $region41: #{convncf_forward.1} parent=1 // pred_fallthru
      _
    // Predicated region
    $region42: #{convncf_forward.1} parent=1 // pred_check
      _
    $region43: #{convncf_forward.1} parent=1 // pred_check_branch
      %62 = sbr.rel (0) target = $region45
    $region44: #{convncf_forward.1} parent=1 // pred_region
      _
    $region45: #{convncf_forward.1} parent=1 // pred_fallthru
      _
    // Predicated region
    $region46: #{convncf_forward.1} parent=1 // pred_check
      _
    $region47: #{convncf_forward.1} parent=1 // pred_check_branch
      %64 = sbr.rel (0) target = $region49
    $region48: #{convncf_forward.1} parent=1 // pred_region
      _
    $region49: #{convncf_forward.1} parent=1 // pred_fallthru
      _
    // Predicated region
    $region50: #{convncf_forward.1} parent=1 // pred_check
      _
    $region51: #{convncf_forward.1} parent=1 // pred_check_branch
      %66 = sbr.rel (0) target = $region53
    $region52: #{convncf_forward.1} parent=1 // pred_region
      %67 = dma.done [#allocation4], 16384
    $region53: #{convncf_forward.1} parent=1 // pred_fallthru
      _
    // Predicated region
    $region54: #{convncf_forward.1} parent=1 // pred_check
      _
    $region55: #{convncf_forward.1} parent=1 // pred_check_branch
      %69 = sbr.rel (0) target = $region57
    $region56: #{convncf_forward.1} parent=1 // pred_region
      %70 = dma.done [#allocation6], 32768
    $region57: #{convncf_forward.1} parent=1 // pred_fallthru
      _
    %v71 = vld [vmem:[%s0] sm:$0xff]
    %v72 = vld [vmem:[%s0 + $0x8] sm:$0xff]
    %v73 = vld [vmem:[%s0 + $0x10] sm:$0xff]
    %v74 = vld [vmem:[%s0 + $0x18] sm:$0xff]
    %v75 = vld [vmem:[%s0 + $0x20] sm:$0xff]
    %v76 = vld [vmem:[%s0 + $0x28] sm:$0xff]
    %v77 = vld [vmem:[%s0 + $0x30] sm:$0xff]
    %v78 = vld [vmem:[%s0 + $0x38] sm:$0xff]
    %v79 = vld [vmem:[%s0 + $0x40] sm:$0xff]
    %v80 = vld [vmem:[%s0 + $0x48] sm:$0xff]
    %v81 = vld [vmem:[%s0 + $0x50] sm:$0xff]
    %v82 = vld [vmem:[%s0 + $0x58] sm:$0xff]
    %v83 = vld [vmem:[%s0 + $0x60] sm:$0xff]
    %v84 = vld [vmem:[%s0 + $0x68] sm:$0xff]
    %v85 = vld [vmem:[%s0 + $0x70] sm:$0xff]
    %v86 = vld [vmem:[%s0 + $0x78] sm:$0xff]
    %v87 = vld [vmem:[%s1] sm:$0xff]
    %89 = vset.pattern.permute.xlu0 0
    %90 = vperm.xlu0 %89, %v71
    %v91 = vpop.permute.xlu0 %90
    %94 = vset.pattern.permute.xlu0 0
    %95 = vperm.xlu0 %94, %v72
    %v96 = vpop.permute.xlu0 %95
    %99 = vset.pattern.permute.xlu0 0
    %100 = vperm.xlu0 %99, %v73
    %v101 = vpop.permute.xlu0 %100
    %104 = vset.pattern.permute.xlu0 0
    %105 = vperm.xlu0 %104, %v74
    %v106 = vpop.permute.xlu0 %105
    %109 = vset.pattern.permute.xlu0 0
    %110 = vperm.xlu0 %109, %v75
    %v111 = vpop.permute.xlu0 %110
    %114 = vset.pattern.permute.xlu0 0
    %115 = vperm.xlu0 %114, %v76
    %v116 = vpop.permute.xlu0 %115
    %119 = vset.pattern.permute.xlu0 0
    %120 = vperm.xlu0 %119, %v77
    %v121 = vpop.permute.xlu0 %120
    %124 = vset.pattern.permute.xlu0 0
    %125 = vperm.xlu0 %124, %v78
    %v126 = vpop.permute.xlu0 %125
    %129 = vset.pattern.permute.xlu0 0
    %130 = vperm.xlu0 %129, %v79
    %v131 = vpop.permute.xlu0 %130
    %134 = vset.pattern.permute.xlu0 0
    %135 = vperm.xlu0 %134, %v80
    %v136 = vpop.permute.xlu0 %135
    %139 = vset.pattern.permute.xlu0 0
    %140 = vperm.xlu0 %139, %v81
    %v141 = vpop.permute.xlu0 %140
    %144 = vset.pattern.permute.xlu0 0
    %145 = vperm.xlu0 %144, %v82
    %v146 = vpop.permute.xlu0 %145
    %149 = vset.pattern.permute.xlu0 0
    %150 = vperm.xlu0 %149, %v83
    %v151 = vpop.permute.xlu0 %150
    %154 = vset.pattern.permute.xlu0 0
    %155 = vperm.xlu0 %154, %v84
    %v156 = vpop.permute.xlu0 %155
    %159 = vset.pattern.permute.xlu0 0
    %160 = vperm.xlu0 %159, %v85
    %v161 = vpop.permute.xlu0 %160
    %164 = vset.pattern.permute.xlu0 0
    %165 = vperm.xlu0 %164, %v86
    %v166 = vpop.permute.xlu0 %165
    %v168 = vmul.f32 %v91, %v87
    %v169 = vmul.f32 %v96, %v87
    %v170 = vmul.f32 %v101, %v87
    %v171 = vmul.f32 %v106, %v87
    %v172 = vmul.f32 %v111, %v87
    %v173 = vmul.f32 %v116, %v87
    %v174 = vmul.f32 %v121, %v87
    %v175 = vmul.f32 %v126, %v87
    %v176 = vmul.f32 %v131, %v87
    %v177 = vmul.f32 %v136, %v87
    %v178 = vmul.f32 %v141, %v87
    %v179 = vmul.f32 %v146, %v87
    %v180 = vmul.f32 %v151, %v87
    %v181 = vmul.f32 %v156, %v87
    %v182 = vmul.f32 %v161, %v87
    %v183 = vmul.f32 %v166, %v87
    %v184 = vld [vmem:[#allocation3] sm:$0xff]
    %v185 = vld [vmem:[#allocation3 + $0x8] sm:$0xff]
    %v186 = vld [vmem:[#allocation3 + $0x10] sm:$0xff]
    %v187 = vld [vmem:[#allocation3 + $0x18] sm:$0xff]
    %v188 = vld [vmem:[#allocation3 + $0x20] sm:$0xff]
    %v189 = vld [vmem:[#allocation3 + $0x28] sm:$0xff]
    %v190 = vld [vmem:[#allocation3 + $0x30] sm:$0xff]
    %v191 = vld [vmem:[#allocation3 + $0x38] sm:$0xff]
    %v192 = vld [vmem:[#allocation3 + $0x40] sm:$0xff]
    %v193 = vld [vmem:[#allocation3 + $0x48] sm:$0xff]
    %v194 = vld [vmem:[#allocation3 + $0x50] sm:$0xff]
    %v195 = vld [vmem:[#allocation3 + $0x58] sm:$0xff]
    %v196 = vld [vmem:[#allocation3 + $0x60] sm:$0xff]
    %v197 = vld [vmem:[#allocation3 + $0x68] sm:$0xff]
    %v198 = vld [vmem:[#allocation3 + $0x70] sm:$0xff]
    %v199 = vld [vmem:[#allocation3 + $0x78] sm:$0xff]
    %v200 = vld [vmem:[#allocation3 + $0x80] sm:$0xff]
    %v201 = vld [vmem:[#allocation3 + $0x88] sm:$0xff]
    %v202 = vld [vmem:[#allocation3 + $0x90] sm:$0xff]
    %v203 = vld [vmem:[#allocation3 + $0x98] sm:$0xff]
    %v204 = vld [vmem:[#allocation3 + $0xa0] sm:$0xff]
    %v205 = vld [vmem:[#allocation3 + $0xa8] sm:$0xff]
    %v206 = vld [vmem:[#allocation3 + $0xb0] sm:$0xff]
    %v207 = vld [vmem:[#allocation3 + $0xb8] sm:$0xff]
    %v208 = vld [vmem:[#allocation3 + $0xc0] sm:$0xff]
    %v209 = vld [vmem:[#allocation3 + $0xc8] sm:$0xff]
    %v210 = vld [vmem:[#allocation3 + $0xd0] sm:$0xff]
    %v211 = vld [vmem:[#allocation3 + $0xd8] sm:$0xff]
    %v212 = vld [vmem:[#allocation3 + $0xe0] sm:$0xff]
    %v213 = vld [vmem:[#allocation3 + $0xe8] sm:$0xff]
    %v214 = vld [vmem:[#allocation3 + $0xf0] sm:$0xff]
    %v215 = vld [vmem:[#allocation3 + $0xf8] sm:$0xff]
    %216 = vset.pattern.permute.xlu0 1
    %217 = vperm.xlu0 %216, %v71
    %v218 = vpop.permute.xlu0 %217
    %220 = vset.pattern.permute.xlu0 1
    %221 = vperm.xlu0 %220, %v72
    %v222 = vpop.permute.xlu0 %221
    %224 = vset.pattern.permute.xlu0 1
    %225 = vperm.xlu0 %224, %v73
    %v226 = vpop.permute.xlu0 %225
    %228 = vset.pattern.permute.xlu0 1
    %229 = vperm.xlu0 %228, %v74
    %v230 = vpop.permute.xlu0 %229
    %232 = vset.pattern.permute.xlu0 1
    %233 = vperm.xlu0 %232, %v75
    %v234 = vpop.permute.xlu0 %233
    %236 = vset.pattern.permute.xlu0 1
    %237 = vperm.xlu0 %236, %v76
    %v238 = vpop.permute.xlu0 %237
    %240 = vset.pattern.permute.xlu0 1
    %241 = vperm.xlu0 %240, %v77
    %v242 = vpop.permute.xlu0 %241
    %244 = vset.pattern.permute.xlu0 1
    %245 = vperm.xlu0 %244, %v78
    %v246 = vpop.permute.xlu0 %245
    %248 = vset.pattern.permute.xlu0 1
    %249 = vperm.xlu0 %248, %v79
    %v250 = vpop.permute.xlu0 %249
    %252 = vset.pattern.permute.xlu0 1
    %253 = vperm.xlu0 %252, %v80
    %v254 = vpop.permute.xlu0 %253
    %256 = vset.pattern.permute.xlu0 1
    %257 = vperm.xlu0 %256, %v81
    %v258 = vpop.permute.xlu0 %257
    %260 = vset.pattern.permute.xlu0 1
    %261 = vperm.xlu0 %260, %v82
    %v262 = vpop.permute.xlu0 %261
    %264 = vset.pattern.permute.xlu0 1
    %265 = vperm.xlu0 %264, %v83
    %v266 = vpop.permute.xlu0 %265
    %268 = vset.pattern.permute.xlu0 1
    %269 = vperm.xlu0 %268, %v84
    %v270 = vpop.permute.xlu0 %269
    %272 = vset.pattern.permute.xlu0 1
    %273 = vperm.xlu0 %272, %v85
    %v274 = vpop.permute.xlu0 %273
    %276 = vset.pattern.permute.xlu0 1
    %277 = vperm.xlu0 %276, %v86
    %v278 = vpop.permute.xlu0 %277
    %v280 = vmul.f32 %v218, %v87
    %v281 = vmul.f32 %v222, %v87
    %v282 = vmul.f32 %v226, %v87
    %v283 = vmul.f32 %v230, %v87
    %v284 = vmul.f32 %v234, %v87
    %v285 = vmul.f32 %v238, %v87
    %v286 = vmul.f32 %v242, %v87
    %v287 = vmul.f32 %v246, %v87
    %v288 = vmul.f32 %v250, %v87
    %v289 = vmul.f32 %v254, %v87
    %v290 = vmul.f32 %v258, %v87
    %v291 = vmul.f32 %v262, %v87
    %v292 = vmul.f32 %v266, %v87
    %v293 = vmul.f32 %v270, %v87
    %v294 = vmul.f32 %v274, %v87
    %v295 = vmul.f32 %v278, %v87
    %s296 = scalar_lea.vmem [#allocation3], 256
    %v297 = vld [vmem:[%s296] sm:$0xff]
    %v298 = vld [vmem:[%s296 + $0x8] sm:$0xff]
    %v299 = vld [vmem:[%s296 + $0x10] sm:$0xff]
    %v300 = vld [vmem:[%s296 + $0x18] sm:$0xff]
    %v301 = vld [vmem:[%s296 + $0x20] sm:$0xff]
    %v302 = vld [vmem:[%s296 + $0x28] sm:$0xff]
    %v303 = vld [vmem:[%s296 + $0x30] sm:$0xff]
    %v304 = vld [vmem:[%s296 + $0x38] sm:$0xff]
    %v305 = vld [vmem:[%s296 + $0x40] sm:$0xff]
    %v306 = vld [vmem:[%s296 + $0x48] sm:$0xff]
    %v307 = vld [vmem:[%s296 + $0x50] sm:$0xff]
    %v308 = vld [vmem:[%s296 + $0x58] sm:$0xff]
    %v309 = vld [vmem:[%s296 + $0x60] sm:$0xff]
    %v310 = vld [vmem:[%s296 + $0x68] sm:$0xff]
    %v311 = vld [vmem:[%s296 + $0x70] sm:$0xff]
    %v312 = vld [vmem:[%s296 + $0x78] sm:$0xff]
    %v313 = vld [vmem:[%s296 + $0x80] sm:$0xff]
    %v314 = vld [vmem:[%s296 + $0x88] sm:$0xff]
    %v315 = vld [vmem:[%s296 + $0x90] sm:$0xff]
    %v316 = vld [vmem:[%s296 + $0x98] sm:$0xff]
    %v317 = vld [vmem:[%s296 + $0xa0] sm:$0xff]
    %v318 = vld [vmem:[%s296 + $0xa8] sm:$0xff]
    %v319 = vld [vmem:[%s296 + $0xb0] sm:$0xff]
    %v320 = vld [vmem:[%s296 + $0xb8] sm:$0xff]
    %v321 = vld [vmem:[%s296 + $0xc0] sm:$0xff]
    %v322 = vld [vmem:[%s296 + $0xc8] sm:$0xff]
    %v323 = vld [vmem:[%s296 + $0xd0] sm:$0xff]
    %v324 = vld [vmem:[%s296 + $0xd8] sm:$0xff]
    %v325 = vld [vmem:[%s296 + $0xe0] sm:$0xff]
    %v326 = vld [vmem:[%s296 + $0xe8] sm:$0xff]
    %v327 = vld [vmem:[%s296 + $0xf0] sm:$0xff]
    %v328 = vld [vmem:[%s296 + $0xf8] sm:$0xff]
    %vm329 = vcmask 523264
    %v331 = vsel %vm329, %v280, 0
    %v334 = vsel %vm329, %v281, 0
    %v337 = vsel %vm329, %v282, 0
    %v340 = vsel %vm329, %v283, 0
    %v343 = vsel %vm329, %v284, 0
    %v346 = vsel %vm329, %v285, 0
    %v349 = vsel %vm329, %v286, 0
    %v352 = vsel %vm329, %v287, 0
    %v355 = vsel %vm329, %v288, 0
    %v358 = vsel %vm329, %v289, 0
    %v361 = vsel %vm329, %v290, 0
    %v364 = vsel %vm329, %v291, 0
    %v367 = vsel %vm329, %v292, 0
    %v370 = vsel %vm329, %v293, 0
    %v373 = vsel %vm329, %v294, 0
    %v376 = vsel %vm329, %v295, 0
    %378 = vmatprep.subr.mxu0 %v298
    %379 = vmatpush1.msra.mxu0 %v297
    %380 = vmatprep.subr.mxu0 %v302
    %381 = vmatpush1.msra.mxu0 %v301
    %382 = vmatprep.subr.mxu0 %v306
    %383 = vmatpush1.msra.mxu0 %v305
    %384 = vmatprep.subr.mxu0 %v310
    %385 = vmatpush1.msra.mxu0 %v309
    %386 = vmatprep.subr.mxu0 %v314
    %387 = vmatpush1.msra.mxu0 %v313
    %388 = vmatprep.subr.mxu0 %v318
    %389 = vmatpush1.msra.mxu0 %v317
    %390 = vmatprep.subr.mxu0 %v322
    %391 = vmatpush1.msra.mxu0 %v321
    %392 = vmatprep.subr.mxu0 %v326
    %393 = vmatpush1.msra.mxu0 %v325
    %394 = vmatprep.subr.mxu0 0.0
    %395 = vmatpush1.msra.mxu0 0.0
    %396 = vmatprep.subr.mxu0 0.0
    %397 = vmatpush1.msra.mxu0 0.0
    %398 = vmatprep.subr.mxu0 0.0
    %399 = vmatpush1.msra.mxu0 0.0
    %400 = vmatprep.subr.mxu0 0.0
    %401 = vmatpush1.msra.mxu0 0.0
    %402 = vmatprep.subr.mxu0 0.0
    %403 = vmatpush1.msra.mxu0 0.0
    %404 = vmatprep.subr.mxu0 0.0
    %405 = vmatpush1.msra.mxu0 0.0
    %406 = vmatprep.subr.mxu0 0.0
    %407 = vmatpush1.msra.mxu0 0.0
    %408 = vmatprep.subr.mxu0 0.0
    %409 = vmatpush1.msra.mxu0 0.0
    %410 = vmatprep.subr.mxu0 0.0
    %411 = vmatpush1.msra.mxu0 0.0
    %412 = vmatprep.subr.mxu0 0.0
    %413 = vmatpush1.msra.mxu0 0.0
    %414 = vmatprep.subr.mxu0 0.0
    %415 = vmatpush1.msra.mxu0 0.0
    %416 = vmatprep.subr.mxu0 0.0
    %417 = vmatpush1.msra.mxu0 0.0
    %418 = vmatprep.subr.mxu0 0.0
    %419 = vmatpush1.msra.mxu0 0.0
    %420 = vmatprep.subr.mxu0 0.0
    %421 = vmatpush1.msra.mxu0 0.0
    %422 = vmatprep.subr.mxu0 0.0
    %423 = vmatpush1.msra.mxu0 0.0
    %424 = vmatprep.subr.mxu0 0.0
    %425 = vmatpush1.msra.mxu0 0.0
    %426 = vmatprep.subr.mxu0 0.0
    %427 = vmatpush1.msra.mxu0 0.0
    %428 = vmatprep.subr.mxu0 0.0
    %429 = vmatpush1.msra.mxu0 0.0
    %430 = vmatprep.subr.mxu0 0.0
    %431 = vmatpush1.msra.mxu0 0.0
    %432 = vmatprep.subr.mxu0 0.0
    %433 = vmatpush1.msra.mxu0 0.0
    %434 = vmatprep.subr.mxu0 0.0
    %435 = vmatpush1.msra.mxu0 0.0
    %436 = vmatprep.subr.mxu0 0.0
    %437 = vmatpush1.msra.mxu0 0.0
    %438 = vmatprep.subr.mxu0 0.0
    %439 = vmatpush1.msra.mxu0 0.0
    %440 = vmatprep.subr.mxu0 0.0
    %441 = vmatpush1.msra.mxu0 0.0
    %442 = vmatprep.mubr.f32.mxu0 0.0
    %443 = vmatmul.mubr.f32.gmra.mrb[0].mxu0 %v331
    %v444 = vpop.f32.mrb[0].mxu0
    %v445 = vadd.f32 0.0, %v444
    %v446 = vpop.f32.mrb[0].mxu0
    %v447 = vadd.f32 0.0, %v446
    %448 = vmatprep.mubr.f32.mxu0 0.0
    %449 = vmatmul.mubr.f32.gmra.mrb[0].mxu0 %v334
    %v450 = vpop.f32.mrb[0].mxu0
    %v451 = vadd.f32 0.0, %v450
    %v452 = vpop.f32.mrb[0].mxu0
    %v453 = vadd.f32 0.0, %v452
    %454 = vmatprep.mubr.f32.mxu0 0.0
    %455 = vmatmul.mubr.f32.gmra.mrb[0].mxu0 %v337
    %v456 = vpop.f32.mrb[0].mxu0
    %v457 = vadd.f32 0.0, %v456
    %v458 = vpop.f32.mrb[0].mxu0
    %v459 = vadd.f32 0.0, %v458
    %460 = vmatprep.mubr.f32.mxu0 0.0
    %461 = vmatmul.mubr.f32.gmra.mrb[0].mxu0 %v340
    %v462 = vpop.f32.mrb[0].mxu0
    %v463 = vadd.f32 0.0, %v462
    %v464 = vpop.f32.mrb[0].mxu0
    %v465 = vadd.f32 0.0, %v464
    %466 = vmatprep.mubr.f32.mxu0 0.0
    %467 = vmatmul.mubr.f32.gmra.mrb[0].mxu0 %v343
    %v468 = vpop.f32.mrb[0].mxu0
    %v469 = vadd.f32 0.0, %v468
    %v470 = vpop.f32.mrb[0].mxu0
    %v471 = vadd.f32 0.0, %v470
    %472 = vmatprep.mubr.f32.mxu0 0.0
    %473 = vmatmul.mubr.f32.gmra.mrb[0].mxu0 %v346
    %v474 = vpop.f32.mrb[0].mxu0
    %v475 = vadd.f32 0.0, %v474
    %v476 = vpop.f32.mrb[0].mxu0
    %v477 = vadd.f32 0.0, %v476
    %478 = vmatprep.mubr.f32.mxu0 0.0
    %479 = vmatmul.mubr.f32.gmra.mrb[0].mxu0 %v349
    %v480 = vpop.f32.mrb[0].mxu0
    %v481 = vadd.f32 0.0, %v480
    %v482 = vpop.f32.mrb[0].mxu0
    %v483 = vadd.f32 0.0, %v482
    %484 = vmatprep.mubr.f32.mxu0 0.0
    %485 = vmatmul.mubr.f32.gmra.mrb[0].mxu0 %v352
    %v486 = vpop.f32.mrb[0].mxu0
    %v487 = vadd.f32 0.0, %v486
    %v488 = vpop.f32.mrb[0].mxu0
    %v489 = vadd.f32 0.0, %v488
    %490 = vmatprep.mubr.f32.mxu0 0.0
    %491 = vmatmul.mubr.f32.gmra.mrb[0].mxu0 %v355
    %v492 = vpop.f32.mrb[0].mxu0
    %v493 = vadd.f32 0.0, %v492
    %v494 = vpop.f32.mrb[0].mxu0
    %v495 = vadd.f32 0.0, %v494
    %496 = vmatprep.mubr.f32.mxu0 0.0
    %497 = vmatmul.mubr.f32.gmra.mrb[0].mxu0 %v358
    %v498 = vpop.f32.mrb[0].mxu0
    %v499 = vadd.f32 0.0, %v498
    %v500 = vpop.f32.mrb[0].mxu0
    %v501 = vadd.f32 0.0, %v500
    %502 = vmatprep.mubr.f32.mxu0 0.0
    %503 = vmatmul.mubr.f32.gmra.mrb[0].mxu0 %v361
    %v504 = vpop.f32.mrb[0].mxu0
    %v505 = vadd.f32 0.0, %v504
    %v506 = vpop.f32.mrb[0].mxu0
    %v507 = vadd.f32 0.0, %v506
    %508 = vmatprep.mubr.f32.mxu0 0.0
    %509 = vmatmul.mubr.f32.gmra.mrb[0].mxu0 %v364
    %v510 = vpop.f32.mrb[0].mxu0
    %v511 = vadd.f32 0.0, %v510
    %v512 = vpop.f32.mrb[0].mxu0
    %v513 = vadd.f32 0.0, %v512
    %514 = vmatprep.mubr.f32.mxu0 0.0
    %515 = vmatmul.mubr.f32.gmra.mrb[0].mxu0 %v367
    %v516 = vpop.f32.mrb[0].mxu0
    %v517 = vadd.f32 0.0, %v516
    %v518 = vpop.f32.mrb[0].mxu0
    %v519 = vadd.f32 0.0, %v518
    %520 = vmatprep.mubr.f32.mxu0 0.0
    %521 = vmatmul.mubr.f32.gmra.mrb[0].mxu0 %v370
    %v522 = vpop.f32.mrb[0].mxu0
    %v523 = vadd.f32 0.0, %v522
    %v524 = vpop.f32.mrb[0].mxu0
    %v525 = vadd.f32 0.0, %v524
    %526 = vmatprep.mubr.f32.mxu0 0.0
    %527 = vmatmul.mubr.f32.gmra.mrb[0].mxu0 %v373
    %v528 = vpop.f32.mrb[0].mxu0
    %v529 = vadd.f32 0.0, %v528
    %v530 = vpop.f32.mrb[0].mxu0
    %v531 = vadd.f32 0.0, %v530
    %532 = vmatprep.mubr.f32.mxu0 0.0
    %533 = vmatmul.mubr.f32.gmra.mrb[0].mxu0 %v376
    %v534 = vpop.f32.mrb[0].mxu0
    %v535 = vadd.f32 0.0, %v534
    %v536 = vpop.f32.mrb[0].mxu0
    %v537 = vadd.f32 0.0, %v536
    %538 = vdwg.mxu0
    %539 = vmatprep.subr.mxu0 %v300
    %540 = vmatpush1.msra.mxu0 %v299
    %541 = vmatprep.subr.mxu0 %v304
    %542 = vmatpush1.msra.mxu0 %v303
    %543 = vmatprep.subr.mxu0 %v308
    %544 = vmatpush1.msra.mxu0 %v307
    %545 = vmatprep.subr.mxu0 %v312
    %546 = vmatpush1.msra.mxu0 %v311
    %547 = vmatprep.subr.mxu0 %v316
    %548 = vmatpush1.msra.mxu0 %v315
    %549 = vmatprep.subr.mxu0 %v320
    %550 = vmatpush1.msra.mxu0 %v319
    %551 = vmatprep.subr.mxu0 %v324
    %552 = vmatpush1.msra.mxu0 %v323
    %553 = vmatprep.subr.mxu0 %v328
    %554 = vmatpush1.msra.mxu0 %v327
    %555 = vmatprep.subr.mxu0 0.0
    %556 = vmatpush1.msra.mxu0 0.0
    %557 = vmatprep.subr.mxu0 0.0
    %558 = vmatpush1.msra.mxu0 0.0
    %559 = vmatprep.subr.mxu0 0.0
    %560 = vmatpush1.msra.mxu0 0.0
    %561 = vmatprep.subr.mxu0 0.0
    %562 = vmatpush1.msra.mxu0 0.0
    %563 = vmatprep.subr.mxu0 0.0
    %564 = vmatpush1.msra.mxu0 0.0
    %565 = vmatprep.subr.mxu0 0.0
    %566 = vmatpush1.msra.mxu0 0.0
    %567 = vmatprep.subr.mxu0 0.0
    %568 = vmatpush1.msra.mxu0 0.0
    %569 = vmatprep.subr.mxu0 0.0
    %570 = vmatpush1.msra.mxu0 0.0
    %571 = vmatprep.subr.mxu0 0.0
    %572 = vmatpush1.msra.mxu0 0.0
    %573 = vmatprep.subr.mxu0 0.0
    %574 = vmatpush1.msra.mxu0 0.0
    %575 = vmatprep.subr.mxu0 0.0
    %576 = vmatpush1.msra.mxu0 0.0
    %577 = vmatprep.subr.mxu0 0.0
    %578 = vmatpush1.msra.mxu0 0.0
    %579 = vmatprep.subr.mxu0 0.0
    %580 = vmatpush1.msra.mxu0 0.0
    %581 = vmatprep.subr.mxu0 0.0
    %582 = vmatpush1.msra.mxu0 0.0
    %583 = vmatprep.subr.mxu0 0.0
    %584 = vmatpush1.msra.mxu0 0.0
    %585 = vmatprep.subr.mxu0 0.0
    %586 = vmatpush1.msra.mxu0 0.0
    %587 = vmatprep.subr.mxu0 0.0
    %588 = vmatpush1.msra.mxu0 0.0
    %589 = vmatprep.subr.mxu0 0.0
    %590 = vmatpush1.msra.mxu0 0.0
    %591 = vmatprep.subr.mxu0 0.0
    %592 = vmatpush1.msra.mxu0 0.0
    %593 = vmatprep.subr.mxu0 0.0
    %594 = vmatpush1.msra.mxu0 0.0
    %595 = vmatprep.subr.mxu0 0.0
    %596 = vmatpush1.msra.mxu0 0.0
    %597 = vmatprep.subr.mxu0 0.0
    %598 = vmatpush1.msra.mxu0 0.0
    %599 = vmatprep.subr.mxu0 0.0
    %600 = vmatpush1.msra.mxu0 0.0
    %601 = vmatprep.subr.mxu0 0.0
    %602 = vmatpush1.msra.mxu0 0.0
    %603 = vmatprep.mubr.f32.mxu0 0.0
    %604 = vmatmul.mubr.f32.gmra.mrb[0].mxu0 %v331
    %v605 = vpop.f32.mrb[0].mxu0
    %v606 = vadd.f32 0.0, %v605
    %v607 = vpop.f32.mrb[0].mxu0
    %v608 = vadd.f32 0.0, %v607
    %609 = vmatprep.mubr.f32.mxu0 0.0
    %610 = vmatmul.mubr.f32.gmra.mrb[0].mxu0 %v334
    %v611 = vpop.f32.mrb[0].mxu0
    %v612 = vadd.f32 0.0, %v611
    %v613 = vpop.f32.mrb[0].mxu0
    %v614 = vadd.f32 0.0, %v613
    %615 = vmatprep.mubr.f32.mxu0 0.0
    %616 = vmatmul.mubr.f32.gmra.mrb[0].mxu0 %v337
    %v617 = vpop.f32.mrb[0].mxu0
    %v618 = vadd.f32 0.0, %v617
    %v619 = vpop.f32.mrb[0].mxu0
    %v620 = vadd.f32 0.0, %v619
    %621 = vmatprep.mubr.f32.mxu0 0.0
    %622 = vmatmul.mubr.f32.gmra.mrb[0].mxu0 %v340
    %v623 = vpop.f32.mrb[0].mxu0
    %v624 = vadd.f32 0.0, %v623
    %v625 = vpop.f32.mrb[0].mxu0
    %v626 = vadd.f32 0.0, %v625
    %627 = vmatprep.mubr.f32.mxu0 0.0
    %628 = vmatmul.mubr.f32.gmra.mrb[0].mxu0 %v343
    %v629 = vpop.f32.mrb[0].mxu0
    %v630 = vadd.f32 0.0, %v629
    %v631 = vpop.f32.mrb[0].mxu0
    %v632 = vadd.f32 0.0, %v631
    %633 = vmatprep.mubr.f32.mxu0 0.0
    %634 = vmatmul.mubr.f32.gmra.mrb[0].mxu0 %v346
    %v635 = vpop.f32.mrb[0].mxu0
    %v636 = vadd.f32 0.0, %v635
    %v637 = vpop.f32.mrb[0].mxu0
    %v638 = vadd.f32 0.0, %v637
    %639 = vmatprep.mubr.f32.mxu0 0.0
    %640 = vmatmul.mubr.f32.gmra.mrb[0].mxu0 %v349
    %v641 = vpop.f32.mrb[0].mxu0
    %v642 = vadd.f32 0.0, %v641
    %v643 = vpop.f32.mrb[0].mxu0
    %v644 = vadd.f32 0.0, %v643
    %645 = vmatprep.mubr.f32.mxu0 0.0
    %646 = vmatmul.mubr.f32.gmra.mrb[0].mxu0 %v352
    %v647 = vpop.f32.mrb[0].mxu0
    %v648 = vadd.f32 0.0, %v647
    %v649 = vpop.f32.mrb[0].mxu0
    %v650 = vadd.f32 0.0, %v649
    %651 = vmatprep.mubr.f32.mxu0 0.0
    %652 = vmatmul.mubr.f32.gmra.mrb[0].mxu0 %v355
    %v653 = vpop.f32.mrb[0].mxu0
    %v654 = vadd.f32 0.0, %v653
    %v655 = vpop.f32.mrb[0].mxu0
    %v656 = vadd.f32 0.0, %v655
    %657 = vmatprep.mubr.f32.mxu0 0.0
    %658 = vmatmul.mubr.f32.gmra.mrb[0].mxu0 %v358
    %v659 = vpop.f32.mrb[0].mxu0
    %v660 = vadd.f32 0.0, %v659
    %v661 = vpop.f32.mrb[0].mxu0
    %v662 = vadd.f32 0.0, %v661
    %663 = vmatprep.mubr.f32.mxu0 0.0
    %664 = vmatmul.mubr.f32.gmra.mrb[0].mxu0 %v361
    %v665 = vpop.f32.mrb[0].mxu0
    %v666 = vadd.f32 0.0, %v665
    %v667 = vpop.f32.mrb[0].mxu0
    %v668 = vadd.f32 0.0, %v667
    %669 = vmatprep.mubr.f32.mxu0 0.0
    %670 = vmatmul.mubr.f32.gmra.mrb[0].mxu0 %v364
    %v671 = vpop.f32.mrb[0].mxu0
    %v672 = vadd.f32 0.0, %v671
    %v673 = vpop.f32.mrb[0].mxu0
    %v674 = vadd.f32 0.0, %v673
    %675 = vmatprep.mubr.f32.mxu0 0.0
    %676 = vmatmul.mubr.f32.gmra.mrb[0].mxu0 %v367
    %v677 = vpop.f32.mrb[0].mxu0
    %v678 = vadd.f32 0.0, %v677
    %v679 = vpop.f32.mrb[0].mxu0
    %v680 = vadd.f32 0.0, %v679
    %681 = vmatprep.mubr.f32.mxu0 0.0
    %682 = vmatmul.mubr.f32.gmra.mrb[0].mxu0 %v370
    %v683 = vpop.f32.mrb[0].mxu0
    %v684 = vadd.f32 0.0, %v683
    %v685 = vpop.f32.mrb[0].mxu0
    %v686 = vadd.f32 0.0, %v685
    %687 = vmatprep.mubr.f32.mxu0 0.0
    %688 = vmatmul.mubr.f32.gmra.mrb[0].mxu0 %v373
    %v689 = vpop.f32.mrb[0].mxu0
    %v690 = vadd.f32 0.0, %v689
    %v691 = vpop.f32.mrb[0].mxu0
    %v692 = vadd.f32 0.0, %v691
    %693 = vmatprep.mubr.f32.mxu0 0.0
    %694 = vmatmul.mubr.f32.gmra.mrb[0].mxu0 %v376
    %v695 = vpop.f32.mrb[0].mxu0
    %v696 = vadd.f32 0.0, %v695
    %v697 = vpop.f32.mrb[0].mxu0
    %v698 = vadd.f32 0.0, %v697
    %699 = vdwg.mxu0
    %v701 = vsel %vm329, %v168, 0
    %v704 = vsel %vm329, %v169, 0
    %v707 = vsel %vm329, %v170, 0
    %v710 = vsel %vm329, %v171, 0
    %v713 = vsel %vm329, %v172, 0
    %v716 = vsel %vm329, %v173, 0
    %v719 = vsel %vm329, %v174, 0
    %v722 = vsel %vm329, %v175, 0
    %v725 = vsel %vm329, %v176, 0
    %v728 = vsel %vm329, %v177, 0
    %v731 = vsel %vm329, %v178, 0
    %v734 = vsel %vm329, %v179, 0
    %v737 = vsel %vm329, %v180, 0
    %v740 = vsel %vm329, %v181, 0
    %v743 = vsel %vm329, %v182, 0
    %v746 = vsel %vm329, %v183, 0
    %748 = vmatprep.subr.mxu0 %v185
    %749 = vmatpush1.msra.mxu0 %v184
    %750 = vmatprep.subr.mxu0 %v189
    %751 = vmatpush1.msra.mxu0 %v188
    %752 = vmatprep.subr.mxu0 %v193
    %753 = vmatpush1.msra.mxu0 %v192
    %754 = vmatprep.subr.mxu0 %v197
    %755 = vmatpush1.msra.mxu0 %v196
    %756 = vmatprep.subr.mxu0 %v201
    %757 = vmatpush1.msra.mxu0 %v200
    %758 = vmatprep.subr.mxu0 %v205
    %759 = vmatpush1.msra.mxu0 %v204
    %760 = vmatprep.subr.mxu0 %v209
    %761 = vmatpush1.msra.mxu0 %v208
    %762 = vmatprep.subr.mxu0 %v213
    %763 = vmatpush1.msra.mxu0 %v212
    %764 = vmatprep.subr.mxu0 0.0
    %765 = vmatpush1.msra.mxu0 0.0
    %766 = vmatprep.subr.mxu0 0.0
    %767 = vmatpush1.msra.mxu0 0.0
    %768 = vmatprep.subr.mxu0 0.0
    %769 = vmatpush1.msra.mxu0 0.0
    %770 = vmatprep.subr.mxu0 0.0
    %771 = vmatpush1.msra.mxu0 0.0
    %772 = vmatprep.subr.mxu0 0.0
    %773 = vmatpush1.msra.mxu0 0.0
    %774 = vmatprep.subr.mxu0 0.0
    %775 = vmatpush1.msra.mxu0 0.0
    %776 = vmatprep.subr.mxu0 0.0
    %777 = vmatpush1.msra.mxu0 0.0
    %778 = vmatprep.subr.mxu0 0.0
    %779 = vmatpush1.msra.mxu0 0.0
    %780 = vmatprep.subr.mxu0 0.0
    %781 = vmatpush1.msra.mxu0 0.0
    %782 = vmatprep.subr.mxu0 0.0
    %783 = vmatpush1.msra.mxu0 0.0
    %784 = vmatprep.subr.mxu0 0.0
    %785 = vmatpush1.msra.mxu0 0.0
    %786 = vmatprep.subr.mxu0 0.0
    %787 = vmatpush1.msra.mxu0 0.0
    %788 = vmatprep.subr.mxu0 0.0
    %789 = vmatpush1.msra.mxu0 0.0
    %790 = vmatprep.subr.mxu0 0.0
    %791 = vmatpush1.msra.mxu0 0.0
    %792 = vmatprep.subr.mxu0 0.0
    %793 = vmatpush1.msra.mxu0 0.0
    %794 = vmatprep.subr.mxu0 0.0
    %795 = vmatpush1.msra.mxu0 0.0
    %796 = vmatprep.subr.mxu0 0.0
    %797 = vmatpush1.msra.mxu0 0.0
    %798 = vmatprep.subr.mxu0 0.0
    %799 = vmatpush1.msra.mxu0 0.0
    %800 = vmatprep.subr.mxu0 0.0
    %801 = vmatpush1.msra.mxu0 0.0
    %802 = vmatprep.subr.mxu0 0.0
    %803 = vmatpush1.msra.mxu0 0.0
    %804 = vmatprep.subr.mxu0 0.0
    %805 = vmatpush1.msra.mxu0 0.0
    %806 = vmatprep.subr.mxu0 0.0
    %807 = vmatpush1.msra.mxu0 0.0
    %808 = vmatprep.subr.mxu0 0.0
    %809 = vmatpush1.msra.mxu0 0.0
    %810 = vmatprep.subr.mxu0 0.0
    %811 = vmatpush1.msra.mxu0 0.0
    %812 = vmatprep.mubr.f32.mxu0 0.0
    %813 = vmatmul.mubr.f32.gmra.mrb[0].mxu0 %v701
    %v814 = vpop.f32.mrb[0].mxu0
    %v815 = vadd.f32 %v445, %v814
    %v816 = vpop.f32.mrb[0].mxu0
    %v817 = vadd.f32 %v447, %v816
    %818 = vmatprep.mubr.f32.mxu0 0.0
    %819 = vmatmul.mubr.f32.gmra.mrb[0].mxu0 %v704
    %v820 = vpop.f32.mrb[0].mxu0
    %v821 = vadd.f32 %v451, %v820
    %v822 = vpop.f32.mrb[0].mxu0
    %v823 = vadd.f32 %v453, %v822
    %824 = vmatprep.mubr.f32.mxu0 0.0
    %825 = vmatmul.mubr.f32.gmra.mrb[0].mxu0 %v707
    %v826 = vpop.f32.mrb[0].mxu0
    %v827 = vadd.f32 %v457, %v826
    %v828 = vpop.f32.mrb[0].mxu0
    %v829 = vadd.f32 %v459, %v828
    %830 = vmatprep.mubr.f32.mxu0 0.0
    %831 = vmatmul.mubr.f32.gmra.mrb[0].mxu0 %v710
    %v832 = vpop.f32.mrb[0].mxu0
    %v833 = vadd.f32 %v463, %v832
    %v834 = vpop.f32.mrb[0].mxu0
    %v835 = vadd.f32 %v465, %v834
    %836 = vmatprep.mubr.f32.mxu0 0.0
    %837 = vmatmul.mubr.f32.gmra.mrb[0].mxu0 %v713
    %v838 = vpop.f32.mrb[0].mxu0
    %v839 = vadd.f32 %v469, %v838
    %v840 = vpop.f32.mrb[0].mxu0
    %v841 = vadd.f32 %v471, %v840
    %842 = vmatprep.mubr.f32.mxu0 0.0
    %843 = vmatmul.mubr.f32.gmra.mrb[0].mxu0 %v716
    %v844 = vpop.f32.mrb[0].mxu0
    %v845 = vadd.f32 %v475, %v844
    %v846 = vpop.f32.mrb[0].mxu0
    %v847 = vadd.f32 %v477, %v846
    %848 = vmatprep.mubr.f32.mxu0 0.0
    %849 = vmatmul.mubr.f32.gmra.mrb[0].mxu0 %v719
    %v850 = vpop.f32.mrb[0].mxu0
    %v851 = vadd.f32 %v481, %v850
    %v852 = vpop.f32.mrb[0].mxu0
    %v853 = vadd.f32 %v483, %v852
    %854 = vmatprep.mubr.f32.mxu0 0.0
    %855 = vmatmul.mubr.f32.gmra.mrb[0].mxu0 %v722
    %v856 = vpop.f32.mrb[0].mxu0
    %v857 = vadd.f32 %v487, %v856
    %v858 = vpop.f32.mrb[0].mxu0
    %v859 = vadd.f32 %v489, %v858
    %860 = vmatprep.mubr.f32.mxu0 0.0
    %861 = vmatmul.mubr.f32.gmra.mrb[0].mxu0 %v725
    %v862 = vpop.f32.mrb[0].mxu0
    %v863 = vadd.f32 %v493, %v862
    %v864 = vpop.f32.mrb[0].mxu0
    %v865 = vadd.f32 %v495, %v864
    %866 = vmatprep.mubr.f32.mxu0 0.0
    %867 = vmatmul.mubr.f32.gmra.mrb[0].mxu0 %v728
    %v868 = vpop.f32.mrb[0].mxu0
    %v869 = vadd.f32 %v499, %v868
    %v870 = vpop.f32.mrb[0].mxu0
    %v871 = vadd.f32 %v501, %v870
    %872 = vmatprep.mubr.f32.mxu0 0.0
    %873 = vmatmul.mubr.f32.gmra.mrb[0].mxu0 %v731
    %v874 = vpop.f32.mrb[0].mxu0
    %v875 = vadd.f32 %v505, %v874
    %v876 = vpop.f32.mrb[0].mxu0
    %v877 = vadd.f32 %v507, %v876
    %878 = vmatprep.mubr.f32.mxu0 0.0
    %879 = vmatmul.mubr.f32.gmra.mrb[0].mxu0 %v734
    %v880 = vpop.f32.mrb[0].mxu0
    %v881 = vadd.f32 %v511, %v880
    %v882 = vpop.f32.mrb[0].mxu0
    %v883 = vadd.f32 %v513, %v882
    %884 = vmatprep.mubr.f32.mxu0 0.0
    %885 = vmatmul.mubr.f32.gmra.mrb[0].mxu0 %v737
    %v886 = vpop.f32.mrb[0].mxu0
    %v887 = vadd.f32 %v517, %v886
    %v888 = vpop.f32.mrb[0].mxu0
    %v889 = vadd.f32 %v519, %v888
    %890 = vmatprep.mubr.f32.mxu0 0.0
    %891 = vmatmul.mubr.f32.gmra.mrb[0].mxu0 %v740
    %v892 = vpop.f32.mrb[0].mxu0
    %v893 = vadd.f32 %v523, %v892
    %v894 = vpop.f32.mrb[0].mxu0
    %v895 = vadd.f32 %v525, %v894
    %896 = vmatprep.mubr.f32.mxu0 0.0
    %897 = vmatmul.mubr.f32.gmra.mrb[0].mxu0 %v743
    %v898 = vpop.f32.mrb[0].mxu0
    %v899 = vadd.f32 %v529, %v898
    %v900 = vpop.f32.mrb[0].mxu0
    %v901 = vadd.f32 %v531, %v900
    %902 = vmatprep.mubr.f32.mxu0 0.0
    %903 = vmatmul.mubr.f32.gmra.mrb[0].mxu0 %v746
    %v904 = vpop.f32.mrb[0].mxu0
    %v905 = vadd.f32 %v535, %v904
    %v906 = vpop.f32.mrb[0].mxu0
    %v907 = vadd.f32 %v537, %v906
    %908 = vdwg.mxu0
    %909 = vmatprep.subr.mxu0 %v187
    %910 = vmatpush1.msra.mxu0 %v186
    %911 = vmatprep.subr.mxu0 %v191
    %912 = vmatpush1.msra.mxu0 %v190
    %913 = vmatprep.subr.mxu0 %v195
    %914 = vmatpush1.msra.mxu0 %v194
    %915 = vmatprep.subr.mxu0 %v199
    %916 = vmatpush1.msra.mxu0 %v198
    %917 = vmatprep.subr.mxu0 %v203
    %918 = vmatpush1.msra.mxu0 %v202
    %919 = vmatprep.subr.mxu0 %v207
    %920 = vmatpush1.msra.mxu0 %v206
    %921 = vmatprep.subr.mxu0 %v211
    %922 = vmatpush1.msra.mxu0 %v210
    %923 = vmatprep.subr.mxu0 %v215
    %924 = vmatpush1.msra.mxu0 %v214
    %925 = vmatprep.subr.mxu0 0.0
    %926 = vmatpush1.msra.mxu0 0.0
    %927 = vmatprep.subr.mxu0 0.0
    %928 = vmatpush1.msra.mxu0 0.0
    %929 = vmatprep.subr.mxu0 0.0
    %930 = vmatpush1.msra.mxu0 0.0
    %931 = vmatprep.subr.mxu0 0.0
    %932 = vmatpush1.msra.mxu0 0.0
    %933 = vmatprep.subr.mxu0 0.0
    %934 = vmatpush1.msra.mxu0 0.0
    %935 = vmatprep.subr.mxu0 0.0
    %936 = vmatpush1.msra.mxu0 0.0
    %937 = vmatprep.subr.mxu0 0.0
    %938 = vmatpush1.msra.mxu0 0.0
    %939 = vmatprep.subr.mxu0 0.0
    %940 = vmatpush1.msra.mxu0 0.0
    %941 = vmatprep.subr.mxu0 0.0
    %942 = vmatpush1.msra.mxu0 0.0
    %943 = vmatprep.subr.mxu0 0.0
    %944 = vmatpush1.msra.mxu0 0.0
    %945 = vmatprep.subr.mxu0 0.0
    %946 = vmatpush1.msra.mxu0 0.0
    %947 = vmatprep.subr.mxu0 0.0
    %948 = vmatpush1.msra.mxu0 0.0
    %949 = vmatprep.subr.mxu0 0.0
    %950 = vmatpush1.msra.mxu0 0.0
    %951 = vmatprep.subr.mxu0 0.0
    %952 = vmatpush1.msra.mxu0 0.0
    %953 = vmatprep.subr.mxu0 0.0
    %954 = vmatpush1.msra.mxu0 0.0
    %955 = vmatprep.subr.mxu0 0.0
    %956 = vmatpush1.msra.mxu0 0.0
    %957 = vmatprep.subr.mxu0 0.0
    %958 = vmatpush1.msra.mxu0 0.0
    %959 = vmatprep.subr.mxu0 0.0
    %960 = vmatpush1.msra.mxu0 0.0
    %961 = vmatprep.subr.mxu0 0.0
    %962 = vmatpush1.msra.mxu0 0.0
    %963 = vmatprep.subr.mxu0 0.0
    %964 = vmatpush1.msra.mxu0 0.0
    %965 = vmatprep.subr.mxu0 0.0
    %966 = vmatpush1.msra.mxu0 0.0
    %967 = vmatprep.subr.mxu0 0.0
    %968 = vmatpush1.msra.mxu0 0.0
    %969 = vmatprep.subr.mxu0 0.0
    %970 = vmatpush1.msra.mxu0 0.0
    %971 = vmatprep.subr.mxu0 0.0
    %972 = vmatpush1.msra.mxu0 0.0
    %973 = vmatprep.mubr.f32.mxu0 0.0
    %974 = vmatmul.mubr.f32.gmra.mrb[0].mxu0 %v701
    %v975 = vpop.f32.mrb[0].mxu0
    %v976 = vadd.f32 %v606, %v975
    %v977 = vpop.f32.mrb[0].mxu0
    %v978 = vadd.f32 %v608, %v977
    %979 = vmatprep.mubr.f32.mxu0 0.0
    %980 = vmatmul.mubr.f32.gmra.mrb[0].mxu0 %v704
    %v981 = vpop.f32.mrb[0].mxu0
    %v982 = vadd.f32 %v612, %v981
    %v983 = vpop.f32.mrb[0].mxu0
    %v984 = vadd.f32 %v614, %v983
    %985 = vmatprep.mubr.f32.mxu0 0.0
    %986 = vmatmul.mubr.f32.gmra.mrb[0].mxu0 %v707
    %v987 = vpop.f32.mrb[0].mxu0
    %v988 = vadd.f32 %v618, %v987
    %v989 = vpop.f32.mrb[0].mxu0
    %v990 = vadd.f32 %v620, %v989
    %991 = vmatprep.mubr.f32.mxu0 0.0
    %992 = vmatmul.mubr.f32.gmra.mrb[0].mxu0 %v710
    %v993 = vpop.f32.mrb[0].mxu0
    %v994 = vadd.f32 %v624, %v993
    %v995 = vpop.f32.mrb[0].mxu0
    %v996 = vadd.f32 %v626, %v995
    %997 = vmatprep.mubr.f32.mxu0 0.0
    %998 = vmatmul.mubr.f32.gmra.mrb[0].mxu0 %v713
    %v999 = vpop.f32.mrb[0].mxu0
    %v1000 = vadd.f32 %v630, %v999
    %v1001 = vpop.f32.mrb[0].mxu0
    %v1002 = vadd.f32 %v632, %v1001
    %1003 = vmatprep.mubr.f32.mxu0 0.0
    %1004 = vmatmul.mubr.f32.gmra.mrb[0].mxu0 %v716
    %v1005 = vpop.f32.mrb[0].mxu0
    %v1006 = vadd.f32 %v636, %v1005
    %v1007 = vpop.f32.mrb[0].mxu0
    %v1008 = vadd.f32 %v638, %v1007
    %1009 = vmatprep.mubr.f32.mxu0 0.0
    %1010 = vmatmul.mubr.f32.gmra.mrb[0].mxu0 %v719
    %v1011 = vpop.f32.mrb[0].mxu0
    %v1012 = vadd.f32 %v642, %v1011
    %v1013 = vpop.f32.mrb[0].mxu0
    %v1014 = vadd.f32 %v644, %v1013
    %1015 = vmatprep.mubr.f32.mxu0 0.0
    %1016 = vmatmul.mubr.f32.gmra.mrb[0].mxu0 %v722
    %v1017 = vpop.f32.mrb[0].mxu0
    %v1018 = vadd.f32 %v648, %v1017
    %v1019 = vpop.f32.mrb[0].mxu0
    %v1020 = vadd.f32 %v650, %v1019
    %1021 = vmatprep.mubr.f32.mxu0 0.0
    %1022 = vmatmul.mubr.f32.gmra.mrb[0].mxu0 %v725
    %v1023 = vpop.f32.mrb[0].mxu0
    %v1024 = vadd.f32 %v654, %v1023
    %v1025 = vpop.f32.mrb[0].mxu0
    %v1026 = vadd.f32 %v656, %v1025
    %1027 = vmatprep.mubr.f32.mxu0 0.0
    %1028 = vmatmul.mubr.f32.gmra.mrb[0].mxu0 %v728
    %v1029 = vpop.f32.mrb[0].mxu0
    %v1030 = vadd.f32 %v660, %v1029
    %v1031 = vpop.f32.mrb[0].mxu0
    %v1032 = vadd.f32 %v662, %v1031
    %1033 = vmatprep.mubr.f32.mxu0 0.0
    %1034 = vmatmul.mubr.f32.gmra.mrb[0].mxu0 %v731
    %v1035 = vpop.f32.mrb[0].mxu0
    %v1036 = vadd.f32 %v666, %v1035
    %v1037 = vpop.f32.mrb[0].mxu0
    %v1038 = vadd.f32 %v668, %v1037
    %1039 = vmatprep.mubr.f32.mxu0 0.0
    %1040 = vmatmul.mubr.f32.gmra.mrb[0].mxu0 %v734
    %v1041 = vpop.f32.mrb[0].mxu0
    %v1042 = vadd.f32 %v672, %v1041
    %v1043 = vpop.f32.mrb[0].mxu0
    %v1044 = vadd.f32 %v674, %v1043
    %1045 = vmatprep.mubr.f32.mxu0 0.0
    %1046 = vmatmul.mubr.f32.gmra.mrb[0].mxu0 %v737
    %v1047 = vpop.f32.mrb[0].mxu0
    %v1048 = vadd.f32 %v678, %v1047
    %v1049 = vpop.f32.mrb[0].mxu0
    %v1050 = vadd.f32 %v680, %v1049
    %1051 = vmatprep.mubr.f32.mxu0 0.0
    %1052 = vmatmul.mubr.f32.gmra.mrb[0].mxu0 %v740
    %v1053 = vpop.f32.mrb[0].mxu0
    %v1054 = vadd.f32 %v684, %v1053
    %v1055 = vpop.f32.mrb[0].mxu0
    %v1056 = vadd.f32 %v686, %v1055
    %1057 = vmatprep.mubr.f32.mxu0 0.0
    %1058 = vmatmul.mubr.f32.gmra.mrb[0].mxu0 %v743
    %v1059 = vpop.f32.mrb[0].mxu0
    %v1060 = vadd.f32 %v690, %v1059
    %v1061 = vpop.f32.mrb[0].mxu0
    %v1062 = vadd.f32 %v692, %v1061
    %1063 = vmatprep.mubr.f32.mxu0 0.0
    %1064 = vmatmul.mubr.f32.gmra.mrb[0].mxu0 %v746
    %v1065 = vpop.f32.mrb[0].mxu0
    %v1066 = vadd.f32 %v696, %v1065
    %v1067 = vpop.f32.mrb[0].mxu0
    %v1068 = vadd.f32 %v698, %v1067
    %1069 = vdwg.mxu0
    %1070 = vset.pattern.permute.xlu0 2
    %1071 = vperm.xlu0 %1070, %v71
    %v1072 = vpop.permute.xlu0 %1071
    %1074 = vset.pattern.permute.xlu0 2
    %1075 = vperm.xlu0 %1074, %v72
    %v1076 = vpop.permute.xlu0 %1075
    %1078 = vset.pattern.permute.xlu0 2
    %1079 = vperm.xlu0 %1078, %v73
    %v1080 = vpop.permute.xlu0 %1079
    %1082 = vset.pattern.permute.xlu0 2
    %1083 = vperm.xlu0 %1082, %v74
    %v1084 = vpop.permute.xlu0 %1083
    %1086 = vset.pattern.permute.xlu0 2
    %1087 = vperm.xlu0 %1086, %v75
    %v1088 = vpop.permute.xlu0 %1087
    %1090 = vset.pattern.permute.xlu0 2
    %1091 = vperm.xlu0 %1090, %v76
    %v1092 = vpop.permute.xlu0 %1091
    %1094 = vset.pattern.permute.xlu0 2
    %1095 = vperm.xlu0 %1094, %v77
    %v1096 = vpop.permute.xlu0 %1095
    %1098 = vset.pattern.permute.xlu0 2
    %1099 = vperm.xlu0 %1098, %v78
    %v1100 = vpop.permute.xlu0 %1099
    %1102 = vset.pattern.permute.xlu0 2
    %1103 = vperm.xlu0 %1102, %v79
    %v1104 = vpop.permute.xlu0 %1103
    %1106 = vset.pattern.permute.xlu0 2
    %1107 = vperm.xlu0 %1106, %v80
    %v1108 = vpop.permute.xlu0 %1107
    %1110 = vset.pattern.permute.xlu0 2
    %1111 = vperm.xlu0 %1110, %v81
    %v1112 = vpop.permute.xlu0 %1111
    %1114 = vset.pattern.permute.xlu0 2
    %1115 = vperm.xlu0 %1114, %v82
    %v1116 = vpop.permute.xlu0 %1115
    %1118 = vset.pattern.permute.xlu0 2
    %1119 = vperm.xlu0 %1118, %v83
    %v1120 = vpop.permute.xlu0 %1119
    %1122 = vset.pattern.permute.xlu0 2
    %1123 = vperm.xlu0 %1122, %v84
    %v1124 = vpop.permute.xlu0 %1123
    %1126 = vset.pattern.permute.xlu0 2
    %1127 = vperm.xlu0 %1126, %v85
    %v1128 = vpop.permute.xlu0 %1127
    %1130 = vset.pattern.permute.xlu0 2
    %1131 = vperm.xlu0 %1130, %v86
    %v1132 = vpop.permute.xlu0 %1131
    %v1134 = vmul.f32 %v1072, %v87
    %v1135 = vmul.f32 %v1076, %v87
    %v1136 = vmul.f32 %v1080, %v87
    %v1137 = vmul.f32 %v1084, %v87
    %v1138 = vmul.f32 %v1088, %v87
    %v1139 = vmul.f32 %v1092, %v87
    %v1140 = vmul.f32 %v1096, %v87
    %v1141 = vmul.f32 %v1100, %v87
    %v1142 = vmul.f32 %v1104, %v87
    %v1143 = vmul.f32 %v1108, %v87
    %v1144 = vmul.f32 %v1112, %v87
    %v1145 = vmul.f32 %v1116, %v87
    %v1146 = vmul.f32 %v1120, %v87
    %v1147 = vmul.f32 %v1124, %v87
    %v1148 = vmul.f32 %v1128, %v87
    %v1149 = vmul.f32 %v1132, %v87
    %s1150 = scalar_lea.vmem [#allocation3], 512
    %v1151 = vld [vmem:[%s1150] sm:$0xff]
    %v1152 = vld [vmem:[%s1150 + $0x8] sm:$0xff]
    %v1153 = vld [vmem:[%s1150 + $0x10] sm:$0xff]
    %v1154 = vld [vmem:[%s1150 + $0x18] sm:$0xff]
    %v1155 = vld [vmem:[%s1150 + $0x20] sm:$0xff]
    %v1156 = vld [vmem:[%s1150 + $0x28] sm:$0xff]
    %v1157 = vld [vmem:[%s1150 + $0x30] sm:$0xff]
    %v1158 = vld [vmem:[%s1150 + $0x38] sm:$0xff]
    %v1159 = vld [vmem:[%s1150 + $0x40] sm:$0xff]
    %v1160 = vld [vmem:[%s1150 + $0x48] sm:$0xff]
    %v1161 = vld [vmem:[%s1150 + $0x50] sm:$0xff]
    %v1162 = vld [vmem:[%s1150 + $0x58] sm:$0xff]
    %v1163 = vld [vmem:[%s1150 + $0x60] sm:$0xff]
    %v1164 = vld [vmem:[%s1150 + $0x68] sm:$0xff]
    %v1165 = vld [vmem:[%s1150 + $0x70] sm:$0xff]
    %v1166 = vld [vmem:[%s1150 + $0x78] sm:$0xff]
    %v1167 = vld [vmem:[%s1150 + $0x80] sm:$0xff]
    %v1168 = vld [vmem:[%s1150 + $0x88] sm:$0xff]
    %v1169 = vld [vmem:[%s1150 + $0x90] sm:$0xff]
    %v1170 = vld [vmem:[%s1150 + $0x98] sm:$0xff]
    %v1171 = vld [vmem:[%s1150 + $0xa0] sm:$0xff]
    %v1172 = vld [vmem:[%s1150 + $0xa8] sm:$0xff]
    %v1173 = vld [vmem:[%s1150 + $0xb0] sm:$0xff]
    %v1174 = vld [vmem:[%s1150 + $0xb8] sm:$0xff]
    %v1175 = vld [vmem:[%s1150 + $0xc0] sm:$0xff]
    %v1176 = vld [vmem:[%s1150 + $0xc8] sm:$0xff]
    %v1177 = vld [vmem:[%s1150 + $0xd0] sm:$0xff]
    %v1178 = vld [vmem:[%s1150 + $0xd8] sm:$0xff]
    %v1179 = vld [vmem:[%s1150 + $0xe0] sm:$0xff]
    %v1180 = vld [vmem:[%s1150 + $0xe8] sm:$0xff]
    %v1181 = vld [vmem:[%s1150 + $0xf0] sm:$0xff]
    %v1182 = vld [vmem:[%s1150 + $0xf8] sm:$0xff]
    %v1184 = vsel %vm329, %v1134, 0
    %v1187 = vsel %vm329, %v1135, 0
    %v1190 = vsel %vm329, %v1136, 0
    %v1193 = vsel %vm329, %v1137, 0
    %v1196 = vsel %vm329, %v1138, 0
    %v1199 = vsel %vm329, %v1139, 0
    %v1202 = vsel %vm329, %v1140, 0
    %v1205 = vsel %vm329, %v1141, 0
    %v1208 = vsel %vm329, %v1142, 0
    %v1211 = vsel %vm329, %v1143, 0
    %v1214 = vsel %vm329, %v1144, 0
    %v1217 = vsel %vm329, %v1145, 0
    %v1220 = vsel %vm329, %v1146, 0
    %v1223 = vsel %vm329, %v1147, 0
    %v1226 = vsel %vm329, %v1148, 0
    %v1229 = vsel %vm329, %v1149, 0
    %1231 = vmatprep.subr.mxu0 %v1152
    %1232 = vmatpush1.msra.mxu0 %v1151
    %1233 = vmatprep.subr.mxu0 %v1156
    %1234 = vmatpush1.msra.mxu0 %v1155
    %1235 = vmatprep.subr.mxu0 %v1160
    %1236 = vmatpush1.msra.mxu0 %v1159
    %1237 = vmatprep.subr.mxu0 %v1164
    %1238 = vmatpush1.msra.mxu0 %v1163
    %1239 = vmatprep.subr.mxu0 %v1168
    %1240 = vmatpush1.msra.mxu0 %v1167
    %1241 = vmatprep.subr.mxu0 %v1172
    %1242 = vmatpush1.msra.mxu0 %v1171
    %1243 = vmatprep.subr.mxu0 %v1176
    %1244 = vmatpush1.msra.mxu0 %v1175
    %1245 = vmatprep.subr.mxu0 %v1180
    %1246 = vmatpush1.msra.mxu0 %v1179
    %1247 = vmatprep.subr.mxu0 0.0
    %1248 = vmatpush1.msra.mxu0 0.0
    %1249 = vmatprep.subr.mxu0 0.0
    %1250 = vmatpush1.msra.mxu0 0.0
    %1251 = vmatprep.subr.mxu0 0.0
    %1252 = vmatpush1.msra.mxu0 0.0
    %1253 = vmatprep.subr.mxu0 0.0
    %1254 = vmatpush1.msra.mxu0 0.0
    %1255 = vmatprep.subr.mxu0 0.0
    %1256 = vmatpush1.msra.mxu0 0.0
    %1257 = vmatprep.subr.mxu0 0.0
    %1258 = vmatpush1.msra.mxu0 0.0
    %1259 = vmatprep.subr.mxu0 0.0
    %1260 = vmatpush1.msra.mxu0 0.0
    %1261 = vmatprep.subr.mxu0 0.0
    %1262 = vmatpush1.msra.mxu0 0.0
    %1263 = vmatprep.subr.mxu0 0.0
    %1264 = vmatpush1.msra.mxu0 0.0
    %1265 = vmatprep.subr.mxu0 0.0
    %1266 = vmatpush1.msra.mxu0 0.0
    %1267 = vmatprep.subr.mxu0 0.0
    %1268 = vmatpush1.msra.mxu0 0.0
    %1269 = vmatprep.subr.mxu0 0.0
    %1270 = vmatpush1.msra.mxu0 0.0
    %1271 = vmatprep.subr.mxu0 0.0
    %1272 = vmatpush1.msra.mxu0 0.0
    %1273 = vmatprep.subr.mxu0 0.0
    %1274 = vmatpush1.msra.mxu0 0.0
    %1275 = vmatprep.subr.mxu0 0.0
    %1276 = vmatpush1.msra.mxu0 0.0
    %1277 = vmatprep.subr.mxu0 0.0
    %1278 = vmatpush1.msra.mxu0 0.0
    %1279 = vmatprep.subr.mxu0 0.0
    %1280 = vmatpush1.msra.mxu0 0.0
    %1281 = vmatprep.subr.mxu0 0.0
    %1282 = vmatpush1.msra.mxu0 0.0
    %1283 = vmatprep.subr.mxu0 0.0
    %1284 = vmatpush1.msra.mxu0 0.0
    %1285 = vmatprep.subr.mxu0 0.0
    %1286 = vmatpush1.msra.mxu0 0.0
    %1287 = vmatprep.subr.mxu0 0.0
    %1288 = vmatpush1.msra.mxu0 0.0
    %1289 = vmatprep.subr.mxu0 0.0
    %1290 = vmatpush1.msra.mxu0 0.0
    %1291 = vmatprep.subr.mxu0 0.0
    %1292 = vmatpush1.msra.mxu0 0.0
    %1293 = vmatprep.subr.mxu0 0.0
    %1294 = vmatpush1.msra.mxu0 0.0
    %1295 = vmatprep.mubr.f32.mxu0 0.0
    %1296 = vmatmul.mubr.f32.gmra.mrb[0].mxu0 %v1184
    %v1297 = vpop.f32.mrb[0].mxu0
    %v1298 = vadd.f32 0.0, %v1297
    %v1299 = vpop.f32.mrb[0].mxu0
    %v1300 = vadd.f32 0.0, %v1299
    %1301 = vmatprep.mubr.f32.mxu0 0.0
    %1302 = vmatmul.mubr.f32.gmra.mrb[0].mxu0 %v1187
    %v1303 = vpop.f32.mrb[0].mxu0
    %v1304 = vadd.f32 0.0, %v1303
    %v1305 = vpop.f32.mrb[0].mxu0
    %v1306 = vadd.f32 0.0, %v1305
    %1307 = vmatprep.mubr.f32.mxu0 0.0
    %1308 = vmatmul.mubr.f32.gmra.mrb[0].mxu0 %v1190
    %v1309 = vpop.f32.mrb[0].mxu0
    %v1310 = vadd.f32 0.0, %v1309
    %v1311 = vpop.f32.mrb[0].mxu0
    %v1312 = vadd.f32 0.0, %v1311
    %1313 = vmatprep.mubr.f32.mxu0 0.0
    %1314 = vmatmul.mubr.f32.gmra.mrb[0].mxu0 %v1193
    %v1315 = vpop.f32.mrb[0].mxu0
    %v1316 = vadd.f32 0.0, %v1315
    %v1317 = vpop.f32.mrb[0].mxu0
    %v1318 = vadd.f32 0.0, %v1317
    %1319 = vmatprep.mubr.f32.mxu0 0.0
    %1320 = vmatmul.mubr.f32.gmra.mrb[0].mxu0 %v1196
    %v1321 = vpop.f32.mrb[0].mxu0
    %v1322 = vadd.f32 0.0, %v1321
    %v1323 = vpop.f32.mrb[0].mxu0
    %v1324 = vadd.f32 0.0, %v1323
    %1325 = vmatprep.mubr.f32.mxu0 0.0
    %1326 = vmatmul.mubr.f32.gmra.mrb[0].mxu0 %v1199
    %v1327 = vpop.f32.mrb[0].mxu0
    %v1328 = vadd.f32 0.0, %v1327
    %v1329 = vpop.f32.mrb[0].mxu0
    %v1330 = vadd.f32 0.0, %v1329
    %1331 = vmatprep.mubr.f32.mxu0 0.0
    %1332 = vmatmul.mubr.f32.gmra.mrb[0].mxu0 %v1202
    %v1333 = vpop.f32.mrb[0].mxu0
    %v1334 = vadd.f32 0.0, %v1333
    %v1335 = vpop.f32.mrb[0].mxu0
    %v1336 = vadd.f32 0.0, %v1335
    %1337 = vmatprep.mubr.f32.mxu0 0.0
    %1338 = vmatmul.mubr.f32.gmra.mrb[0].mxu0 %v1205
    %v1339 = vpop.f32.mrb[0].mxu0
    %v1340 = vadd.f32 0.0, %v1339
    %v1341 = vpop.f32.mrb[0].mxu0
    %v1342 = vadd.f32 0.0, %v1341
    %1343 = vmatprep.mubr.f32.mxu0 0.0
    %1344 = vmatmul.mubr.f32.gmra.mrb[0].mxu0 %v1208
    %v1345 = vpop.f32.mrb[0].mxu0
    %v1346 = vadd.f32 0.0, %v1345
    %v1347 = vpop.f32.mrb[0].mxu0
    %v1348 = vadd.f32 0.0, %v1347
    %1349 = vmatprep.mubr.f32.mxu0 0.0
    %1350 = vmatmul.mubr.f32.gmra.mrb[0].mxu0 %v1211
    %v1351 = vpop.f32.mrb[0].mxu0
    %v1352 = vadd.f32 0.0, %v1351
    %v1353 = vpop.f32.mrb[0].mxu0
    %v1354 = vadd.f32 0.0, %v1353
    %1355 = vmatprep.mubr.f32.mxu0 0.0
    %1356 = vmatmul.mubr.f32.gmra.mrb[0].mxu0 %v1214
    %v1357 = vpop.f32.mrb[0].mxu0
    %v1358 = vadd.f32 0.0, %v1357
    %v1359 = vpop.f32.mrb[0].mxu0
    %v1360 = vadd.f32 0.0, %v1359
    %1361 = vmatprep.mubr.f32.mxu0 0.0
    %1362 = vmatmul.mubr.f32.gmra.mrb[0].mxu0 %v1217
    %v1363 = vpop.f32.mrb[0].mxu0
    %v1364 = vadd.f32 0.0, %v1363
    %v1365 = vpop.f32.mrb[0].mxu0
    %v1366 = vadd.f32 0.0, %v1365
    %1367 = vmatprep.mubr.f32.mxu0 0.0
    %1368 = vmatmul.mubr.f32.gmra.mrb[0].mxu0 %v1220
    %v1369 = vpop.f32.mrb[0].mxu0
    %v1370 = vadd.f32 0.0, %v1369
    %v1371 = vpop.f32.mrb[0].mxu0
    %v1372 = vadd.f32 0.0, %v1371
    %1373 = vmatprep.mubr.f32.mxu0 0.0
    %1374 = vmatmul.mubr.f32.gmra.mrb[0].mxu0 %v1223
    %v1375 = vpop.f32.mrb[0].mxu0
    %v1376 = vadd.f32 0.0, %v1375
    %v1377 = vpop.f32.mrb[0].mxu0
    %v1378 = vadd.f32 0.0, %v1377
    %1379 = vmatprep.mubr.f32.mxu0 0.0
    %1380 = vmatmul.mubr.f32.gmra.mrb[0].mxu0 %v1226
    %v1381 = vpop.f32.mrb[0].mxu0
    %v1382 = vadd.f32 0.0, %v1381
    %v1383 = vpop.f32.mrb[0].mxu0
    %v1384 = vadd.f32 0.0, %v1383
    %1385 = vmatprep.mubr.f32.mxu0 0.0
    %1386 = vmatmul.mubr.f32.gmra.mrb[0].mxu0 %v1229
    %v1387 = vpop.f32.mrb[0].mxu0
    %v1388 = vadd.f32 0.0, %v1387
    %v1389 = vpop.f32.mrb[0].mxu0
    %v1390 = vadd.f32 0.0, %v1389
    %1391 = vdwg.mxu0
    %1392 = vmatprep.subr.mxu0 %v1154
    %1393 = vmatpush1.msra.mxu0 %v1153
    %1394 = vmatprep.subr.mxu0 %v1158
    %1395 = vmatpush1.msra.mxu0 %v1157
    %1396 = vmatprep.subr.mxu0 %v1162
    %1397 = vmatpush1.msra.mxu0 %v1161
    %1398 = vmatprep.subr.mxu0 %v1166
    %1399 = vmatpush1.msra.mxu0 %v1165
    %1400 = vmatprep.subr.mxu0 %v1170
    %1401 = vmatpush1.msra.mxu0 %v1169
    %1402 = vmatprep.subr.mxu0 %v1174
    %1403 = vmatpush1.msra.mxu0 %v1173
    %1404 = vmatprep.subr.mxu0 %v1178
    %1405 = vmatpush1.msra.mxu0 %v1177
    %1406 = vmatprep.subr.mxu0 %v1182
    %1407 = vmatpush1.msra.mxu0 %v1181
    %1408 = vmatprep.subr.mxu0 0.0
    %1409 = vmatpush1.msra.mxu0 0.0
    %1410 = vmatprep.subr.mxu0 0.0
    %1411 = vmatpush1.msra.mxu0 0.0
    %1412 = vmatprep.subr.mxu0 0.0
    %1413 = vmatpush1.msra.mxu0 0.0
    %1414 = vmatprep.subr.mxu0 0.0
    %1415 = vmatpush1.msra.mxu0 0.0
    %1416 = vmatprep.subr.mxu0 0.0
    %1417 = vmatpush1.msra.mxu0 0.0
    %1418 = vmatprep.subr.mxu0 0.0
    %1419 = vmatpush1.msra.mxu0 0.0
    %1420 = vmatprep.subr.mxu0 0.0
    %1421 = vmatpush1.msra.mxu0 0.0
    %1422 = vmatprep.subr.mxu0 0.0
    %1423 = vmatpush1.msra.mxu0 0.0
    %1424 = vmatprep.subr.mxu0 0.0
    %1425 = vmatpush1.msra.mxu0 0.0
    %1426 = vmatprep.subr.mxu0 0.0
    %1427 = vmatpush1.msra.mxu0 0.0
    %1428 = vmatprep.subr.mxu0 0.0
    %1429 = vmatpush1.msra.mxu0 0.0
    %1430 = vmatprep.subr.mxu0 0.0
    %1431 = vmatpush1.msra.mxu0 0.0
    %1432 = vmatprep.subr.mxu0 0.0
    %1433 = vmatpush1.msra.mxu0 0.0
    %1434 = vmatprep.subr.mxu0 0.0
    %1435 = vmatpush1.msra.mxu0 0.0
    %1436 = vmatprep.subr.mxu0 0.0
    %1437 = vmatpush1.msra.mxu0 0.0
    %1438 = vmatprep.subr.mxu0 0.0
    %1439 = vmatpush1.msra.mxu0 0.0
    %1440 = vmatprep.subr.mxu0 0.0
    %1441 = vmatpush1.msra.mxu0 0.0
    %1442 = vmatprep.subr.mxu0 0.0
    %1443 = vmatpush1.msra.mxu0 0.0
    %1444 = vmatprep.subr.mxu0 0.0
    %1445 = vmatpush1.msra.mxu0 0.0
    %1446 = vmatprep.subr.mxu0 0.0
    %1447 = vmatpush1.msra.mxu0 0.0
    %1448 = vmatprep.subr.mxu0 0.0
    %1449 = vmatpush1.msra.mxu0 0.0
    %1450 = vmatprep.subr.mxu0 0.0
    %1451 = vmatpush1.msra.mxu0 0.0
    %1452 = vmatprep.subr.mxu0 0.0
    %1453 = vmatpush1.msra.mxu0 0.0
    %1454 = vmatprep.subr.mxu0 0.0
    %1455 = vmatpush1.msra.mxu0 0.0
    %1456 = vmatprep.mubr.f32.mxu0 0.0
    %1457 = vmatmul.mubr.f32.gmra.mrb[0].mxu0 %v1184
    %v1458 = vpop.f32.mrb[0].mxu0
    %v1459 = vadd.f32 0.0, %v1458
    %v1460 = vpop.f32.mrb[0].mxu0
    %v1461 = vadd.f32 0.0, %v1460
    %1462 = vmatprep.mubr.f32.mxu0 0.0
    %1463 = vmatmul.mubr.f32.gmra.mrb[0].mxu0 %v1187
    %v1464 = vpop.f32.mrb[0].mxu0
    %v1465 = vadd.f32 0.0, %v1464
    %v1466 = vpop.f32.mrb[0].mxu0
    %v1467 = vadd.f32 0.0, %v1466
    %1468 = vmatprep.mubr.f32.mxu0 0.0
    %1469 = vmatmul.mubr.f32.gmra.mrb[0].mxu0 %v1190
    %v1470 = vpop.f32.mrb[0].mxu0
    %v1471 = vadd.f32 0.0, %v1470
    %v1472 = vpop.f32.mrb[0].mxu0
    %v1473 = vadd.f32 0.0, %v1472
    %1474 = vmatprep.mubr.f32.mxu0 0.0
    %1475 = vmatmul.mubr.f32.gmra.mrb[0].mxu0 %v1193
    %v1476 = vpop.f32.mrb[0].mxu0
    %v1477 = vadd.f32 0.0, %v1476
    %v1478 = vpop.f32.mrb[0].mxu0
    %v1479 = vadd.f32 0.0, %v1478
    %1480 = vmatprep.mubr.f32.mxu0 0.0
    %1481 = vmatmul.mubr.f32.gmra.mrb[0].mxu0 %v1196
    %v1482 = vpop.f32.mrb[0].mxu0
    %v1483 = vadd.f32 0.0, %v1482
    %v1484 = vpop.f32.mrb[0].mxu0
    %v1485 = vadd.f32 0.0, %v1484
    %1486 = vmatprep.mubr.f32.mxu0 0.0
    %1487 = vmatmul.mubr.f32.gmra.mrb[0].mxu0 %v1199
    %v1488 = vpop.f32.mrb[0].mxu0
    %v1489 = vadd.f32 0.0, %v1488
    %v1490 = vpop.f32.mrb[0].mxu0
    %v1491 = vadd.f32 0.0, %v1490
    %1492 = vmatprep.mubr.f32.mxu0 0.0
    %1493 = vmatmul.mubr.f32.gmra.mrb[0].mxu0 %v1202
    %v1494 = vpop.f32.mrb[0].mxu0
    %v1495 = vadd.f32 0.0, %v1494
    %v1496 = vpop.f32.mrb[0].mxu0
    %v1497 = vadd.f32 0.0, %v1496
    %1498 = vmatprep.mubr.f32.mxu0 0.0
    %1499 = vmatmul.mubr.f32.gmra.mrb[0].mxu0 %v1205
    %v1500 = vpop.f32.mrb[0].mxu0
    %v1501 = vadd.f32 0.0, %v1500
    %v1502 = vpop.f32.mrb[0].mxu0
    %v1503 = vadd.f32 0.0, %v1502
    %1504 = vmatprep.mubr.f32.mxu0 0.0
    %1505 = vmatmul.mubr.f32.gmra.mrb[0].mxu0 %v1208
    %v1506 = vpop.f32.mrb[0].mxu0
    %v1507 = vadd.f32 0.0, %v1506
    %v1508 = vpop.f32.mrb[0].mxu0
    %v1509 = vadd.f32 0.0, %v1508
    %1510 = vmatprep.mubr.f32.mxu0 0.0
    %1511 = vmatmul.mubr.f32.gmra.mrb[0].mxu0 %v1211
    %v1512 = vpop.f32.mrb[0].mxu0
    %v1513 = vadd.f32 0.0, %v1512
    %v1514 = vpop.f32.mrb[0].mxu0
    %v1515 = vadd.f32 0.0, %v1514
    %1516 = vmatprep.mubr.f32.mxu0 0.0
    %1517 = vmatmul.mubr.f32.gmra.mrb[0].mxu0 %v1214
    %v1518 = vpop.f32.mrb[0].mxu0
    %v1519 = vadd.f32 0.0, %v1518
    %v1520 = vpop.f32.mrb[0].mxu0
    %v1521 = vadd.f32 0.0, %v1520
    %1522 = vmatprep.mubr.f32.mxu0 0.0
    %1523 = vmatmul.mubr.f32.gmra.mrb[0].mxu0 %v1217
    %v1524 = vpop.f32.mrb[0].mxu0
    %v1525 = vadd.f32 0.0, %v1524
    %v1526 = vpop.f32.mrb[0].mxu0
    %v1527 = vadd.f32 0.0, %v1526
    %1528 = vmatprep.mubr.f32.mxu0 0.0
    %1529 = vmatmul.mubr.f32.gmra.mrb[0].mxu0 %v1220
    %v1530 = vpop.f32.mrb[0].mxu0
    %v1531 = vadd.f32 0.0, %v1530
    %v1532 = vpop.f32.mrb[0].mxu0
    %v1533 = vadd.f32 0.0, %v1532
    %1534 = vmatprep.mubr.f32.mxu0 0.0
    %1535 = vmatmul.mubr.f32.gmra.mrb[0].mxu0 %v1223
    %v1536 = vpop.f32.mrb[0].mxu0
    %v1537 = vadd.f32 0.0, %v1536
    %v1538 = vpop.f32.mrb[0].mxu0
    %v1539 = vadd.f32 0.0, %v1538
    %1540 = vmatprep.mubr.f32.mxu0 0.0
    %1541 = vmatmul.mubr.f32.gmra.mrb[0].mxu0 %v1226
    %v1542 = vpop.f32.mrb[0].mxu0
    %v1543 = vadd.f32 0.0, %v1542
    %v1544 = vpop.f32.mrb[0].mxu0
    %v1545 = vadd.f32 0.0, %v1544
    %1546 = vmatprep.mubr.f32.mxu0 0.0
    %1547 = vmatmul.mubr.f32.gmra.mrb[0].mxu0 %v1229
    %v1548 = vpop.f32.mrb[0].mxu0
    %v1549 = vadd.f32 0.0, %v1548
    %v1550 = vpop.f32.mrb[0].mxu0
    %v1551 = vadd.f32 0.0, %v1550
    %1552 = vdwg.mxu0
    %v1553 = vadd.f32 %v815, %v1298
    %v1554 = vadd.f32 %v817, %v1300
    %v1555 = vadd.f32 %v976, %v1459
    %v1556 = vadd.f32 %v978, %v1461
    %v1557 = vadd.f32 %v821, %v1304
    %v1558 = vadd.f32 %v823, %v1306
    %v1559 = vadd.f32 %v982, %v1465
    %v1560 = vadd.f32 %v984, %v1467
    %v1561 = vadd.f32 %v827, %v1310
    %v1562 = vadd.f32 %v829, %v1312
    %v1563 = vadd.f32 %v988, %v1471
    %v1564 = vadd.f32 %v990, %v1473
    %v1565 = vadd.f32 %v833, %v1316
    %v1566 = vadd.f32 %v835, %v1318
    %v1567 = vadd.f32 %v994, %v1477
    %v1568 = vadd.f32 %v996, %v1479
    %v1569 = vadd.f32 %v839, %v1322
    %v1570 = vadd.f32 %v841, %v1324
    %v1571 = vadd.f32 %v1000, %v1483
    %v1572 = vadd.f32 %v1002, %v1485
    %v1573 = vadd.f32 %v845, %v1328
    %v1574 = vadd.f32 %v847, %v1330
    %v1575 = vadd.f32 %v1006, %v1489
    %v1576 = vadd.f32 %v1008, %v1491
    %v1577 = vadd.f32 %v851, %v1334
    %v1578 = vadd.f32 %v853, %v1336
    %v1579 = vadd.f32 %v1012, %v1495
    %v1580 = vadd.f32 %v1014, %v1497
    %v1581 = vadd.f32 %v857, %v1340
    %v1582 = vadd.f32 %v859, %v1342
    %v1583 = vadd.f32 %v1018, %v1501
    %v1584 = vadd.f32 %v1020, %v1503
    %v1585 = vadd.f32 %v863, %v1346
    %v1586 = vadd.f32 %v865, %v1348
    %v1587 = vadd.f32 %v1024, %v1507
    %v1588 = vadd.f32 %v1026, %v1509
    %v1589 = vadd.f32 %v869, %v1352
    %v1590 = vadd.f32 %v871, %v1354
    %v1591 = vadd.f32 %v1030, %v1513
    %v1592 = vadd.f32 %v1032, %v1515
    %v1593 = vadd.f32 %v875, %v1358
    %v1594 = vadd.f32 %v877, %v1360
    %v1595 = vadd.f32 %v1036, %v1519
    %v1596 = vadd.f32 %v1038, %v1521
    %v1597 = vadd.f32 %v881, %v1364
    %v1598 = vadd.f32 %v883, %v1366
    %v1599 = vadd.f32 %v1042, %v1525
    %v1600 = vadd.f32 %v1044, %v1527
    %v1601 = vadd.f32 %v887, %v1370
    %v1602 = vadd.f32 %v889, %v1372
    %v1603 = vadd.f32 %v1048, %v1531
    %v1604 = vadd.f32 %v1050, %v1533
    %v1605 = vadd.f32 %v893, %v1376
    %v1606 = vadd.f32 %v895, %v1378
    %v1607 = vadd.f32 %v1054, %v1537
    %v1608 = vadd.f32 %v1056, %v1539
    %v1609 = vadd.f32 %v899, %v1382
    %v1610 = vadd.f32 %v901, %v1384
    %v1611 = vadd.f32 %v1060, %v1543
    %v1612 = vadd.f32 %v1062, %v1545
    %v1613 = vadd.f32 %v905, %v1388
    %v1614 = vadd.f32 %v907, %v1390
    %v1615 = vadd.f32 %v1066, %v1549
    %v1616 = vadd.f32 %v1068, %v1551
    %1617 = vset.pattern.permute.xlu0 3
    %1618 = vperm.xlu0 %1617, %v71
    %v1619 = vpop.permute.xlu0 %1618
    %1621 = vset.pattern.permute.xlu0 3
    %1622 = vperm.xlu0 %1621, %v72
    %v1623 = vpop.permute.xlu0 %1622
    %1625 = vset.pattern.permute.xlu0 3
    %1626 = vperm.xlu0 %1625, %v73
    %v1627 = vpop.permute.xlu0 %1626
    %1629 = vset.pattern.permute.xlu0 3
    %1630 = vperm.xlu0 %1629, %v74
    %v1631 = vpop.permute.xlu0 %1630
    %1633 = vset.pattern.permute.xlu0 3
    %1634 = vperm.xlu0 %1633, %v75
    %v1635 = vpop.permute.xlu0 %1634
    %1637 = vset.pattern.permute.xlu0 3
    %1638 = vperm.xlu0 %1637, %v76
    %v1639 = vpop.permute.xlu0 %1638
    %1641 = vset.pattern.permute.xlu0 3
    %1642 = vperm.xlu0 %1641, %v77
    %v1643 = vpop.permute.xlu0 %1642
    %1645 = vset.pattern.permute.xlu0 3
    %1646 = vperm.xlu0 %1645, %v78
    %v1647 = vpop.permute.xlu0 %1646
    %1649 = vset.pattern.permute.xlu0 3
    %1650 = vperm.xlu0 %1649, %v79
    %v1651 = vpop.permute.xlu0 %1650
    %1653 = vset.pattern.permute.xlu0 3
    %1654 = vperm.xlu0 %1653, %v80
    %v1655 = vpop.permute.xlu0 %1654
    %1657 = vset.pattern.permute.xlu0 3
    %1658 = vperm.xlu0 %1657, %v81
    %v1659 = vpop.permute.xlu0 %1658
    %1661 = vset.pattern.permute.xlu0 3
    %1662 = vperm.xlu0 %1661, %v82
    %v1663 = vpop.permute.xlu0 %1662
    %1665 = vset.pattern.permute.xlu0 3
    %1666 = vperm.xlu0 %1665, %v83
    %v1667 = vpop.permute.xlu0 %1666
    %1669 = vset.pattern.permute.xlu0 3
    %1670 = vperm.xlu0 %1669, %v84
    %v1671 = vpop.permute.xlu0 %1670
    %1673 = vset.pattern.permute.xlu0 3
    %1674 = vperm.xlu0 %1673, %v85
    %v1675 = vpop.permute.xlu0 %1674
    %1677 = vset.pattern.permute.xlu0 3
    %1678 = vperm.xlu0 %1677, %v86
    %v1679 = vpop.permute.xlu0 %1678
    %v1681 = vmul.f32 %v1619, %v87
    %v1682 = vmul.f32 %v1623, %v87
    %v1683 = vmul.f32 %v1627, %v87
    %v1684 = vmul.f32 %v1631, %v87
    %v1685 = vmul.f32 %v1635, %v87
    %v1686 = vmul.f32 %v1639, %v87
    %v1687 = vmul.f32 %v1643, %v87
    %v1688 = vmul.f32 %v1647, %v87
    %v1689 = vmul.f32 %v1651, %v87
    %v1690 = vmul.f32 %v1655, %v87
    %v1691 = vmul.f32 %v1659, %v87
    %v1692 = vmul.f32 %v1663, %v87
    %v1693 = vmul.f32 %v1667, %v87
    %v1694 = vmul.f32 %v1671, %v87
    %v1695 = vmul.f32 %v1675, %v87
    %v1696 = vmul.f32 %v1679, %v87
    %s1697 = scalar_lea.vmem [#allocation3], 768
    %v1698 = vld [vmem:[%s1697] sm:$0xff]
    %v1699 = vld [vmem:[%s1697 + $0x8] sm:$0xff]
    %v1700 = vld [vmem:[%s1697 + $0x10] sm:$0xff]
    %v1701 = vld [vmem:[%s1697 + $0x18] sm:$0xff]
    %v1702 = vld [vmem:[%s1697 + $0x20] sm:$0xff]
    %v1703 = vld [vmem:[%s1697 + $0x28] sm:$0xff]
    %v1704 = vld [vmem:[%s1697 + $0x30] sm:$0xff]
    %v1705 = vld [vmem:[%s1697 + $0x38] sm:$0xff]
    %v1706 = vld [vmem:[%s1697 + $0x40] sm:$0xff]
    %v1707 = vld [vmem:[%s1697 + $0x48] sm:$0xff]
    %v1708 = vld [vmem:[%s1697 + $0x50] sm:$0xff]
    %v1709 = vld [vmem:[%s1697 + $0x58] sm:$0xff]
    %v1710 = vld [vmem:[%s1697 + $0x60] sm:$0xff]
    %v1711 = vld [vmem:[%s1697 + $0x68] sm:$0xff]
    %v1712 = vld [vmem:[%s1697 + $0x70] sm:$0xff]
    %v1713 = vld [vmem:[%s1697 + $0x78] sm:$0xff]
    %v1714 = vld [vmem:[%s1697 + $0x80] sm:$0xff]
    %v1715 = vld [vmem:[%s1697 + $0x88] sm:$0xff]
    %v1716 = vld [vmem:[%s1697 + $0x90] sm:$0xff]
    %v1717 = vld [vmem:[%s1697 + $0x98] sm:$0xff]
    %v1718 = vld [vmem:[%s1697 + $0xa0] sm:$0xff]
    %v1719 = vld [vmem:[%s1697 + $0xa8] sm:$0xff]
    %v1720 = vld [vmem:[%s1697 + $0xb0] sm:$0xff]
    %v1721 = vld [vmem:[%s1697 + $0xb8] sm:$0xff]
    %v1722 = vld [vmem:[%s1697 + $0xc0] sm:$0xff]
    %v1723 = vld [vmem:[%s1697 + $0xc8] sm:$0xff]
    %v1724 = vld [vmem:[%s1697 + $0xd0] sm:$0xff]
    %v1725 = vld [vmem:[%s1697 + $0xd8] sm:$0xff]
    %v1726 = vld [vmem:[%s1697 + $0xe0] sm:$0xff]
    %v1727 = vld [vmem:[%s1697 + $0xe8] sm:$0xff]
    %v1728 = vld [vmem:[%s1697 + $0xf0] sm:$0xff]
    %v1729 = vld [vmem:[%s1697 + $0xf8] sm:$0xff]
    %v1731 = vsel %vm329, %v1681, 0
    %v1734 = vsel %vm329, %v1682, 0
    %v1737 = vsel %vm329, %v1683, 0
    %v1740 = vsel %vm329, %v1684, 0
    %v1743 = vsel %vm329, %v1685, 0
    %v1746 = vsel %vm329, %v1686, 0
    %v1749 = vsel %vm329, %v1687, 0
    %v1752 = vsel %vm329, %v1688, 0
    %v1755 = vsel %vm329, %v1689, 0
    %v1758 = vsel %vm329, %v1690, 0
    %v1761 = vsel %vm329, %v1691, 0
    %v1764 = vsel %vm329, %v1692, 0
    %v1767 = vsel %vm329, %v1693, 0
    %v1770 = vsel %vm329, %v1694, 0
    %v1773 = vsel %vm329, %v1695, 0
    %v1776 = vsel %vm329, %v1696, 0
    %1778 = vmatprep.subr.mxu0 %v1699
    %1779 = vmatpush1.msra.mxu0 %v1698
    %1780 = vmatprep.subr.mxu0 %v1703
    %1781 = vmatpush1.msra.mxu0 %v1702
    %1782 = vmatprep.subr.mxu0 %v1707
    %1783 = vmatpush1.msra.mxu0 %v1706
    %1784 = vmatprep.subr.mxu0 %v1711
    %1785 = vmatpush1.msra.mxu0 %v1710
    %1786 = vmatprep.subr.mxu0 %v1715
    %1787 = vmatpush1.msra.mxu0 %v1714
    %1788 = vmatprep.subr.mxu0 %v1719
    %1789 = vmatpush1.msra.mxu0 %v1718
    %1790 = vmatprep.subr.mxu0 %v1723
    %1791 = vmatpush1.msra.mxu0 %v1722
    %1792 = vmatprep.subr.mxu0 %v1727
    %1793 = vmatpush1.msra.mxu0 %v1726
    %1794 = vmatprep.subr.mxu0 0.0
    %1795 = vmatpush1.msra.mxu0 0.0
    %1796 = vmatprep.subr.mxu0 0.0
    %1797 = vmatpush1.msra.mxu0 0.0
    %1798 = vmatprep.subr.mxu0 0.0
    %1799 = vmatpush1.msra.mxu0 0.0
    %1800 = vmatprep.subr.mxu0 0.0
    %1801 = vmatpush1.msra.mxu0 0.0
    %1802 = vmatprep.subr.mxu0 0.0
    %1803 = vmatpush1.msra.mxu0 0.0
    %1804 = vmatprep.subr.mxu0 0.0
    %1805 = vmatpush1.msra.mxu0 0.0
    %1806 = vmatprep.subr.mxu0 0.0
    %1807 = vmatpush1.msra.mxu0 0.0
    %1808 = vmatprep.subr.mxu0 0.0
    %1809 = vmatpush1.msra.mxu0 0.0
    %1810 = vmatprep.subr.mxu0 0.0
    %1811 = vmatpush1.msra.mxu0 0.0
    %1812 = vmatprep.subr.mxu0 0.0
    %1813 = vmatpush1.msra.mxu0 0.0
    %1814 = vmatprep.subr.mxu0 0.0
    %1815 = vmatpush1.msra.mxu0 0.0
    %1816 = vmatprep.subr.mxu0 0.0
    %1817 = vmatpush1.msra.mxu0 0.0
    %1818 = vmatprep.subr.mxu0 0.0
    %1819 = vmatpush1.msra.mxu0 0.0
    %1820 = vmatprep.subr.mxu0 0.0
    %1821 = vmatpush1.msra.mxu0 0.0
    %1822 = vmatprep.subr.mxu0 0.0
    %1823 = vmatpush1.msra.mxu0 0.0
    %1824 = vmatprep.subr.mxu0 0.0
    %1825 = vmatpush1.msra.mxu0 0.0
    %1826 = vmatprep.subr.mxu0 0.0
    %1827 = vmatpush1.msra.mxu0 0.0
    %1828 = vmatprep.subr.mxu0 0.0
    %1829 = vmatpush1.msra.mxu0 0.0
    %1830 = vmatprep.subr.mxu0 0.0
    %1831 = vmatpush1.msra.mxu0 0.0
    %1832 = vmatprep.subr.mxu0 0.0
    %1833 = vmatpush1.msra.mxu0 0.0
    %1834 = vmatprep.subr.mxu0 0.0
    %1835 = vmatpush1.msra.mxu0 0.0
    %1836 = vmatprep.subr.mxu0 0.0
    %1837 = vmatpush1.msra.mxu0 0.0
    %1838 = vmatprep.subr.mxu0 0.0
    %1839 = vmatpush1.msra.mxu0 0.0
    %1840 = vmatprep.subr.mxu0 0.0
    %1841 = vmatpush1.msra.mxu0 0.0
    %1842 = vmatprep.mubr.f32.mxu0 0.0
    %1843 = vmatmul.mubr.f32.gmra.mrb[0].mxu0 %v1731
    %v1844 = vpop.f32.mrb[0].mxu0
    %v1845 = vadd.f32 0.0, %v1844
    %v1846 = vpop.f32.mrb[0].mxu0
    %v1847 = vadd.f32 0.0, %v1846
    %1848 = vmatprep.mubr.f32.mxu0 0.0
    %1849 = vmatmul.mubr.f32.gmra.mrb[0].mxu0 %v1734
    %v1850 = vpop.f32.mrb[0].mxu0
    %v1851 = vadd.f32 0.0, %v1850
    %v1852 = vpop.f32.mrb[0].mxu0
    %v1853 = vadd.f32 0.0, %v1852
    %1854 = vmatprep.mubr.f32.mxu0 0.0
    %1855 = vmatmul.mubr.f32.gmra.mrb[0].mxu0 %v1737
    %v1856 = vpop.f32.mrb[0].mxu0
    %v1857 = vadd.f32 0.0, %v1856
    %v1858 = vpop.f32.mrb[0].mxu0
    %v1859 = vadd.f32 0.0, %v1858
    %1860 = vmatprep.mubr.f32.mxu0 0.0
    %1861 = vmatmul.mubr.f32.gmra.mrb[0].mxu0 %v1740
    %v1862 = vpop.f32.mrb[0].mxu0
    %v1863 = vadd.f32 0.0, %v1862
    %v1864 = vpop.f32.mrb[0].mxu0
    %v1865 = vadd.f32 0.0, %v1864
    %1866 = vmatprep.mubr.f32.mxu0 0.0
    %1867 = vmatmul.mubr.f32.gmra.mrb[0].mxu0 %v1743
    %v1868 = vpop.f32.mrb[0].mxu0
    %v1869 = vadd.f32 0.0, %v1868
    %v1870 = vpop.f32.mrb[0].mxu0
    %v1871 = vadd.f32 0.0, %v1870
    %1872 = vmatprep.mubr.f32.mxu0 0.0
    %1873 = vmatmul.mubr.f32.gmra.mrb[0].mxu0 %v1746
    %v1874 = vpop.f32.mrb[0].mxu0
    %v1875 = vadd.f32 0.0, %v1874
    %v1876 = vpop.f32.mrb[0].mxu0
    %v1877 = vadd.f32 0.0, %v1876
    %1878 = vmatprep.mubr.f32.mxu0 0.0
    %1879 = vmatmul.mubr.f32.gmra.mrb[0].mxu0 %v1749
    %v1880 = vpop.f32.mrb[0].mxu0
    %v1881 = vadd.f32 0.0, %v1880
    %v1882 = vpop.f32.mrb[0].mxu0
    %v1883 = vadd.f32 0.0, %v1882
    %1884 = vmatprep.mubr.f32.mxu0 0.0
    %1885 = vmatmul.mubr.f32.gmra.mrb[0].mxu0 %v1752
    %v1886 = vpop.f32.mrb[0].mxu0
    %v1887 = vadd.f32 0.0, %v1886
    %v1888 = vpop.f32.mrb[0].mxu0
    %v1889 = vadd.f32 0.0, %v1888
    %1890 = vmatprep.mubr.f32.mxu0 0.0
    %1891 = vmatmul.mubr.f32.gmra.mrb[0].mxu0 %v1755
    %v1892 = vpop.f32.mrb[0].mxu0
    %v1893 = vadd.f32 0.0, %v1892
    %v1894 = vpop.f32.mrb[0].mxu0
    %v1895 = vadd.f32 0.0, %v1894
    %1896 = vmatprep.mubr.f32.mxu0 0.0
    %1897 = vmatmul.mubr.f32.gmra.mrb[0].mxu0 %v1758
    %v1898 = vpop.f32.mrb[0].mxu0
    %v1899 = vadd.f32 0.0, %v1898
    %v1900 = vpop.f32.mrb[0].mxu0
    %v1901 = vadd.f32 0.0, %v1900
    %1902 = vmatprep.mubr.f32.mxu0 0.0
    %1903 = vmatmul.mubr.f32.gmra.mrb[0].mxu0 %v1761
    %v1904 = vpop.f32.mrb[0].mxu0
    %v1905 = vadd.f32 0.0, %v1904
    %v1906 = vpop.f32.mrb[0].mxu0
    %v1907 = vadd.f32 0.0, %v1906
    %1908 = vmatprep.mubr.f32.mxu0 0.0
    %1909 = vmatmul.mubr.f32.gmra.mrb[0].mxu0 %v1764
    %v1910 = vpop.f32.mrb[0].mxu0
    %v1911 = vadd.f32 0.0, %v1910
    %v1912 = vpop.f32.mrb[0].mxu0
    %v1913 = vadd.f32 0.0, %v1912
    %1914 = vmatprep.mubr.f32.mxu0 0.0
    %1915 = vmatmul.mubr.f32.gmra.mrb[0].mxu0 %v1767
    %v1916 = vpop.f32.mrb[0].mxu0
    %v1917 = vadd.f32 0.0, %v1916
    %v1918 = vpop.f32.mrb[0].mxu0
    %v1919 = vadd.f32 0.0, %v1918
    %1920 = vmatprep.mubr.f32.mxu0 0.0
    %1921 = vmatmul.mubr.f32.gmra.mrb[0].mxu0 %v1770
    %v1922 = vpop.f32.mrb[0].mxu0
    %v1923 = vadd.f32 0.0, %v1922
    %v1924 = vpop.f32.mrb[0].mxu0
    %v1925 = vadd.f32 0.0, %v1924
    %1926 = vmatprep.mubr.f32.mxu0 0.0
    %1927 = vmatmul.mubr.f32.gmra.mrb[0].mxu0 %v1773
    %v1928 = vpop.f32.mrb[0].mxu0
    %v1929 = vadd.f32 0.0, %v1928
    %v1930 = vpop.f32.mrb[0].mxu0
    %v1931 = vadd.f32 0.0, %v1930
    %1932 = vmatprep.mubr.f32.mxu0 0.0
    %1933 = vmatmul.mubr.f32.gmra.mrb[0].mxu0 %v1776
    %v1934 = vpop.f32.mrb[0].mxu0
    %v1935 = vadd.f32 0.0, %v1934
    %v1936 = vpop.f32.mrb[0].mxu0
    %v1937 = vadd.f32 0.0, %v1936
    %1938 = vdwg.mxu0
    %1939 = vmatprep.subr.mxu0 %v1701
    %1940 = vmatpush1.msra.mxu0 %v1700
    %1941 = vmatprep.subr.mxu0 %v1705
    %1942 = vmatpush1.msra.mxu0 %v1704
    %1943 = vmatprep.subr.mxu0 %v1709
    %1944 = vmatpush1.msra.mxu0 %v1708
    %1945 = vmatprep.subr.mxu0 %v1713
    %1946 = vmatpush1.msra.mxu0 %v1712
    %1947 = vmatprep.subr.mxu0 %v1717
    %1948 = vmatpush1.msra.mxu0 %v1716
    %1949 = vmatprep.subr.mxu0 %v1721
    %1950 = vmatpush1.msra.mxu0 %v1720
    %1951 = vmatprep.subr.mxu0 %v1725
    %1952 = vmatpush1.msra.mxu0 %v1724
    %1953 = vmatprep.subr.mxu0 %v1729
    %1954 = vmatpush1.msra.mxu0 %v1728
    %1955 = vmatprep.subr.mxu0 0.0
    %1956 = vmatpush1.msra.mxu0 0.0
    %1957 = vmatprep.subr.mxu0 0.0
    %1958 = vmatpush1.msra.mxu0 0.0
    %1959 = vmatprep.subr.mxu0 0.0
    %1960 = vmatpush1.msra.mxu0 0.0
    %1961 = vmatprep.subr.mxu0 0.0
    %1962 = vmatpush1.msra.mxu0 0.0
    %1963 = vmatprep.subr.mxu0 0.0
    %1964 = vmatpush1.msra.mxu0 0.0
    %1965 = vmatprep.subr.mxu0 0.0
    %1966 = vmatpush1.msra.mxu0 0.0
    %1967 = vmatprep.subr.mxu0 0.0
    %1968 = vmatpush1.msra.mxu0 0.0
    %1969 = vmatprep.subr.mxu0 0.0
    %1970 = vmatpush1.msra.mxu0 0.0
    %1971 = vmatprep.subr.mxu0 0.0
    %1972 = vmatpush1.msra.mxu0 0.0
    %1973 = vmatprep.subr.mxu0 0.0
    %1974 = vmatpush1.msra.mxu0 0.0
    %1975 = vmatprep.subr.mxu0 0.0
    %1976 = vmatpush1.msra.mxu0 0.0
    %1977 = vmatprep.subr.mxu0 0.0
    %1978 = vmatpush1.msra.mxu0 0.0
    %1979 = vmatprep.subr.mxu0 0.0
    %1980 = vmatpush1.msra.mxu0 0.0
    %1981 = vmatprep.subr.mxu0 0.0
    %1982 = vmatpush1.msra.mxu0 0.0
    %1983 = vmatprep.subr.mxu0 0.0
    %1984 = vmatpush1.msra.mxu0 0.0
    %1985 = vmatprep.subr.mxu0 0.0
    %1986 = vmatpush1.msra.mxu0 0.0
    %1987 = vmatprep.subr.mxu0 0.0
    %1988 = vmatpush1.msra.mxu0 0.0
    %1989 = vmatprep.subr.mxu0 0.0
    %1990 = vmatpush1.msra.mxu0 0.0
    %1991 = vmatprep.subr.mxu0 0.0
    %1992 = vmatpush1.msra.mxu0 0.0
    %1993 = vmatprep.subr.mxu0 0.0
    %1994 = vmatpush1.msra.mxu0 0.0
    %1995 = vmatprep.subr.mxu0 0.0
    %1996 = vmatpush1.msra.mxu0 0.0
    %1997 = vmatprep.subr.mxu0 0.0
    %1998 = vmatpush1.msra.mxu0 0.0
    %1999 = vmatprep.subr.mxu0 0.0
    %2000 = vmatpush1.msra.mxu0 0.0
    %2001 = vmatprep.subr.mxu0 0.0
    %2002 = vmatpush1.msra.mxu0 0.0
    %2003 = vmatprep.mubr.f32.mxu0 0.0
    %2004 = vmatmul.mubr.f32.gmra.mrb[0].mxu0 %v1731
    %v2005 = vpop.f32.mrb[0].mxu0
    %v2006 = vadd.f32 0.0, %v2005
    %v2007 = vpop.f32.mrb[0].mxu0
    %v2008 = vadd.f32 0.0, %v2007
    %2009 = vmatprep.mubr.f32.mxu0 0.0
    %2010 = vmatmul.mubr.f32.gmra.mrb[0].mxu0 %v1734
    %v2011 = vpop.f32.mrb[0].mxu0
    %v2012 = vadd.f32 0.0, %v2011
    %v2013 = vpop.f32.mrb[0].mxu0
    %v2014 = vadd.f32 0.0, %v2013
    %2015 = vmatprep.mubr.f32.mxu0 0.0
    %2016 = vmatmul.mubr.f32.gmra.mrb[0].mxu0 %v1737
    %v2017 = vpop.f32.mrb[0].mxu0
    %v2018 = vadd.f32 0.0, %v2017
    %v2019 = vpop.f32.mrb[0].mxu0
    %v2020 = vadd.f32 0.0, %v2019
    %2021 = vmatprep.mubr.f32.mxu0 0.0
    %2022 = vmatmul.mubr.f32.gmra.mrb[0].mxu0 %v1740
    %v2023 = vpop.f32.mrb[0].mxu0
    %v2024 = vadd.f32 0.0, %v2023
    %v2025 = vpop.f32.mrb[0].mxu0
    %v2026 = vadd.f32 0.0, %v2025
    %2027 = vmatprep.mubr.f32.mxu0 0.0
    %2028 = vmatmul.mubr.f32.gmra.mrb[0].mxu0 %v1743
    %v2029 = vpop.f32.mrb[0].mxu0
    %v2030 = vadd.f32 0.0, %v2029
    %v2031 = vpop.f32.mrb[0].mxu0
    %v2032 = vadd.f32 0.0, %v2031
    %2033 = vmatprep.mubr.f32.mxu0 0.0
    %2034 = vmatmul.mubr.f32.gmra.mrb[0].mxu0 %v1746
    %v2035 = vpop.f32.mrb[0].mxu0
    %v2036 = vadd.f32 0.0, %v2035
    %v2037 = vpop.f32.mrb[0].mxu0
    %v2038 = vadd.f32 0.0, %v2037
    %2039 = vmatprep.mubr.f32.mxu0 0.0
    %2040 = vmatmul.mubr.f32.gmra.mrb[0].mxu0 %v1749
    %v2041 = vpop.f32.mrb[0].mxu0
    %v2042 = vadd.f32 0.0, %v2041
    %v2043 = vpop.f32.mrb[0].mxu0
    %v2044 = vadd.f32 0.0, %v2043
    %2045 = vmatprep.mubr.f32.mxu0 0.0
    %2046 = vmatmul.mubr.f32.gmra.mrb[0].mxu0 %v1752
    %v2047 = vpop.f32.mrb[0].mxu0
    %v2048 = vadd.f32 0.0, %v2047
    %v2049 = vpop.f32.mrb[0].mxu0
    %v2050 = vadd.f32 0.0, %v2049
    %2051 = vmatprep.mubr.f32.mxu0 0.0
    %2052 = vmatmul.mubr.f32.gmra.mrb[0].mxu0 %v1755
    %v2053 = vpop.f32.mrb[0].mxu0
    %v2054 = vadd.f32 0.0, %v2053
    %v2055 = vpop.f32.mrb[0].mxu0
    %v2056 = vadd.f32 0.0, %v2055
    %2057 = vmatprep.mubr.f32.mxu0 0.0
    %2058 = vmatmul.mubr.f32.gmra.mrb[0].mxu0 %v1758
    %v2059 = vpop.f32.mrb[0].mxu0
    %v2060 = vadd.f32 0.0, %v2059
    %v2061 = vpop.f32.mrb[0].mxu0
    %v2062 = vadd.f32 0.0, %v2061
    %2063 = vmatprep.mubr.f32.mxu0 0.0
    %2064 = vmatmul.mubr.f32.gmra.mrb[0].mxu0 %v1761
    %v2065 = vpop.f32.mrb[0].mxu0
    %v2066 = vadd.f32 0.0, %v2065
    %v2067 = vpop.f32.mrb[0].mxu0
    %v2068 = vadd.f32 0.0, %v2067
    %2069 = vmatprep.mubr.f32.mxu0 0.0
    %2070 = vmatmul.mubr.f32.gmra.mrb[0].mxu0 %v1764
    %v2071 = vpop.f32.mrb[0].mxu0
    %v2072 = vadd.f32 0.0, %v2071
    %v2073 = vpop.f32.mrb[0].mxu0
    %v2074 = vadd.f32 0.0, %v2073
    %2075 = vmatprep.mubr.f32.mxu0 0.0
    %2076 = vmatmul.mubr.f32.gmra.mrb[0].mxu0 %v1767
    %v2077 = vpop.f32.mrb[0].mxu0
    %v2078 = vadd.f32 0.0, %v2077
    %v2079 = vpop.f32.mrb[0].mxu0
    %v2080 = vadd.f32 0.0, %v2079
    %2081 = vmatprep.mubr.f32.mxu0 0.0
    %2082 = vmatmul.mubr.f32.gmra.mrb[0].mxu0 %v1770
    %v2083 = vpop.f32.mrb[0].mxu0
    %v2084 = vadd.f32 0.0, %v2083
    %v2085 = vpop.f32.mrb[0].mxu0
    %v2086 = vadd.f32 0.0, %v2085
    %2087 = vmatprep.mubr.f32.mxu0 0.0
    %2088 = vmatmul.mubr.f32.gmra.mrb[0].mxu0 %v1773
    %v2089 = vpop.f32.mrb[0].mxu0
    %v2090 = vadd.f32 0.0, %v2089
    %v2091 = vpop.f32.mrb[0].mxu0
    %v2092 = vadd.f32 0.0, %v2091
    %2093 = vmatprep.mubr.f32.mxu0 0.0
    %2094 = vmatmul.mubr.f32.gmra.mrb[0].mxu0 %v1776
    %v2095 = vpop.f32.mrb[0].mxu0
    %v2096 = vadd.f32 0.0, %v2095
    %v2097 = vpop.f32.mrb[0].mxu0
    %v2098 = vadd.f32 0.0, %v2097
    %2099 = vdwg.mxu0
    %v2100 = vadd.f32 %v1553, %v1845
    %v2101 = vadd.f32 %v1554, %v1847
    %v2102 = vadd.f32 %v1555, %v2006
    %v2103 = vadd.f32 %v1556, %v2008
    %v2104 = vadd.f32 %v1557, %v1851
    %v2105 = vadd.f32 %v1558, %v1853
    %v2106 = vadd.f32 %v1559, %v2012
    %v2107 = vadd.f32 %v1560, %v2014
    %v2108 = vadd.f32 %v1561, %v1857
    %v2109 = vadd.f32 %v1562, %v1859
    %v2110 = vadd.f32 %v1563, %v2018
    %v2111 = vadd.f32 %v1564, %v2020
    %v2112 = vadd.f32 %v1565, %v1863
    %v2113 = vadd.f32 %v1566, %v1865
    %v2114 = vadd.f32 %v1567, %v2024
    %v2115 = vadd.f32 %v1568, %v2026
    %v2116 = vadd.f32 %v1569, %v1869
    %v2117 = vadd.f32 %v1570, %v1871
    %v2118 = vadd.f32 %v1571, %v2030
    %v2119 = vadd.f32 %v1572, %v2032
    %v2120 = vadd.f32 %v1573, %v1875
    %v2121 = vadd.f32 %v1574, %v1877
    %v2122 = vadd.f32 %v1575, %v2036
    %v2123 = vadd.f32 %v1576, %v2038
    %v2124 = vadd.f32 %v1577, %v1881
    %v2125 = vadd.f32 %v1578, %v1883
    %v2126 = vadd.f32 %v1579, %v2042
    %v2127 = vadd.f32 %v1580, %v2044
    %v2128 = vadd.f32 %v1581, %v1887
    %v2129 = vadd.f32 %v1582, %v1889
    %v2130 = vadd.f32 %v1583, %v2048
    %v2131 = vadd.f32 %v1584, %v2050
    %v2132 = vadd.f32 %v1585, %v1893
    %v2133 = vadd.f32 %v1586, %v1895
    %v2134 = vadd.f32 %v1587, %v2054
    %v2135 = vadd.f32 %v1588, %v2056
    %v2136 = vadd.f32 %v1589, %v1899
    %v2137 = vadd.f32 %v1590, %v1901
    %v2138 = vadd.f32 %v1591, %v2060
    %v2139 = vadd.f32 %v1592, %v2062
    %v2140 = vadd.f32 %v1593, %v1905
    %v2141 = vadd.f32 %v1594, %v1907
    %v2142 = vadd.f32 %v1595, %v2066
    %v2143 = vadd.f32 %v1596, %v2068
    %v2144 = vadd.f32 %v1597, %v1911
    %v2145 = vadd.f32 %v1598, %v1913
    %v2146 = vadd.f32 %v1599, %v2072
    %v2147 = vadd.f32 %v1600, %v2074
    %v2148 = vadd.f32 %v1601, %v1917
    %v2149 = vadd.f32 %v1602, %v1919
    %v2150 = vadd.f32 %v1603, %v2078
    %v2151 = vadd.f32 %v1604, %v2080
    %v2152 = vadd.f32 %v1605, %v1923
    %v2153 = vadd.f32 %v1606, %v1925
    %v2154 = vadd.f32 %v1607, %v2084
    %v2155 = vadd.f32 %v1608, %v2086
    %v2156 = vadd.f32 %v1609, %v1929
    %v2157 = vadd.f32 %v1610, %v1931
    %v2158 = vadd.f32 %v1611, %v2090
    %v2159 = vadd.f32 %v1612, %v2092
    %v2160 = vadd.f32 %v1613, %v1935
    %v2161 = vadd.f32 %v1614, %v1937
    %v2162 = vadd.f32 %v1615, %v2096
    %v2163 = vadd.f32 %v1616, %v2098
    %v2164 = vld [vmem:[%s3] sm:$0xf]
    %v2166 = vlaneseq
    %v2167 = vshrl.u32 %v2166, 7
    %v2168 = vsub.s32 0, %v2167
    %v2169 = vrot.slane %v2164, %v2168
    %v2170 = vlaneseq
    %v2171 = vshrl.u32 %v2170, 7
    %v2172 = vsub.s32 1, %v2171
    %v2173 = vrot.slane %v2164, %v2172
    %v2174 = vlaneseq
    %v2175 = vshrl.u32 %v2174, 7
    %v2176 = vsub.s32 2, %v2175
    %v2177 = vrot.slane %v2164, %v2176
    %v2178 = vlaneseq
    %v2179 = vshrl.u32 %v2178, 7
    %v2180 = vsub.s32 3, %v2179
    %v2181 = vrot.slane %v2164, %v2180
    %v2186 = vadd.f32 %v2100, %v2169
    %v2187 = vadd.f32 %v2101, %v2173
    %v2188 = vadd.f32 %v2102, %v2177
    %v2189 = vadd.f32 %v2103, %v2181
    %v2190 = vadd.f32 %v2104, %v2169
    %v2191 = vadd.f32 %v2105, %v2173
    %v2192 = vadd.f32 %v2106, %v2177
    %v2193 = vadd.f32 %v2107, %v2181
    %v2194 = vadd.f32 %v2108, %v2169
    %v2195 = vadd.f32 %v2109, %v2173
    %v2196 = vadd.f32 %v2110, %v2177
    %v2197 = vadd.f32 %v2111, %v2181
    %v2198 = vadd.f32 %v2112, %v2169
    %v2199 = vadd.f32 %v2113, %v2173
    %v2200 = vadd.f32 %v2114, %v2177
    %v2201 = vadd.f32 %v2115, %v2181
    %v2202 = vadd.f32 %v2116, %v2169
    %v2203 = vadd.f32 %v2117, %v2173
    %v2204 = vadd.f32 %v2118, %v2177
    %v2205 = vadd.f32 %v2119, %v2181
    %v2206 = vadd.f32 %v2120, %v2169
    %v2207 = vadd.f32 %v2121, %v2173
    %v2208 = vadd.f32 %v2122, %v2177
    %v2209 = vadd.f32 %v2123, %v2181
    %v2210 = vadd.f32 %v2124, %v2169
    %v2211 = vadd.f32 %v2125, %v2173
    %v2212 = vadd.f32 %v2126, %v2177
    %v2213 = vadd.f32 %v2127, %v2181
    %v2214 = vadd.f32 %v2128, %v2169
    %v2215 = vadd.f32 %v2129, %v2173
    %v2216 = vadd.f32 %v2130, %v2177
    %v2217 = vadd.f32 %v2131, %v2181
    %v2218 = vadd.f32 %v2132, %v2169
    %v2219 = vadd.f32 %v2133, %v2173
    %v2220 = vadd.f32 %v2134, %v2177
    %v2221 = vadd.f32 %v2135, %v2181
    %v2222 = vadd.f32 %v2136, %v2169
    %v2223 = vadd.f32 %v2137, %v2173
    %v2224 = vadd.f32 %v2138, %v2177
    %v2225 = vadd.f32 %v2139, %v2181
    %v2226 = vadd.f32 %v2140, %v2169
    %v2227 = vadd.f32 %v2141, %v2173
    %v2228 = vadd.f32 %v2142, %v2177
    %v2229 = vadd.f32 %v2143, %v2181
    %v2230 = vadd.f32 %v2144, %v2169
    %v2231 = vadd.f32 %v2145, %v2173
    %v2232 = vadd.f32 %v2146, %v2177
    %v2233 = vadd.f32 %v2147, %v2181
    %v2234 = vadd.f32 %v2148, %v2169
    %v2235 = vadd.f32 %v2149, %v2173
    %v2236 = vadd.f32 %v2150, %v2177
    %v2237 = vadd.f32 %v2151, %v2181
    %v2238 = vadd.f32 %v2152, %v2169
    %v2239 = vadd.f32 %v2153, %v2173
    %v2240 = vadd.f32 %v2154, %v2177
    %v2241 = vadd.f32 %v2155, %v2181
    %v2242 = vadd.f32 %v2156, %v2169
    %v2243 = vadd.f32 %v2157, %v2173
    %v2244 = vadd.f32 %v2158, %v2177
    %v2245 = vadd.f32 %v2159, %v2181
    %v2246 = vadd.f32 %v2160, %v2169
    %v2247 = vadd.f32 %v2161, %v2173
    %v2248 = vadd.f32 %v2162, %v2177
    %v2249 = vadd.f32 %v2163, %v2181
    %v2250 = vmax.f32 %v2186, 0.0
    %v2251 = vmax.f32 %v2187, 0.0
    %v2252 = vmax.f32 %v2188, 0.0
    %v2253 = vmax.f32 %v2189, 0.0
    %v2254 = vmax.f32 %v2190, 0.0
    %v2255 = vmax.f32 %v2191, 0.0
    %v2256 = vmax.f32 %v2192, 0.0
    %v2257 = vmax.f32 %v2193, 0.0
    %v2258 = vmax.f32 %v2194, 0.0
    %v2259 = vmax.f32 %v2195, 0.0
    %v2260 = vmax.f32 %v2196, 0.0
    %v2261 = vmax.f32 %v2197, 0.0
    %v2262 = vmax.f32 %v2198, 0.0
    %v2263 = vmax.f32 %v2199, 0.0
    %v2264 = vmax.f32 %v2200, 0.0
    %v2265 = vmax.f32 %v2201, 0.0
    %v2266 = vmax.f32 %v2202, 0.0
    %v2267 = vmax.f32 %v2203, 0.0
    %v2268 = vmax.f32 %v2204, 0.0
    %v2269 = vmax.f32 %v2205, 0.0
    %v2270 = vmax.f32 %v2206, 0.0
    %v2271 = vmax.f32 %v2207, 0.0
    %v2272 = vmax.f32 %v2208, 0.0
    %v2273 = vmax.f32 %v2209, 0.0
    %v2274 = vmax.f32 %v2210, 0.0
    %v2275 = vmax.f32 %v2211, 0.0
    %v2276 = vmax.f32 %v2212, 0.0
    %v2277 = vmax.f32 %v2213, 0.0
    %v2278 = vmax.f32 %v2214, 0.0
    %v2279 = vmax.f32 %v2215, 0.0
    %v2280 = vmax.f32 %v2216, 0.0
    %v2281 = vmax.f32 %v2217, 0.0
    %v2282 = vmax.f32 %v2218, 0.0
    %v2283 = vmax.f32 %v2219, 0.0
    %v2284 = vmax.f32 %v2220, 0.0
    %v2285 = vmax.f32 %v2221, 0.0
    %v2286 = vmax.f32 %v2222, 0.0
    %v2287 = vmax.f32 %v2223, 0.0
    %v2288 = vmax.f32 %v2224, 0.0
    %v2289 = vmax.f32 %v2225, 0.0
    %v2290 = vmax.f32 %v2226, 0.0
    %v2291 = vmax.f32 %v2227, 0.0
    %v2292 = vmax.f32 %v2228, 0.0
    %v2293 = vmax.f32 %v2229, 0.0
    %v2294 = vmax.f32 %v2230, 0.0
    %v2295 = vmax.f32 %v2231, 0.0
    %v2296 = vmax.f32 %v2232, 0.0
    %v2297 = vmax.f32 %v2233, 0.0
    %v2298 = vmax.f32 %v2234, 0.0
    %v2299 = vmax.f32 %v2235, 0.0
    %v2300 = vmax.f32 %v2236, 0.0
    %v2301 = vmax.f32 %v2237, 0.0
    %v2302 = vmax.f32 %v2238, 0.0
    %v2303 = vmax.f32 %v2239, 0.0
    %v2304 = vmax.f32 %v2240, 0.0
    %v2305 = vmax.f32 %v2241, 0.0
    %v2306 = vmax.f32 %v2242, 0.0
    %v2307 = vmax.f32 %v2243, 0.0
    %v2308 = vmax.f32 %v2244, 0.0
    %v2309 = vmax.f32 %v2245, 0.0
    %v2310 = vmax.f32 %v2246, 0.0
    %v2311 = vmax.f32 %v2247, 0.0
    %v2312 = vmax.f32 %v2248, 0.0
    %v2313 = vmax.f32 %v2249, 0.0
    %v2314 = vld [vmem:[#allocation5] sm:$0xff]
    %v2315 = vld [vmem:[#allocation5 + $0x8] sm:$0xff]
    %v2316 = vld [vmem:[#allocation5 + $0x10] sm:$0xff]
    %v2317 = vld [vmem:[#allocation5 + $0x18] sm:$0xff]
    %v2318 = vld [vmem:[#allocation5 + $0x20] sm:$0xff]
    %v2319 = vld [vmem:[#allocation5 + $0x28] sm:$0xff]
    %v2320 = vld [vmem:[#allocation5 + $0x30] sm:$0xff]
    %v2321 = vld [vmem:[#allocation5 + $0x38] sm:$0xff]
    %v2322 = vld [vmem:[#allocation5 + $0x40] sm:$0xff]
    %v2323 = vld [vmem:[#allocation5 + $0x48] sm:$0xff]
    %v2324 = vld [vmem:[#allocation5 + $0x50] sm:$0xff]
    %v2325 = vld [vmem:[#allocation5 + $0x58] sm:$0xff]
    %v2326 = vld [vmem:[#allocation5 + $0x60] sm:$0xff]
    %v2327 = vld [vmem:[#allocation5 + $0x68] sm:$0xff]
    %v2328 = vld [vmem:[#allocation5 + $0x70] sm:$0xff]
    %v2329 = vld [vmem:[#allocation5 + $0x78] sm:$0xff]
    %s2330 = scalar_lea.vmem [#allocation5], 128
    %v2331 = vld [vmem:[%s2330] sm:$0xff]
    %v2332 = vld [vmem:[%s2330 + $0x8] sm:$0xff]
    %v2333 = vld [vmem:[%s2330 + $0x10] sm:$0xff]
    %v2334 = vld [vmem:[%s2330 + $0x18] sm:$0xff]
    %v2335 = vld [vmem:[%s2330 + $0x20] sm:$0xff]
    %v2336 = vld [vmem:[%s2330 + $0x28] sm:$0xff]
    %v2337 = vld [vmem:[%s2330 + $0x30] sm:$0xff]
    %v2338 = vld [vmem:[%s2330 + $0x38] sm:$0xff]
    %v2339 = vld [vmem:[%s2330 + $0x40] sm:$0xff]
    %v2340 = vld [vmem:[%s2330 + $0x48] sm:$0xff]
    %v2341 = vld [vmem:[%s2330 + $0x50] sm:$0xff]
    %v2342 = vld [vmem:[%s2330 + $0x58] sm:$0xff]
    %v2343 = vld [vmem:[%s2330 + $0x60] sm:$0xff]
    %v2344 = vld [vmem:[%s2330 + $0x68] sm:$0xff]
    %v2345 = vld [vmem:[%s2330 + $0x70] sm:$0xff]
    %v2346 = vld [vmem:[%s2330 + $0x78] sm:$0xff]
    %2347 = vmatprep.subr.mxu0 0.0
    %2348 = vmatpush1.msra.mxu0 %v2331
    %2349 = vmatprep.subr.mxu0 0.0
    %2350 = vmatpush1.msra.mxu0 %v2332
    %2351 = vmatprep.subr.mxu0 0.0
    %2352 = vmatpush1.msra.mxu0 %v2333
    %2353 = vmatprep.subr.mxu0 0.0
    %2354 = vmatpush1.msra.mxu0 %v2334
    %2355 = vmatprep.subr.mxu0 0.0
    %2356 = vmatpush1.msra.mxu0 %v2335
    %2357 = vmatprep.subr.mxu0 0.0
    %2358 = vmatpush1.msra.mxu0 %v2336
    %2359 = vmatprep.subr.mxu0 0.0
    %2360 = vmatpush1.msra.mxu0 %v2337
    %2361 = vmatprep.subr.mxu0 0.0
    %2362 = vmatpush1.msra.mxu0 %v2338
    %2363 = vmatprep.subr.mxu0 0.0
    %2364 = vmatpush1.msra.mxu0 %v2339
    %2365 = vmatprep.subr.mxu0 0.0
    %2366 = vmatpush1.msra.mxu0 %v2340
    %2367 = vmatprep.subr.mxu0 0.0
    %2368 = vmatpush1.msra.mxu0 %v2341
    %2369 = vmatprep.subr.mxu0 0.0
    %2370 = vmatpush1.msra.mxu0 %v2342
    %2371 = vmatprep.subr.mxu0 0.0
    %2372 = vmatpush1.msra.mxu0 %v2343
    %2373 = vmatprep.subr.mxu0 0.0
    %2374 = vmatpush1.msra.mxu0 %v2344
    %2375 = vmatprep.subr.mxu0 0.0
    %2376 = vmatpush1.msra.mxu0 %v2345
    %2377 = vmatprep.subr.mxu0 0.0
    %2378 = vmatpush1.msra.mxu0 %v2346
    %2379 = vmatprep.subr.mxu0 0.0
    %2380 = vmatpush1.msra.mxu0 0.0
    %2381 = vmatprep.subr.mxu0 0.0
    %2382 = vmatpush1.msra.mxu0 0.0
    %2383 = vmatprep.subr.mxu0 0.0
    %2384 = vmatpush1.msra.mxu0 0.0
    %2385 = vmatprep.subr.mxu0 0.0
    %2386 = vmatpush1.msra.mxu0 0.0
    %2387 = vmatprep.subr.mxu0 0.0
    %2388 = vmatpush1.msra.mxu0 0.0
    %2389 = vmatprep.subr.mxu0 0.0
    %2390 = vmatpush1.msra.mxu0 0.0
    %2391 = vmatprep.subr.mxu0 0.0
    %2392 = vmatpush1.msra.mxu0 0.0
    %2393 = vmatprep.subr.mxu0 0.0
    %2394 = vmatpush1.msra.mxu0 0.0
    %2395 = vmatprep.subr.mxu0 0.0
    %2396 = vmatpush1.msra.mxu0 0.0
    %2397 = vmatprep.subr.mxu0 0.0
    %2398 = vmatpush1.msra.mxu0 0.0
    %2399 = vmatprep.subr.mxu0 0.0
    %2400 = vmatpush1.msra.mxu0 0.0
    %2401 = vmatprep.subr.mxu0 0.0
    %2402 = vmatpush1.msra.mxu0 0.0
    %2403 = vmatprep.subr.mxu0 0.0
    %2404 = vmatpush1.msra.mxu0 0.0
    %2405 = vmatprep.subr.mxu0 0.0
    %2406 = vmatpush1.msra.mxu0 0.0
    %2407 = vmatprep.subr.mxu0 0.0
    %2408 = vmatpush1.msra.mxu0 0.0
    %2409 = vmatprep.subr.mxu0 0.0
    %2410 = vmatpush1.msra.mxu0 0.0
    %2411 = vmatprep.mubr.f32.mxu0 0.0
    %2412 = vmatmul.mubr.f32.gmra.mrb[0].mxu0 %v2251
    %v2413 = vpop.f32.mrb[0].mxu0
    %v2414 = vadd.f32 0.0, %v2413
    %v2415 = vpop.f32.mrb[0].mxu0
    %2416 = vmatprep.mubr.f32.mxu0 0.0
    %2417 = vmatmul.mubr.f32.gmra.mrb[0].mxu0 %v2267
    %v2418 = vpop.f32.mrb[0].mxu0
    %v2419 = vadd.f32 0.0, %v2418
    %v2420 = vpop.f32.mrb[0].mxu0
    %2421 = vmatprep.mubr.f32.mxu0 0.0
    %2422 = vmatmul.mubr.f32.gmra.mrb[0].mxu0 %v2283
    %v2423 = vpop.f32.mrb[0].mxu0
    %v2424 = vadd.f32 0.0, %v2423
    %v2425 = vpop.f32.mrb[0].mxu0
    %2426 = vmatprep.mubr.f32.mxu0 0.0
    %2427 = vmatmul.mubr.f32.gmra.mrb[0].mxu0 %v2299
    %v2428 = vpop.f32.mrb[0].mxu0
    %v2429 = vadd.f32 0.0, %v2428
    %v2430 = vpop.f32.mrb[0].mxu0
    %2431 = vdwg.mxu0
    %2432 = vmatprep.subr.mxu0 0.0
    %2433 = vmatpush1.msra.mxu0 %v2314
    %2434 = vmatprep.subr.mxu0 0.0
    %2435 = vmatpush1.msra.mxu0 %v2315
    %2436 = vmatprep.subr.mxu0 0.0
    %2437 = vmatpush1.msra.mxu0 %v2316
    %2438 = vmatprep.subr.mxu0 0.0
    %2439 = vmatpush1.msra.mxu0 %v2317
    %2440 = vmatprep.subr.mxu0 0.0
    %2441 = vmatpush1.msra.mxu0 %v2318
    %2442 = vmatprep.subr.mxu0 0.0
    %2443 = vmatpush1.msra.mxu0 %v2319
    %2444 = vmatprep.subr.mxu0 0.0
    %2445 = vmatpush1.msra.mxu0 %v2320
    %2446 = vmatprep.subr.mxu0 0.0
    %2447 = vmatpush1.msra.mxu0 %v2321
    %2448 = vmatprep.subr.mxu0 0.0
    %2449 = vmatpush1.msra.mxu0 %v2322
    %2450 = vmatprep.subr.mxu0 0.0
    %2451 = vmatpush1.msra.mxu0 %v2323
    %2452 = vmatprep.subr.mxu0 0.0
    %2453 = vmatpush1.msra.mxu0 %v2324
    %2454 = vmatprep.subr.mxu0 0.0
    %2455 = vmatpush1.msra.mxu0 %v2325
    %2456 = vmatprep.subr.mxu0 0.0
    %2457 = vmatpush1.msra.mxu0 %v2326
    %2458 = vmatprep.subr.mxu0 0.0
    %2459 = vmatpush1.msra.mxu0 %v2327
    %2460 = vmatprep.subr.mxu0 0.0
    %2461 = vmatpush1.msra.mxu0 %v2328
    %2462 = vmatprep.subr.mxu0 0.0
    %2463 = vmatpush1.msra.mxu0 %v2329
    %2464 = vmatprep.subr.mxu0 0.0
    %2465 = vmatpush1.msra.mxu0 0.0
    %2466 = vmatprep.subr.mxu0 0.0
    %2467 = vmatpush1.msra.mxu0 0.0
    %2468 = vmatprep.subr.mxu0 0.0
    %2469 = vmatpush1.msra.mxu0 0.0
    %2470 = vmatprep.subr.mxu0 0.0
    %2471 = vmatpush1.msra.mxu0 0.0
    %2472 = vmatprep.subr.mxu0 0.0
    %2473 = vmatpush1.msra.mxu0 0.0
    %2474 = vmatprep.subr.mxu0 0.0
    %2475 = vmatpush1.msra.mxu0 0.0
    %2476 = vmatprep.subr.mxu0 0.0
    %2477 = vmatpush1.msra.mxu0 0.0
    %2478 = vmatprep.subr.mxu0 0.0
    %2479 = vmatpush1.msra.mxu0 0.0
    %2480 = vmatprep.subr.mxu0 0.0
    %2481 = vmatpush1.msra.mxu0 0.0
    %2482 = vmatprep.subr.mxu0 0.0
    %2483 = vmatpush1.msra.mxu0 0.0
    %2484 = vmatprep.subr.mxu0 0.0
    %2485 = vmatpush1.msra.mxu0 0.0
    %2486 = vmatprep.subr.mxu0 0.0
    %2487 = vmatpush1.msra.mxu0 0.0
    %2488 = vmatprep.subr.mxu0 0.0
    %2489 = vmatpush1.msra.mxu0 0.0
    %2490 = vmatprep.subr.mxu0 0.0
    %2491 = vmatpush1.msra.mxu0 0.0
    %2492 = vmatprep.subr.mxu0 0.0
    %2493 = vmatpush1.msra.mxu0 0.0
    %2494 = vmatprep.subr.mxu0 0.0
    %2495 = vmatpush1.msra.mxu0 0.0
    %2496 = vmatprep.mubr.f32.mxu0 0.0
    %2497 = vmatmul.mubr.f32.gmra.mrb[0].mxu0 %v2250
    %v2498 = vpop.f32.mrb[0].mxu0
    %v2499 = vadd.f32 %v2414, %v2498
    %v2500 = vpop.f32.mrb[0].mxu0
    %2501 = vmatprep.mubr.f32.mxu0 0.0
    %2502 = vmatmul.mubr.f32.gmra.mrb[0].mxu0 %v2266
    %v2503 = vpop.f32.mrb[0].mxu0
    %v2504 = vadd.f32 %v2419, %v2503
    %v2505 = vpop.f32.mrb[0].mxu0
    %2506 = vmatprep.mubr.f32.mxu0 0.0
    %2507 = vmatmul.mubr.f32.gmra.mrb[0].mxu0 %v2282
    %v2508 = vpop.f32.mrb[0].mxu0
    %v2509 = vadd.f32 %v2424, %v2508
    %v2510 = vpop.f32.mrb[0].mxu0
    %2511 = vmatprep.mubr.f32.mxu0 0.0
    %2512 = vmatmul.mubr.f32.gmra.mrb[0].mxu0 %v2298
    %v2513 = vpop.f32.mrb[0].mxu0
    %v2514 = vadd.f32 %v2429, %v2513
    %v2515 = vpop.f32.mrb[0].mxu0
    %2516 = vdwg.mxu0
    %s2517 = scalar_lea.vmem [#allocation5], 256
    %v2518 = vld [vmem:[%s2517] sm:$0xff]
    %v2519 = vld [vmem:[%s2517 + $0x8] sm:$0xff]
    %v2520 = vld [vmem:[%s2517 + $0x10] sm:$0xff]
    %v2521 = vld [vmem:[%s2517 + $0x18] sm:$0xff]
    %v2522 = vld [vmem:[%s2517 + $0x20] sm:$0xff]
    %v2523 = vld [vmem:[%s2517 + $0x28] sm:$0xff]
    %v2524 = vld [vmem:[%s2517 + $0x30] sm:$0xff]
    %v2525 = vld [vmem:[%s2517 + $0x38] sm:$0xff]
    %v2526 = vld [vmem:[%s2517 + $0x40] sm:$0xff]
    %v2527 = vld [vmem:[%s2517 + $0x48] sm:$0xff]
    %v2528 = vld [vmem:[%s2517 + $0x50] sm:$0xff]
    %v2529 = vld [vmem:[%s2517 + $0x58] sm:$0xff]
    %v2530 = vld [vmem:[%s2517 + $0x60] sm:$0xff]
    %v2531 = vld [vmem:[%s2517 + $0x68] sm:$0xff]
    %v2532 = vld [vmem:[%s2517 + $0x70] sm:$0xff]
    %v2533 = vld [vmem:[%s2517 + $0x78] sm:$0xff]
    %2534 = vmatprep.subr.mxu0 0.0
    %2535 = vmatpush1.msra.mxu0 %v2518
    %2536 = vmatprep.subr.mxu0 0.0
    %2537 = vmatpush1.msra.mxu0 %v2519
    %2538 = vmatprep.subr.mxu0 0.0
    %2539 = vmatpush1.msra.mxu0 %v2520
    %2540 = vmatprep.subr.mxu0 0.0
    %2541 = vmatpush1.msra.mxu0 %v2521
    %2542 = vmatprep.subr.mxu0 0.0
    %2543 = vmatpush1.msra.mxu0 %v2522
    %2544 = vmatprep.subr.mxu0 0.0
    %2545 = vmatpush1.msra.mxu0 %v2523
    %2546 = vmatprep.subr.mxu0 0.0
    %2547 = vmatpush1.msra.mxu0 %v2524
    %2548 = vmatprep.subr.mxu0 0.0
    %2549 = vmatpush1.msra.mxu0 %v2525
    %2550 = vmatprep.subr.mxu0 0.0
    %2551 = vmatpush1.msra.mxu0 %v2526
    %2552 = vmatprep.subr.mxu0 0.0
    %2553 = vmatpush1.msra.mxu0 %v2527
    %2554 = vmatprep.subr.mxu0 0.0
    %2555 = vmatpush1.msra.mxu0 %v2528
    %2556 = vmatprep.subr.mxu0 0.0
    %2557 = vmatpush1.msra.mxu0 %v2529
    %2558 = vmatprep.subr.mxu0 0.0
    %2559 = vmatpush1.msra.mxu0 %v2530
    %2560 = vmatprep.subr.mxu0 0.0
    %2561 = vmatpush1.msra.mxu0 %v2531
    %2562 = vmatprep.subr.mxu0 0.0
    %2563 = vmatpush1.msra.mxu0 %v2532
    %2564 = vmatprep.subr.mxu0 0.0
    %2565 = vmatpush1.msra.mxu0 %v2533
    %2566 = vmatprep.subr.mxu0 0.0
    %2567 = vmatpush1.msra.mxu0 0.0
    %2568 = vmatprep.subr.mxu0 0.0
    %2569 = vmatpush1.msra.mxu0 0.0
    %2570 = vmatprep.subr.mxu0 0.0
    %2571 = vmatpush1.msra.mxu0 0.0
    %2572 = vmatprep.subr.mxu0 0.0
    %2573 = vmatpush1.msra.mxu0 0.0
    %2574 = vmatprep.subr.mxu0 0.0
    %2575 = vmatpush1.msra.mxu0 0.0
    %2576 = vmatprep.subr.mxu0 0.0
    %2577 = vmatpush1.msra.mxu0 0.0
    %2578 = vmatprep.subr.mxu0 0.0
    %2579 = vmatpush1.msra.mxu0 0.0
    %2580 = vmatprep.subr.mxu0 0.0
    %2581 = vmatpush1.msra.mxu0 0.0
    %2582 = vmatprep.subr.mxu0 0.0
    %2583 = vmatpush1.msra.mxu0 0.0
    %2584 = vmatprep.subr.mxu0 0.0
    %2585 = vmatpush1.msra.mxu0 0.0
    %2586 = vmatprep.subr.mxu0 0.0
    %2587 = vmatpush1.msra.mxu0 0.0
    %2588 = vmatprep.subr.mxu0 0.0
    %2589 = vmatpush1.msra.mxu0 0.0
    %2590 = vmatprep.subr.mxu0 0.0
    %2591 = vmatpush1.msra.mxu0 0.0
    %2592 = vmatprep.subr.mxu0 0.0
    %2593 = vmatpush1.msra.mxu0 0.0
    %2594 = vmatprep.subr.mxu0 0.0
    %2595 = vmatpush1.msra.mxu0 0.0
    %2596 = vmatprep.subr.mxu0 0.0
    %2597 = vmatpush1.msra.mxu0 0.0
    %2598 = vmatprep.mubr.f32.mxu0 0.0
    %2599 = vmatmul.mubr.f32.gmra.mrb[0].mxu0 %v2252
    %v2600 = vpop.f32.mrb[0].mxu0
    %v2601 = vadd.f32 0.0, %v2600
    %v2602 = vpop.f32.mrb[0].mxu0
    %2603 = vmatprep.mubr.f32.mxu0 0.0
    %2604 = vmatmul.mubr.f32.gmra.mrb[0].mxu0 %v2268
    %v2605 = vpop.f32.mrb[0].mxu0
    %v2606 = vadd.f32 0.0, %v2605
    %v2607 = vpop.f32.mrb[0].mxu0
    %2608 = vmatprep.mubr.f32.mxu0 0.0
    %2609 = vmatmul.mubr.f32.gmra.mrb[0].mxu0 %v2284
    %v2610 = vpop.f32.mrb[0].mxu0
    %v2611 = vadd.f32 0.0, %v2610
    %v2612 = vpop.f32.mrb[0].mxu0
    %2613 = vmatprep.mubr.f32.mxu0 0.0
    %2614 = vmatmul.mubr.f32.gmra.mrb[0].mxu0 %v2300
    %v2615 = vpop.f32.mrb[0].mxu0
    %v2616 = vadd.f32 0.0, %v2615
    %v2617 = vpop.f32.mrb[0].mxu0
    %2618 = vdwg.mxu0
    %v2619 = vadd.f32 %v2499, %v2601
    %v2620 = vadd.f32 %v2504, %v2606
    %v2621 = vadd.f32 %v2509, %v2611
    %v2622 = vadd.f32 %v2514, %v2616
    %s2623 = scalar_lea.vmem [#allocation5], 384
    %v2624 = vld [vmem:[%s2623] sm:$0xff]
    %v2625 = vld [vmem:[%s2623 + $0x8] sm:$0xff]
    %v2626 = vld [vmem:[%s2623 + $0x10] sm:$0xff]
    %v2627 = vld [vmem:[%s2623 + $0x18] sm:$0xff]
    %v2628 = vld [vmem:[%s2623 + $0x20] sm:$0xff]
    %v2629 = vld [vmem:[%s2623 + $0x28] sm:$0xff]
    %v2630 = vld [vmem:[%s2623 + $0x30] sm:$0xff]
    %v2631 = vld [vmem:[%s2623 + $0x38] sm:$0xff]
    %v2632 = vld [vmem:[%s2623 + $0x40] sm:$0xff]
    %v2633 = vld [vmem:[%s2623 + $0x48] sm:$0xff]
    %v2634 = vld [vmem:[%s2623 + $0x50] sm:$0xff]
    %v2635 = vld [vmem:[%s2623 + $0x58] sm:$0xff]
    %v2636 = vld [vmem:[%s2623 + $0x60] sm:$0xff]
    %v2637 = vld [vmem:[%s2623 + $0x68] sm:$0xff]
    %v2638 = vld [vmem:[%s2623 + $0x70] sm:$0xff]
    %v2639 = vld [vmem:[%s2623 + $0x78] sm:$0xff]
    %2640 = vmatprep.subr.mxu0 0.0
    %2641 = vmatpush1.msra.mxu0 %v2624
    %2642 = vmatprep.subr.mxu0 0.0
    %2643 = vmatpush1.msra.mxu0 %v2625
    %2644 = vmatprep.subr.mxu0 0.0
    %2645 = vmatpush1.msra.mxu0 %v2626
    %2646 = vmatprep.subr.mxu0 0.0
    %2647 = vmatpush1.msra.mxu0 %v2627
    %2648 = vmatprep.subr.mxu0 0.0
    %2649 = vmatpush1.msra.mxu0 %v2628
    %2650 = vmatprep.subr.mxu0 0.0
    %2651 = vmatpush1.msra.mxu0 %v2629
    %2652 = vmatprep.subr.mxu0 0.0
    %2653 = vmatpush1.msra.mxu0 %v2630
    %2654 = vmatprep.subr.mxu0 0.0
    %2655 = vmatpush1.msra.mxu0 %v2631
    %2656 = vmatprep.subr.mxu0 0.0
    %2657 = vmatpush1.msra.mxu0 %v2632
    %2658 = vmatprep.subr.mxu0 0.0
    %2659 = vmatpush1.msra.mxu0 %v2633
    %2660 = vmatprep.subr.mxu0 0.0
    %2661 = vmatpush1.msra.mxu0 %v2634
    %2662 = vmatprep.subr.mxu0 0.0
    %2663 = vmatpush1.msra.mxu0 %v2635
    %2664 = vmatprep.subr.mxu0 0.0
    %2665 = vmatpush1.msra.mxu0 %v2636
    %2666 = vmatprep.subr.mxu0 0.0
    %2667 = vmatpush1.msra.mxu0 %v2637
    %2668 = vmatprep.subr.mxu0 0.0
    %2669 = vmatpush1.msra.mxu0 %v2638
    %2670 = vmatprep.subr.mxu0 0.0
    %2671 = vmatpush1.msra.mxu0 %v2639
    %2672 = vmatprep.subr.mxu0 0.0
    %2673 = vmatpush1.msra.mxu0 0.0
    %2674 = vmatprep.subr.mxu0 0.0
    %2675 = vmatpush1.msra.mxu0 0.0
    %2676 = vmatprep.subr.mxu0 0.0
    %2677 = vmatpush1.msra.mxu0 0.0
    %2678 = vmatprep.subr.mxu0 0.0
    %2679 = vmatpush1.msra.mxu0 0.0
    %2680 = vmatprep.subr.mxu0 0.0
    %2681 = vmatpush1.msra.mxu0 0.0
    %2682 = vmatprep.subr.mxu0 0.0
    %2683 = vmatpush1.msra.mxu0 0.0
    %2684 = vmatprep.subr.mxu0 0.0
    %2685 = vmatpush1.msra.mxu0 0.0
    %2686 = vmatprep.subr.mxu0 0.0
    %2687 = vmatpush1.msra.mxu0 0.0
    %2688 = vmatprep.subr.mxu0 0.0
    %2689 = vmatpush1.msra.mxu0 0.0
    %2690 = vmatprep.subr.mxu0 0.0
    %2691 = vmatpush1.msra.mxu0 0.0
    %2692 = vmatprep.subr.mxu0 0.0
    %2693 = vmatpush1.msra.mxu0 0.0
    %2694 = vmatprep.subr.mxu0 0.0
    %2695 = vmatpush1.msra.mxu0 0.0
    %2696 = vmatprep.subr.mxu0 0.0
    %2697 = vmatpush1.msra.mxu0 0.0
    %2698 = vmatprep.subr.mxu0 0.0
    %2699 = vmatpush1.msra.mxu0 0.0
    %2700 = vmatprep.subr.mxu0 0.0
    %2701 = vmatpush1.msra.mxu0 0.0
    %2702 = vmatprep.subr.mxu0 0.0
    %2703 = vmatpush1.msra.mxu0 0.0
    %2704 = vmatprep.mubr.f32.mxu0 0.0
    %2705 = vmatmul.mubr.f32.gmra.mrb[0].mxu0 %v2253
    %v2706 = vpop.f32.mrb[0].mxu0
    %v2707 = vadd.f32 0.0, %v2706
    %v2708 = vpop.f32.mrb[0].mxu0
    %2709 = vmatprep.mubr.f32.mxu0 0.0
    %2710 = vmatmul.mubr.f32.gmra.mrb[0].mxu0 %v2269
    %v2711 = vpop.f32.mrb[0].mxu0
    %v2712 = vadd.f32 0.0, %v2711
    %v2713 = vpop.f32.mrb[0].mxu0
    %2714 = vmatprep.mubr.f32.mxu0 0.0
    %2715 = vmatmul.mubr.f32.gmra.mrb[0].mxu0 %v2285
    %v2716 = vpop.f32.mrb[0].mxu0
    %v2717 = vadd.f32 0.0, %v2716
    %v2718 = vpop.f32.mrb[0].mxu0
    %2719 = vmatprep.mubr.f32.mxu0 0.0
    %2720 = vmatmul.mubr.f32.gmra.mrb[0].mxu0 %v2301
    %v2721 = vpop.f32.mrb[0].mxu0
    %v2722 = vadd.f32 0.0, %v2721
    %v2723 = vpop.f32.mrb[0].mxu0
    %2724 = vdwg.mxu0
    %v2725 = vadd.f32 %v2619, %v2707
    %v2726 = vadd.f32 %v2620, %v2712
    %v2727 = vadd.f32 %v2621, %v2717
    %v2728 = vadd.f32 %v2622, %v2722
    %s2729 = scalar_lea.vmem [#allocation5], 512
    %v2730 = vld [vmem:[%s2729] sm:$0xff]
    %v2731 = vld [vmem:[%s2729 + $0x8] sm:$0xff]
    %v2732 = vld [vmem:[%s2729 + $0x10] sm:$0xff]
    %v2733 = vld [vmem:[%s2729 + $0x18] sm:$0xff]
    %v2734 = vld [vmem:[%s2729 + $0x20] sm:$0xff]
    %v2735 = vld [vmem:[%s2729 + $0x28] sm:$0xff]
    %v2736 = vld [vmem:[%s2729 + $0x30] sm:$0xff]
    %v2737 = vld [vmem:[%s2729 + $0x38] sm:$0xff]
    %v2738 = vld [vmem:[%s2729 + $0x40] sm:$0xff]
    %v2739 = vld [vmem:[%s2729 + $0x48] sm:$0xff]
    %v2740 = vld [vmem:[%s2729 + $0x50] sm:$0xff]
    %v2741 = vld [vmem:[%s2729 + $0x58] sm:$0xff]
    %v2742 = vld [vmem:[%s2729 + $0x60] sm:$0xff]
    %v2743 = vld [vmem:[%s2729 + $0x68] sm:$0xff]
    %v2744 = vld [vmem:[%s2729 + $0x70] sm:$0xff]
    %v2745 = vld [vmem:[%s2729 + $0x78] sm:$0xff]
    %2746 = vmatprep.subr.mxu0 0.0
    %2747 = vmatpush1.msra.mxu0 %v2730
    %2748 = vmatprep.subr.mxu0 0.0
    %2749 = vmatpush1.msra.mxu0 %v2731
    %2750 = vmatprep.subr.mxu0 0.0
    %2751 = vmatpush1.msra.mxu0 %v2732
    %2752 = vmatprep.subr.mxu0 0.0
    %2753 = vmatpush1.msra.mxu0 %v2733
    %2754 = vmatprep.subr.mxu0 0.0
    %2755 = vmatpush1.msra.mxu0 %v2734
    %2756 = vmatprep.subr.mxu0 0.0
    %2757 = vmatpush1.msra.mxu0 %v2735
    %2758 = vmatprep.subr.mxu0 0.0
    %2759 = vmatpush1.msra.mxu0 %v2736
    %2760 = vmatprep.subr.mxu0 0.0
    %2761 = vmatpush1.msra.mxu0 %v2737
    %2762 = vmatprep.subr.mxu0 0.0
    %2763 = vmatpush1.msra.mxu0 %v2738
    %2764 = vmatprep.subr.mxu0 0.0
    %2765 = vmatpush1.msra.mxu0 %v2739
    %2766 = vmatprep.subr.mxu0 0.0
    %2767 = vmatpush1.msra.mxu0 %v2740
    %2768 = vmatprep.subr.mxu0 0.0
    %2769 = vmatpush1.msra.mxu0 %v2741
    %2770 = vmatprep.subr.mxu0 0.0
    %2771 = vmatpush1.msra.mxu0 %v2742
    %2772 = vmatprep.subr.mxu0 0.0
    %2773 = vmatpush1.msra.mxu0 %v2743
    %2774 = vmatprep.subr.mxu0 0.0
    %2775 = vmatpush1.msra.mxu0 %v2744
    %2776 = vmatprep.subr.mxu0 0.0
    %2777 = vmatpush1.msra.mxu0 %v2745
    %2778 = vmatprep.subr.mxu0 0.0
    %2779 = vmatpush1.msra.mxu0 0.0
    %2780 = vmatprep.subr.mxu0 0.0
    %2781 = vmatpush1.msra.mxu0 0.0
    %2782 = vmatprep.subr.mxu0 0.0
    %2783 = vmatpush1.msra.mxu0 0.0
    %2784 = vmatprep.subr.mxu0 0.0
    %2785 = vmatpush1.msra.mxu0 0.0
    %2786 = vmatprep.subr.mxu0 0.0
    %2787 = vmatpush1.msra.mxu0 0.0
    %2788 = vmatprep.subr.mxu0 0.0
    %2789 = vmatpush1.msra.mxu0 0.0
    %2790 = vmatprep.subr.mxu0 0.0
    %2791 = vmatpush1.msra.mxu0 0.0
    %2792 = vmatprep.subr.mxu0 0.0
    %2793 = vmatpush1.msra.mxu0 0.0
    %2794 = vmatprep.subr.mxu0 0.0
    %2795 = vmatpush1.msra.mxu0 0.0
    %2796 = vmatprep.subr.mxu0 0.0
    %2797 = vmatpush1.msra.mxu0 0.0
    %2798 = vmatprep.subr.mxu0 0.0
    %2799 = vmatpush1.msra.mxu0 0.0
    %2800 = vmatprep.subr.mxu0 0.0
    %2801 = vmatpush1.msra.mxu0 0.0
    %2802 = vmatprep.subr.mxu0 0.0
    %2803 = vmatpush1.msra.mxu0 0.0
    %2804 = vmatprep.subr.mxu0 0.0
    %2805 = vmatpush1.msra.mxu0 0.0
    %2806 = vmatprep.subr.mxu0 0.0
    %2807 = vmatpush1.msra.mxu0 0.0
    %2808 = vmatprep.subr.mxu0 0.0
    %2809 = vmatpush1.msra.mxu0 0.0
    %2810 = vmatprep.mubr.f32.mxu0 0.0
    %2811 = vmatmul.mubr.f32.gmra.mrb[0].mxu0 %v2254
    %v2812 = vpop.f32.mrb[0].mxu0
    %v2813 = vadd.f32 0.0, %v2812
    %v2814 = vpop.f32.mrb[0].mxu0
    %2815 = vmatprep.mubr.f32.mxu0 0.0
    %2816 = vmatmul.mubr.f32.gmra.mrb[0].mxu0 %v2270
    %v2817 = vpop.f32.mrb[0].mxu0
    %v2818 = vadd.f32 0.0, %v2817
    %v2819 = vpop.f32.mrb[0].mxu0
    %2820 = vmatprep.mubr.f32.mxu0 0.0
    %2821 = vmatmul.mubr.f32.gmra.mrb[0].mxu0 %v2286
    %v2822 = vpop.f32.mrb[0].mxu0
    %v2823 = vadd.f32 0.0, %v2822
    %v2824 = vpop.f32.mrb[0].mxu0
    %2825 = vmatprep.mubr.f32.mxu0 0.0
    %2826 = vmatmul.mubr.f32.gmra.mrb[0].mxu0 %v2302
    %v2827 = vpop.f32.mrb[0].mxu0
    %v2828 = vadd.f32 0.0, %v2827
    %v2829 = vpop.f32.mrb[0].mxu0
    %2830 = vdwg.mxu0
    %v2831 = vadd.f32 %v2725, %v2813
    %v2832 = vadd.f32 %v2726, %v2818
    %v2833 = vadd.f32 %v2727, %v2823
    %v2834 = vadd.f32 %v2728, %v2828
    %s2835 = scalar_lea.vmem [#allocation5], 640
    %v2836 = vld [vmem:[%s2835] sm:$0xff]
    %v2837 = vld [vmem:[%s2835 + $0x8] sm:$0xff]
    %v2838 = vld [vmem:[%s2835 + $0x10] sm:$0xff]
    %v2839 = vld [vmem:[%s2835 + $0x18] sm:$0xff]
    %v2840 = vld [vmem:[%s2835 + $0x20] sm:$0xff]
    %v2841 = vld [vmem:[%s2835 + $0x28] sm:$0xff]
    %v2842 = vld [vmem:[%s2835 + $0x30] sm:$0xff]
    %v2843 = vld [vmem:[%s2835 + $0x38] sm:$0xff]
    %v2844 = vld [vmem:[%s2835 + $0x40] sm:$0xff]
    %v2845 = vld [vmem:[%s2835 + $0x48] sm:$0xff]
    %v2846 = vld [vmem:[%s2835 + $0x50] sm:$0xff]
    %v2847 = vld [vmem:[%s2835 + $0x58] sm:$0xff]
    %v2848 = vld [vmem:[%s2835 + $0x60] sm:$0xff]
    %v2849 = vld [vmem:[%s2835 + $0x68] sm:$0xff]
    %v2850 = vld [vmem:[%s2835 + $0x70] sm:$0xff]
    %v2851 = vld [vmem:[%s2835 + $0x78] sm:$0xff]
    %2852 = vmatprep.subr.mxu0 0.0
    %2853 = vmatpush1.msra.mxu0 %v2836
    %2854 = vmatprep.subr.mxu0 0.0
    %2855 = vmatpush1.msra.mxu0 %v2837
    %2856 = vmatprep.subr.mxu0 0.0
    %2857 = vmatpush1.msra.mxu0 %v2838
    %2858 = vmatprep.subr.mxu0 0.0
    %2859 = vmatpush1.msra.mxu0 %v2839
    %2860 = vmatprep.subr.mxu0 0.0
    %2861 = vmatpush1.msra.mxu0 %v2840
    %2862 = vmatprep.subr.mxu0 0.0
    %2863 = vmatpush1.msra.mxu0 %v2841
    %2864 = vmatprep.subr.mxu0 0.0
    %2865 = vmatpush1.msra.mxu0 %v2842
    %2866 = vmatprep.subr.mxu0 0.0
    %2867 = vmatpush1.msra.mxu0 %v2843
    %2868 = vmatprep.subr.mxu0 0.0
    %2869 = vmatpush1.msra.mxu0 %v2844
    %2870 = vmatprep.subr.mxu0 0.0
    %2871 = vmatpush1.msra.mxu0 %v2845
    %2872 = vmatprep.subr.mxu0 0.0
    %2873 = vmatpush1.msra.mxu0 %v2846
    %2874 = vmatprep.subr.mxu0 0.0
    %2875 = vmatpush1.msra.mxu0 %v2847
    %2876 = vmatprep.subr.mxu0 0.0
    %2877 = vmatpush1.msra.mxu0 %v2848
    %2878 = vmatprep.subr.mxu0 0.0
    %2879 = vmatpush1.msra.mxu0 %v2849
    %2880 = vmatprep.subr.mxu0 0.0
    %2881 = vmatpush1.msra.mxu0 %v2850
    %2882 = vmatprep.subr.mxu0 0.0
    %2883 = vmatpush1.msra.mxu0 %v2851
    %2884 = vmatprep.subr.mxu0 0.0
    %2885 = vmatpush1.msra.mxu0 0.0
    %2886 = vmatprep.subr.mxu0 0.0
    %2887 = vmatpush1.msra.mxu0 0.0
    %2888 = vmatprep.subr.mxu0 0.0
    %2889 = vmatpush1.msra.mxu0 0.0
    %2890 = vmatprep.subr.mxu0 0.0
    %2891 = vmatpush1.msra.mxu0 0.0
    %2892 = vmatprep.subr.mxu0 0.0
    %2893 = vmatpush1.msra.mxu0 0.0
    %2894 = vmatprep.subr.mxu0 0.0
    %2895 = vmatpush1.msra.mxu0 0.0
    %2896 = vmatprep.subr.mxu0 0.0
    %2897 = vmatpush1.msra.mxu0 0.0
    %2898 = vmatprep.subr.mxu0 0.0
    %2899 = vmatpush1.msra.mxu0 0.0
    %2900 = vmatprep.subr.mxu0 0.0
    %2901 = vmatpush1.msra.mxu0 0.0
    %2902 = vmatprep.subr.mxu0 0.0
    %2903 = vmatpush1.msra.mxu0 0.0
    %2904 = vmatprep.subr.mxu0 0.0
    %2905 = vmatpush1.msra.mxu0 0.0
    %2906 = vmatprep.subr.mxu0 0.0
    %2907 = vmatpush1.msra.mxu0 0.0
    %2908 = vmatprep.subr.mxu0 0.0
    %2909 = vmatpush1.msra.mxu0 0.0
    %2910 = vmatprep.subr.mxu0 0.0
    %2911 = vmatpush1.msra.mxu0 0.0
    %2912 = vmatprep.subr.mxu0 0.0
    %2913 = vmatpush1.msra.mxu0 0.0
    %2914 = vmatprep.subr.mxu0 0.0
    %2915 = vmatpush1.msra.mxu0 0.0
    %2916 = vmatprep.mubr.f32.mxu0 0.0
    %2917 = vmatmul.mubr.f32.gmra.mrb[0].mxu0 %v2255
    %v2918 = vpop.f32.mrb[0].mxu0
    %v2919 = vadd.f32 0.0, %v2918
    %v2920 = vpop.f32.mrb[0].mxu0
    %2921 = vmatprep.mubr.f32.mxu0 0.0
    %2922 = vmatmul.mubr.f32.gmra.mrb[0].mxu0 %v2271
    %v2923 = vpop.f32.mrb[0].mxu0
    %v2924 = vadd.f32 0.0, %v2923
    %v2925 = vpop.f32.mrb[0].mxu0
    %2926 = vmatprep.mubr.f32.mxu0 0.0
    %2927 = vmatmul.mubr.f32.gmra.mrb[0].mxu0 %v2287
    %v2928 = vpop.f32.mrb[0].mxu0
    %v2929 = vadd.f32 0.0, %v2928
    %v2930 = vpop.f32.mrb[0].mxu0
    %2931 = vmatprep.mubr.f32.mxu0 0.0
    %2932 = vmatmul.mubr.f32.gmra.mrb[0].mxu0 %v2303
    %v2933 = vpop.f32.mrb[0].mxu0
    %v2934 = vadd.f32 0.0, %v2933
    %v2935 = vpop.f32.mrb[0].mxu0
    %2936 = vdwg.mxu0
    %v2937 = vadd.f32 %v2831, %v2919
    %v2938 = vadd.f32 %v2832, %v2924
    %v2939 = vadd.f32 %v2833, %v2929
    %v2940 = vadd.f32 %v2834, %v2934
    %s2941 = scalar_lea.vmem [#allocation5], 768
    %v2942 = vld [vmem:[%s2941] sm:$0xff]
    %v2943 = vld [vmem:[%s2941 + $0x8] sm:$0xff]
    %v2944 = vld [vmem:[%s2941 + $0x10] sm:$0xff]
    %v2945 = vld [vmem:[%s2941 + $0x18] sm:$0xff]
    %v2946 = vld [vmem:[%s2941 + $0x20] sm:$0xff]
    %v2947 = vld [vmem:[%s2941 + $0x28] sm:$0xff]
    %v2948 = vld [vmem:[%s2941 + $0x30] sm:$0xff]
    %v2949 = vld [vmem:[%s2941 + $0x38] sm:$0xff]
    %v2950 = vld [vmem:[%s2941 + $0x40] sm:$0xff]
    %v2951 = vld [vmem:[%s2941 + $0x48] sm:$0xff]
    %v2952 = vld [vmem:[%s2941 + $0x50] sm:$0xff]
    %v2953 = vld [vmem:[%s2941 + $0x58] sm:$0xff]
    %v2954 = vld [vmem:[%s2941 + $0x60] sm:$0xff]
    %v2955 = vld [vmem:[%s2941 + $0x68] sm:$0xff]
    %v2956 = vld [vmem:[%s2941 + $0x70] sm:$0xff]
    %v2957 = vld [vmem:[%s2941 + $0x78] sm:$0xff]
    %2958 = vmatprep.subr.mxu0 0.0
    %2959 = vmatpush1.msra.mxu0 %v2942
    %2960 = vmatprep.subr.mxu0 0.0
    %2961 = vmatpush1.msra.mxu0 %v2943
    %2962 = vmatprep.subr.mxu0 0.0
    %2963 = vmatpush1.msra.mxu0 %v2944
    %2964 = vmatprep.subr.mxu0 0.0
    %2965 = vmatpush1.msra.mxu0 %v2945
    %2966 = vmatprep.subr.mxu0 0.0
    %2967 = vmatpush1.msra.mxu0 %v2946
    %2968 = vmatprep.subr.mxu0 0.0
    %2969 = vmatpush1.msra.mxu0 %v2947
    %2970 = vmatprep.subr.mxu0 0.0
    %2971 = vmatpush1.msra.mxu0 %v2948
    %2972 = vmatprep.subr.mxu0 0.0
    %2973 = vmatpush1.msra.mxu0 %v2949
    %2974 = vmatprep.subr.mxu0 0.0
    %2975 = vmatpush1.msra.mxu0 %v2950
    %2976 = vmatprep.subr.mxu0 0.0
    %2977 = vmatpush1.msra.mxu0 %v2951
    %2978 = vmatprep.subr.mxu0 0.0
    %2979 = vmatpush1.msra.mxu0 %v2952
    %2980 = vmatprep.subr.mxu0 0.0
    %2981 = vmatpush1.msra.mxu0 %v2953
    %2982 = vmatprep.subr.mxu0 0.0
    %2983 = vmatpush1.msra.mxu0 %v2954
    %2984 = vmatprep.subr.mxu0 0.0
    %2985 = vmatpush1.msra.mxu0 %v2955
    %2986 = vmatprep.subr.mxu0 0.0
    %2987 = vmatpush1.msra.mxu0 %v2956
    %2988 = vmatprep.subr.mxu0 0.0
    %2989 = vmatpush1.msra.mxu0 %v2957
    %2990 = vmatprep.subr.mxu0 0.0
    %2991 = vmatpush1.msra.mxu0 0.0
    %2992 = vmatprep.subr.mxu0 0.0
    %2993 = vmatpush1.msra.mxu0 0.0
    %2994 = vmatprep.subr.mxu0 0.0
    %2995 = vmatpush1.msra.mxu0 0.0
    %2996 = vmatprep.subr.mxu0 0.0
    %2997 = vmatpush1.msra.mxu0 0.0
    %2998 = vmatprep.subr.mxu0 0.0
    %2999 = vmatpush1.msra.mxu0 0.0
    %3000 = vmatprep.subr.mxu0 0.0
    %3001 = vmatpush1.msra.mxu0 0.0
    %3002 = vmatprep.subr.mxu0 0.0
    %3003 = vmatpush1.msra.mxu0 0.0
    %3004 = vmatprep.subr.mxu0 0.0
    %3005 = vmatpush1.msra.mxu0 0.0
    %3006 = vmatprep.subr.mxu0 0.0
    %3007 = vmatpush1.msra.mxu0 0.0
    %3008 = vmatprep.subr.mxu0 0.0
    %3009 = vmatpush1.msra.mxu0 0.0
    %3010 = vmatprep.subr.mxu0 0.0
    %3011 = vmatpush1.msra.mxu0 0.0
    %3012 = vmatprep.subr.mxu0 0.0
    %3013 = vmatpush1.msra.mxu0 0.0
    %3014 = vmatprep.subr.mxu0 0.0
    %3015 = vmatpush1.msra.mxu0 0.0
    %3016 = vmatprep.subr.mxu0 0.0
    %3017 = vmatpush1.msra.mxu0 0.0
    %3018 = vmatprep.subr.mxu0 0.0
    %3019 = vmatpush1.msra.mxu0 0.0
    %3020 = vmatprep.subr.mxu0 0.0
    %3021 = vmatpush1.msra.mxu0 0.0
    %3022 = vmatprep.mubr.f32.mxu0 0.0
    %3023 = vmatmul.mubr.f32.gmra.mrb[0].mxu0 %v2256
    %v3024 = vpop.f32.mrb[0].mxu0
    %v3025 = vadd.f32 0.0, %v3024
    %v3026 = vpop.f32.mrb[0].mxu0
    %3027 = vmatprep.mubr.f32.mxu0 0.0
    %3028 = vmatmul.mubr.f32.gmra.mrb[0].mxu0 %v2272
    %v3029 = vpop.f32.mrb[0].mxu0
    %v3030 = vadd.f32 0.0, %v3029
    %v3031 = vpop.f32.mrb[0].mxu0
    %3032 = vmatprep.mubr.f32.mxu0 0.0
    %3033 = vmatmul.mubr.f32.gmra.mrb[0].mxu0 %v2288
    %v3034 = vpop.f32.mrb[0].mxu0
    %v3035 = vadd.f32 0.0, %v3034
    %v3036 = vpop.f32.mrb[0].mxu0
    %3037 = vmatprep.mubr.f32.mxu0 0.0
    %3038 = vmatmul.mubr.f32.gmra.mrb[0].mxu0 %v2304
    %v3039 = vpop.f32.mrb[0].mxu0
    %v3040 = vadd.f32 0.0, %v3039
    %v3041 = vpop.f32.mrb[0].mxu0
    %3042 = vdwg.mxu0
    %v3043 = vadd.f32 %v2937, %v3025
    %v3044 = vadd.f32 %v2938, %v3030
    %v3045 = vadd.f32 %v2939, %v3035
    %v3046 = vadd.f32 %v2940, %v3040
    %s3047 = scalar_lea.vmem [#allocation5], 896
    %v3048 = vld [vmem:[%s3047] sm:$0xff]
    %v3049 = vld [vmem:[%s3047 + $0x8] sm:$0xff]
    %v3050 = vld [vmem:[%s3047 + $0x10] sm:$0xff]
    %v3051 = vld [vmem:[%s3047 + $0x18] sm:$0xff]
    %v3052 = vld [vmem:[%s3047 + $0x20] sm:$0xff]
    %v3053 = vld [vmem:[%s3047 + $0x28] sm:$0xff]
    %v3054 = vld [vmem:[%s3047 + $0x30] sm:$0xff]
    %v3055 = vld [vmem:[%s3047 + $0x38] sm:$0xff]
    %v3056 = vld [vmem:[%s3047 + $0x40] sm:$0xff]
    %v3057 = vld [vmem:[%s3047 + $0x48] sm:$0xff]
    %v3058 = vld [vmem:[%s3047 + $0x50] sm:$0xff]
    %v3059 = vld [vmem:[%s3047 + $0x58] sm:$0xff]
    %v3060 = vld [vmem:[%s3047 + $0x60] sm:$0xff]
    %v3061 = vld [vmem:[%s3047 + $0x68] sm:$0xff]
    %v3062 = vld [vmem:[%s3047 + $0x70] sm:$0xff]
    %v3063 = vld [vmem:[%s3047 + $0x78] sm:$0xff]
    %3064 = vmatprep.subr.mxu0 0.0
    %3065 = vmatpush1.msra.mxu0 %v3048
    %3066 = vmatprep.subr.mxu0 0.0
    %3067 = vmatpush1.msra.mxu0 %v3049
    %3068 = vmatprep.subr.mxu0 0.0
    %3069 = vmatpush1.msra.mxu0 %v3050
    %3070 = vmatprep.subr.mxu0 0.0
    %3071 = vmatpush1.msra.mxu0 %v3051
    %3072 = vmatprep.subr.mxu0 0.0
    %3073 = vmatpush1.msra.mxu0 %v3052
    %3074 = vmatprep.subr.mxu0 0.0
    %3075 = vmatpush1.msra.mxu0 %v3053
    %3076 = vmatprep.subr.mxu0 0.0
    %3077 = vmatpush1.msra.mxu0 %v3054
    %3078 = vmatprep.subr.mxu0 0.0
    %3079 = vmatpush1.msra.mxu0 %v3055
    %3080 = vmatprep.subr.mxu0 0.0
    %3081 = vmatpush1.msra.mxu0 %v3056
    %3082 = vmatprep.subr.mxu0 0.0
    %3083 = vmatpush1.msra.mxu0 %v3057
    %3084 = vmatprep.subr.mxu0 0.0
    %3085 = vmatpush1.msra.mxu0 %v3058
    %3086 = vmatprep.subr.mxu0 0.0
    %3087 = vmatpush1.msra.mxu0 %v3059
    %3088 = vmatprep.subr.mxu0 0.0
    %3089 = vmatpush1.msra.mxu0 %v3060
    %3090 = vmatprep.subr.mxu0 0.0
    %3091 = vmatpush1.msra.mxu0 %v3061
    %3092 = vmatprep.subr.mxu0 0.0
    %3093 = vmatpush1.msra.mxu0 %v3062
    %3094 = vmatprep.subr.mxu0 0.0
    %3095 = vmatpush1.msra.mxu0 %v3063
    %3096 = vmatprep.subr.mxu0 0.0
    %3097 = vmatpush1.msra.mxu0 0.0
    %3098 = vmatprep.subr.mxu0 0.0
    %3099 = vmatpush1.msra.mxu0 0.0
    %3100 = vmatprep.subr.mxu0 0.0
    %3101 = vmatpush1.msra.mxu0 0.0
    %3102 = vmatprep.subr.mxu0 0.0
    %3103 = vmatpush1.msra.mxu0 0.0
    %3104 = vmatprep.subr.mxu0 0.0
    %3105 = vmatpush1.msra.mxu0 0.0
    %3106 = vmatprep.subr.mxu0 0.0
    %3107 = vmatpush1.msra.mxu0 0.0
    %3108 = vmatprep.subr.mxu0 0.0
    %3109 = vmatpush1.msra.mxu0 0.0
    %3110 = vmatprep.subr.mxu0 0.0
    %3111 = vmatpush1.msra.mxu0 0.0
    %3112 = vmatprep.subr.mxu0 0.0
    %3113 = vmatpush1.msra.mxu0 0.0
    %3114 = vmatprep.subr.mxu0 0.0
    %3115 = vmatpush1.msra.mxu0 0.0
    %3116 = vmatprep.subr.mxu0 0.0
    %3117 = vmatpush1.msra.mxu0 0.0
    %3118 = vmatprep.subr.mxu0 0.0
    %3119 = vmatpush1.msra.mxu0 0.0
    %3120 = vmatprep.subr.mxu0 0.0
    %3121 = vmatpush1.msra.mxu0 0.0
    %3122 = vmatprep.subr.mxu0 0.0
    %3123 = vmatpush1.msra.mxu0 0.0
    %3124 = vmatprep.subr.mxu0 0.0
    %3125 = vmatpush1.msra.mxu0 0.0
    %3126 = vmatprep.subr.mxu0 0.0
    %3127 = vmatpush1.msra.mxu0 0.0
    %3128 = vmatprep.mubr.f32.mxu0 0.0
    %3129 = vmatmul.mubr.f32.gmra.mrb[0].mxu0 %v2257
    %v3130 = vpop.f32.mrb[0].mxu0
    %v3131 = vadd.f32 0.0, %v3130
    %v3132 = vpop.f32.mrb[0].mxu0
    %3133 = vmatprep.mubr.f32.mxu0 0.0
    %3134 = vmatmul.mubr.f32.gmra.mrb[0].mxu0 %v2273
    %v3135 = vpop.f32.mrb[0].mxu0
    %v3136 = vadd.f32 0.0, %v3135
    %v3137 = vpop.f32.mrb[0].mxu0
    %3138 = vmatprep.mubr.f32.mxu0 0.0
    %3139 = vmatmul.mubr.f32.gmra.mrb[0].mxu0 %v2289
    %v3140 = vpop.f32.mrb[0].mxu0
    %v3141 = vadd.f32 0.0, %v3140
    %v3142 = vpop.f32.mrb[0].mxu0
    %3143 = vmatprep.mubr.f32.mxu0 0.0
    %3144 = vmatmul.mubr.f32.gmra.mrb[0].mxu0 %v2305
    %v3145 = vpop.f32.mrb[0].mxu0
    %v3146 = vadd.f32 0.0, %v3145
    %v3147 = vpop.f32.mrb[0].mxu0
    %3148 = vdwg.mxu0
    %v3149 = vadd.f32 %v3043, %v3131
    %v3150 = vadd.f32 %v3044, %v3136
    %v3151 = vadd.f32 %v3045, %v3141
    %v3152 = vadd.f32 %v3046, %v3146
    %s3153 = scalar_lea.vmem [#allocation5], 1024
    %v3154 = vld [vmem:[%s3153] sm:$0xff]
    %v3155 = vld [vmem:[%s3153 + $0x8] sm:$0xff]
    %v3156 = vld [vmem:[%s3153 + $0x10] sm:$0xff]
    %v3157 = vld [vmem:[%s3153 + $0x18] sm:$0xff]
    %v3158 = vld [vmem:[%s3153 + $0x20] sm:$0xff]
    %v3159 = vld [vmem:[%s3153 + $0x28] sm:$0xff]
    %v3160 = vld [vmem:[%s3153 + $0x30] sm:$0xff]
    %v3161 = vld [vmem:[%s3153 + $0x38] sm:$0xff]
    %v3162 = vld [vmem:[%s3153 + $0x40] sm:$0xff]
    %v3163 = vld [vmem:[%s3153 + $0x48] sm:$0xff]
    %v3164 = vld [vmem:[%s3153 + $0x50] sm:$0xff]
    %v3165 = vld [vmem:[%s3153 + $0x58] sm:$0xff]
    %v3166 = vld [vmem:[%s3153 + $0x60] sm:$0xff]
    %v3167 = vld [vmem:[%s3153 + $0x68] sm:$0xff]
    %v3168 = vld [vmem:[%s3153 + $0x70] sm:$0xff]
    %v3169 = vld [vmem:[%s3153 + $0x78] sm:$0xff]
    %3170 = vmatprep.subr.mxu0 0.0
    %3171 = vmatpush1.msra.mxu0 %v3154
    %3172 = vmatprep.subr.mxu0 0.0
    %3173 = vmatpush1.msra.mxu0 %v3155
    %3174 = vmatprep.subr.mxu0 0.0
    %3175 = vmatpush1.msra.mxu0 %v3156
    %3176 = vmatprep.subr.mxu0 0.0
    %3177 = vmatpush1.msra.mxu0 %v3157
    %3178 = vmatprep.subr.mxu0 0.0
    %3179 = vmatpush1.msra.mxu0 %v3158
    %3180 = vmatprep.subr.mxu0 0.0
    %3181 = vmatpush1.msra.mxu0 %v3159
    %3182 = vmatprep.subr.mxu0 0.0
    %3183 = vmatpush1.msra.mxu0 %v3160
    %3184 = vmatprep.subr.mxu0 0.0
    %3185 = vmatpush1.msra.mxu0 %v3161
    %3186 = vmatprep.subr.mxu0 0.0
    %3187 = vmatpush1.msra.mxu0 %v3162
    %3188 = vmatprep.subr.mxu0 0.0
    %3189 = vmatpush1.msra.mxu0 %v3163
    %3190 = vmatprep.subr.mxu0 0.0
    %3191 = vmatpush1.msra.mxu0 %v3164
    %3192 = vmatprep.subr.mxu0 0.0
    %3193 = vmatpush1.msra.mxu0 %v3165
    %3194 = vmatprep.subr.mxu0 0.0
    %3195 = vmatpush1.msra.mxu0 %v3166
    %3196 = vmatprep.subr.mxu0 0.0
    %3197 = vmatpush1.msra.mxu0 %v3167
    %3198 = vmatprep.subr.mxu0 0.0
    %3199 = vmatpush1.msra.mxu0 %v3168
    %3200 = vmatprep.subr.mxu0 0.0
    %3201 = vmatpush1.msra.mxu0 %v3169
    %3202 = vmatprep.subr.mxu0 0.0
    %3203 = vmatpush1.msra.mxu0 0.0
    %3204 = vmatprep.subr.mxu0 0.0
    %3205 = vmatpush1.msra.mxu0 0.0
    %3206 = vmatprep.subr.mxu0 0.0
    %3207 = vmatpush1.msra.mxu0 0.0
    %3208 = vmatprep.subr.mxu0 0.0
    %3209 = vmatpush1.msra.mxu0 0.0
    %3210 = vmatprep.subr.mxu0 0.0
    %3211 = vmatpush1.msra.mxu0 0.0
    %3212 = vmatprep.subr.mxu0 0.0
    %3213 = vmatpush1.msra.mxu0 0.0
    %3214 = vmatprep.subr.mxu0 0.0
    %3215 = vmatpush1.msra.mxu0 0.0
    %3216 = vmatprep.subr.mxu0 0.0
    %3217 = vmatpush1.msra.mxu0 0.0
    %3218 = vmatprep.subr.mxu0 0.0
    %3219 = vmatpush1.msra.mxu0 0.0
    %3220 = vmatprep.subr.mxu0 0.0
    %3221 = vmatpush1.msra.mxu0 0.0
    %3222 = vmatprep.subr.mxu0 0.0
    %3223 = vmatpush1.msra.mxu0 0.0
    %3224 = vmatprep.subr.mxu0 0.0
    %3225 = vmatpush1.msra.mxu0 0.0
    %3226 = vmatprep.subr.mxu0 0.0
    %3227 = vmatpush1.msra.mxu0 0.0
    %3228 = vmatprep.subr.mxu0 0.0
    %3229 = vmatpush1.msra.mxu0 0.0
    %3230 = vmatprep.subr.mxu0 0.0
    %3231 = vmatpush1.msra.mxu0 0.0
    %3232 = vmatprep.subr.mxu0 0.0
    %3233 = vmatpush1.msra.mxu0 0.0
    %3234 = vmatprep.mubr.f32.mxu0 0.0
    %3235 = vmatmul.mubr.f32.gmra.mrb[0].mxu0 %v2258
    %v3236 = vpop.f32.mrb[0].mxu0
    %v3237 = vadd.f32 0.0, %v3236
    %v3238 = vpop.f32.mrb[0].mxu0
    %3239 = vmatprep.mubr.f32.mxu0 0.0
    %3240 = vmatmul.mubr.f32.gmra.mrb[0].mxu0 %v2274
    %v3241 = vpop.f32.mrb[0].mxu0
    %v3242 = vadd.f32 0.0, %v3241
    %v3243 = vpop.f32.mrb[0].mxu0
    %3244 = vmatprep.mubr.f32.mxu0 0.0
    %3245 = vmatmul.mubr.f32.gmra.mrb[0].mxu0 %v2290
    %v3246 = vpop.f32.mrb[0].mxu0
    %v3247 = vadd.f32 0.0, %v3246
    %v3248 = vpop.f32.mrb[0].mxu0
    %3249 = vmatprep.mubr.f32.mxu0 0.0
    %3250 = vmatmul.mubr.f32.gmra.mrb[0].mxu0 %v2306
    %v3251 = vpop.f32.mrb[0].mxu0
    %v3252 = vadd.f32 0.0, %v3251
    %v3253 = vpop.f32.mrb[0].mxu0
    %3254 = vdwg.mxu0
    %v3255 = vadd.f32 %v3149, %v3237
    %v3256 = vadd.f32 %v3150, %v3242
    %v3257 = vadd.f32 %v3151, %v3247
    %v3258 = vadd.f32 %v3152, %v3252
    %s3259 = scalar_lea.vmem [#allocation5], 1152
    %v3260 = vld [vmem:[%s3259] sm:$0xff]
    %v3261 = vld [vmem:[%s3259 + $0x8] sm:$0xff]
    %v3262 = vld [vmem:[%s3259 + $0x10] sm:$0xff]
    %v3263 = vld [vmem:[%s3259 + $0x18] sm:$0xff]
    %v3264 = vld [vmem:[%s3259 + $0x20] sm:$0xff]
    %v3265 = vld [vmem:[%s3259 + $0x28] sm:$0xff]
    %v3266 = vld [vmem:[%s3259 + $0x30] sm:$0xff]
    %v3267 = vld [vmem:[%s3259 + $0x38] sm:$0xff]
    %v3268 = vld [vmem:[%s3259 + $0x40] sm:$0xff]
    %v3269 = vld [vmem:[%s3259 + $0x48] sm:$0xff]
    %v3270 = vld [vmem:[%s3259 + $0x50] sm:$0xff]
    %v3271 = vld [vmem:[%s3259 + $0x58] sm:$0xff]
    %v3272 = vld [vmem:[%s3259 + $0x60] sm:$0xff]
    %v3273 = vld [vmem:[%s3259 + $0x68] sm:$0xff]
    %v3274 = vld [vmem:[%s3259 + $0x70] sm:$0xff]
    %v3275 = vld [vmem:[%s3259 + $0x78] sm:$0xff]
    %3276 = vmatprep.subr.mxu0 0.0
    %3277 = vmatpush1.msra.mxu0 %v3260
    %3278 = vmatprep.subr.mxu0 0.0
    %3279 = vmatpush1.msra.mxu0 %v3261
    %3280 = vmatprep.subr.mxu0 0.0
    %3281 = vmatpush1.msra.mxu0 %v3262
    %3282 = vmatprep.subr.mxu0 0.0
    %3283 = vmatpush1.msra.mxu0 %v3263
    %3284 = vmatprep.subr.mxu0 0.0
    %3285 = vmatpush1.msra.mxu0 %v3264
    %3286 = vmatprep.subr.mxu0 0.0
    %3287 = vmatpush1.msra.mxu0 %v3265
    %3288 = vmatprep.subr.mxu0 0.0
    %3289 = vmatpush1.msra.mxu0 %v3266
    %3290 = vmatprep.subr.mxu0 0.0
    %3291 = vmatpush1.msra.mxu0 %v3267
    %3292 = vmatprep.subr.mxu0 0.0
    %3293 = vmatpush1.msra.mxu0 %v3268
    %3294 = vmatprep.subr.mxu0 0.0
    %3295 = vmatpush1.msra.mxu0 %v3269
    %3296 = vmatprep.subr.mxu0 0.0
    %3297 = vmatpush1.msra.mxu0 %v3270
    %3298 = vmatprep.subr.mxu0 0.0
    %3299 = vmatpush1.msra.mxu0 %v3271
    %3300 = vmatprep.subr.mxu0 0.0
    %3301 = vmatpush1.msra.mxu0 %v3272
    %3302 = vmatprep.subr.mxu0 0.0
    %3303 = vmatpush1.msra.mxu0 %v3273
    %3304 = vmatprep.subr.mxu0 0.0
    %3305 = vmatpush1.msra.mxu0 %v3274
    %3306 = vmatprep.subr.mxu0 0.0
    %3307 = vmatpush1.msra.mxu0 %v3275
    %3308 = vmatprep.subr.mxu0 0.0
    %3309 = vmatpush1.msra.mxu0 0.0
    %3310 = vmatprep.subr.mxu0 0.0
    %3311 = vmatpush1.msra.mxu0 0.0
    %3312 = vmatprep.subr.mxu0 0.0
    %3313 = vmatpush1.msra.mxu0 0.0
    %3314 = vmatprep.subr.mxu0 0.0
    %3315 = vmatpush1.msra.mxu0 0.0
    %3316 = vmatprep.subr.mxu0 0.0
    %3317 = vmatpush1.msra.mxu0 0.0
    %3318 = vmatprep.subr.mxu0 0.0
    %3319 = vmatpush1.msra.mxu0 0.0
    %3320 = vmatprep.subr.mxu0 0.0
    %3321 = vmatpush1.msra.mxu0 0.0
    %3322 = vmatprep.subr.mxu0 0.0
    %3323 = vmatpush1.msra.mxu0 0.0
    %3324 = vmatprep.subr.mxu0 0.0
    %3325 = vmatpush1.msra.mxu0 0.0
    %3326 = vmatprep.subr.mxu0 0.0
    %3327 = vmatpush1.msra.mxu0 0.0
    %3328 = vmatprep.subr.mxu0 0.0
    %3329 = vmatpush1.msra.mxu0 0.0
    %3330 = vmatprep.subr.mxu0 0.0
    %3331 = vmatpush1.msra.mxu0 0.0
    %3332 = vmatprep.subr.mxu0 0.0
    %3333 = vmatpush1.msra.mxu0 0.0
    %3334 = vmatprep.subr.mxu0 0.0
    %3335 = vmatpush1.msra.mxu0 0.0
    %3336 = vmatprep.subr.mxu0 0.0
    %3337 = vmatpush1.msra.mxu0 0.0
    %3338 = vmatprep.subr.mxu0 0.0
    %3339 = vmatpush1.msra.mxu0 0.0
    %3340 = vmatprep.mubr.f32.mxu0 0.0
    %3341 = vmatmul.mubr.f32.gmra.mrb[0].mxu0 %v2259
    %v3342 = vpop.f32.mrb[0].mxu0
    %v3343 = vadd.f32 0.0, %v3342
    %v3344 = vpop.f32.mrb[0].mxu0
    %3345 = vmatprep.mubr.f32.mxu0 0.0
    %3346 = vmatmul.mubr.f32.gmra.mrb[0].mxu0 %v2275
    %v3347 = vpop.f32.mrb[0].mxu0
    %v3348 = vadd.f32 0.0, %v3347
    %v3349 = vpop.f32.mrb[0].mxu0
    %3350 = vmatprep.mubr.f32.mxu0 0.0
    %3351 = vmatmul.mubr.f32.gmra.mrb[0].mxu0 %v2291
    %v3352 = vpop.f32.mrb[0].mxu0
    %v3353 = vadd.f32 0.0, %v3352
    %v3354 = vpop.f32.mrb[0].mxu0
    %3355 = vmatprep.mubr.f32.mxu0 0.0
    %3356 = vmatmul.mubr.f32.gmra.mrb[0].mxu0 %v2307
    %v3357 = vpop.f32.mrb[0].mxu0
    %v3358 = vadd.f32 0.0, %v3357
    %v3359 = vpop.f32.mrb[0].mxu0
    %3360 = vdwg.mxu0
    %v3361 = vadd.f32 %v3255, %v3343
    %v3362 = vadd.f32 %v3256, %v3348
    %v3363 = vadd.f32 %v3257, %v3353
    %v3364 = vadd.f32 %v3258, %v3358
    %s3365 = scalar_lea.vmem [#allocation5], 1280
    %v3366 = vld [vmem:[%s3365] sm:$0xff]
    %v3367 = vld [vmem:[%s3365 + $0x8] sm:$0xff]
    %v3368 = vld [vmem:[%s3365 + $0x10] sm:$0xff]
    %v3369 = vld [vmem:[%s3365 + $0x18] sm:$0xff]
    %v3370 = vld [vmem:[%s3365 + $0x20] sm:$0xff]
    %v3371 = vld [vmem:[%s3365 + $0x28] sm:$0xff]
    %v3372 = vld [vmem:[%s3365 + $0x30] sm:$0xff]
    %v3373 = vld [vmem:[%s3365 + $0x38] sm:$0xff]
    %v3374 = vld [vmem:[%s3365 + $0x40] sm:$0xff]
    %v3375 = vld [vmem:[%s3365 + $0x48] sm:$0xff]
    %v3376 = vld [vmem:[%s3365 + $0x50] sm:$0xff]
    %v3377 = vld [vmem:[%s3365 + $0x58] sm:$0xff]
    %v3378 = vld [vmem:[%s3365 + $0x60] sm:$0xff]
    %v3379 = vld [vmem:[%s3365 + $0x68] sm:$0xff]
    %v3380 = vld [vmem:[%s3365 + $0x70] sm:$0xff]
    %v3381 = vld [vmem:[%s3365 + $0x78] sm:$0xff]
    %3382 = vmatprep.subr.mxu0 0.0
    %3383 = vmatpush1.msra.mxu0 %v3366
    %3384 = vmatprep.subr.mxu0 0.0
    %3385 = vmatpush1.msra.mxu0 %v3367
    %3386 = vmatprep.subr.mxu0 0.0
    %3387 = vmatpush1.msra.mxu0 %v3368
    %3388 = vmatprep.subr.mxu0 0.0
    %3389 = vmatpush1.msra.mxu0 %v3369
    %3390 = vmatprep.subr.mxu0 0.0
    %3391 = vmatpush1.msra.mxu0 %v3370
    %3392 = vmatprep.subr.mxu0 0.0
    %3393 = vmatpush1.msra.mxu0 %v3371
    %3394 = vmatprep.subr.mxu0 0.0
    %3395 = vmatpush1.msra.mxu0 %v3372
    %3396 = vmatprep.subr.mxu0 0.0
    %3397 = vmatpush1.msra.mxu0 %v3373
    %3398 = vmatprep.subr.mxu0 0.0
    %3399 = vmatpush1.msra.mxu0 %v3374
    %3400 = vmatprep.subr.mxu0 0.0
    %3401 = vmatpush1.msra.mxu0 %v3375
    %3402 = vmatprep.subr.mxu0 0.0
    %3403 = vmatpush1.msra.mxu0 %v3376
    %3404 = vmatprep.subr.mxu0 0.0
    %3405 = vmatpush1.msra.mxu0 %v3377
    %3406 = vmatprep.subr.mxu0 0.0
    %3407 = vmatpush1.msra.mxu0 %v3378
    %3408 = vmatprep.subr.mxu0 0.0
    %3409 = vmatpush1.msra.mxu0 %v3379
    %3410 = vmatprep.subr.mxu0 0.0
    %3411 = vmatpush1.msra.mxu0 %v3380
    %3412 = vmatprep.subr.mxu0 0.0
    %3413 = vmatpush1.msra.mxu0 %v3381
    %3414 = vmatprep.subr.mxu0 0.0
    %3415 = vmatpush1.msra.mxu0 0.0
    %3416 = vmatprep.subr.mxu0 0.0
    %3417 = vmatpush1.msra.mxu0 0.0
    %3418 = vmatprep.subr.mxu0 0.0
    %3419 = vmatpush1.msra.mxu0 0.0
    %3420 = vmatprep.subr.mxu0 0.0
    %3421 = vmatpush1.msra.mxu0 0.0
    %3422 = vmatprep.subr.mxu0 0.0
    %3423 = vmatpush1.msra.mxu0 0.0
    %3424 = vmatprep.subr.mxu0 0.0
    %3425 = vmatpush1.msra.mxu0 0.0
    %3426 = vmatprep.subr.mxu0 0.0
    %3427 = vmatpush1.msra.mxu0 0.0
    %3428 = vmatprep.subr.mxu0 0.0
    %3429 = vmatpush1.msra.mxu0 0.0
    %3430 = vmatprep.subr.mxu0 0.0
    %3431 = vmatpush1.msra.mxu0 0.0
    %3432 = vmatprep.subr.mxu0 0.0
    %3433 = vmatpush1.msra.mxu0 0.0
    %3434 = vmatprep.subr.mxu0 0.0
    %3435 = vmatpush1.msra.mxu0 0.0
    %3436 = vmatprep.subr.mxu0 0.0
    %3437 = vmatpush1.msra.mxu0 0.0
    %3438 = vmatprep.subr.mxu0 0.0
    %3439 = vmatpush1.msra.mxu0 0.0
    %3440 = vmatprep.subr.mxu0 0.0
    %3441 = vmatpush1.msra.mxu0 0.0
    %3442 = vmatprep.subr.mxu0 0.0
    %3443 = vmatpush1.msra.mxu0 0.0
    %3444 = vmatprep.subr.mxu0 0.0
    %3445 = vmatpush1.msra.mxu0 0.0
    %3446 = vmatprep.mubr.f32.mxu0 0.0
    %3447 = vmatmul.mubr.f32.gmra.mrb[0].mxu0 %v2260
    %v3448 = vpop.f32.mrb[0].mxu0
    %v3449 = vadd.f32 0.0, %v3448
    %v3450 = vpop.f32.mrb[0].mxu0
    %3451 = vmatprep.mubr.f32.mxu0 0.0
    %3452 = vmatmul.mubr.f32.gmra.mrb[0].mxu0 %v2276
    %v3453 = vpop.f32.mrb[0].mxu0
    %v3454 = vadd.f32 0.0, %v3453
    %v3455 = vpop.f32.mrb[0].mxu0
    %3456 = vmatprep.mubr.f32.mxu0 0.0
    %3457 = vmatmul.mubr.f32.gmra.mrb[0].mxu0 %v2292
    %v3458 = vpop.f32.mrb[0].mxu0
    %v3459 = vadd.f32 0.0, %v3458
    %v3460 = vpop.f32.mrb[0].mxu0
    %3461 = vmatprep.mubr.f32.mxu0 0.0
    %3462 = vmatmul.mubr.f32.gmra.mrb[0].mxu0 %v2308
    %v3463 = vpop.f32.mrb[0].mxu0
    %v3464 = vadd.f32 0.0, %v3463
    %v3465 = vpop.f32.mrb[0].mxu0
    %3466 = vdwg.mxu0
    %v3467 = vadd.f32 %v3361, %v3449
    %v3468 = vadd.f32 %v3362, %v3454
    %v3469 = vadd.f32 %v3363, %v3459
    %v3470 = vadd.f32 %v3364, %v3464
    %s3471 = scalar_lea.vmem [#allocation5], 1408
    %v3472 = vld [vmem:[%s3471] sm:$0xff]
    %v3473 = vld [vmem:[%s3471 + $0x8] sm:$0xff]
    %v3474 = vld [vmem:[%s3471 + $0x10] sm:$0xff]
    %v3475 = vld [vmem:[%s3471 + $0x18] sm:$0xff]
    %v3476 = vld [vmem:[%s3471 + $0x20] sm:$0xff]
    %v3477 = vld [vmem:[%s3471 + $0x28] sm:$0xff]
    %v3478 = vld [vmem:[%s3471 + $0x30] sm:$0xff]
    %v3479 = vld [vmem:[%s3471 + $0x38] sm:$0xff]
    %v3480 = vld [vmem:[%s3471 + $0x40] sm:$0xff]
    %v3481 = vld [vmem:[%s3471 + $0x48] sm:$0xff]
    %v3482 = vld [vmem:[%s3471 + $0x50] sm:$0xff]
    %v3483 = vld [vmem:[%s3471 + $0x58] sm:$0xff]
    %v3484 = vld [vmem:[%s3471 + $0x60] sm:$0xff]
    %v3485 = vld [vmem:[%s3471 + $0x68] sm:$0xff]
    %v3486 = vld [vmem:[%s3471 + $0x70] sm:$0xff]
    %v3487 = vld [vmem:[%s3471 + $0x78] sm:$0xff]
    %3488 = vmatprep.subr.mxu0 0.0
    %3489 = vmatpush1.msra.mxu0 %v3472
    %3490 = vmatprep.subr.mxu0 0.0
    %3491 = vmatpush1.msra.mxu0 %v3473
    %3492 = vmatprep.subr.mxu0 0.0
    %3493 = vmatpush1.msra.mxu0 %v3474
    %3494 = vmatprep.subr.mxu0 0.0
    %3495 = vmatpush1.msra.mxu0 %v3475
    %3496 = vmatprep.subr.mxu0 0.0
    %3497 = vmatpush1.msra.mxu0 %v3476
    %3498 = vmatprep.subr.mxu0 0.0
    %3499 = vmatpush1.msra.mxu0 %v3477
    %3500 = vmatprep.subr.mxu0 0.0
    %3501 = vmatpush1.msra.mxu0 %v3478
    %3502 = vmatprep.subr.mxu0 0.0
    %3503 = vmatpush1.msra.mxu0 %v3479
    %3504 = vmatprep.subr.mxu0 0.0
    %3505 = vmatpush1.msra.mxu0 %v3480
    %3506 = vmatprep.subr.mxu0 0.0
    %3507 = vmatpush1.msra.mxu0 %v3481
    %3508 = vmatprep.subr.mxu0 0.0
    %3509 = vmatpush1.msra.mxu0 %v3482
    %3510 = vmatprep.subr.mxu0 0.0
    %3511 = vmatpush1.msra.mxu0 %v3483
    %3512 = vmatprep.subr.mxu0 0.0
    %3513 = vmatpush1.msra.mxu0 %v3484
    %3514 = vmatprep.subr.mxu0 0.0
    %3515 = vmatpush1.msra.mxu0 %v3485
    %3516 = vmatprep.subr.mxu0 0.0
    %3517 = vmatpush1.msra.mxu0 %v3486
    %3518 = vmatprep.subr.mxu0 0.0
    %3519 = vmatpush1.msra.mxu0 %v3487
    %3520 = vmatprep.subr.mxu0 0.0
    %3521 = vmatpush1.msra.mxu0 0.0
    %3522 = vmatprep.subr.mxu0 0.0
    %3523 = vmatpush1.msra.mxu0 0.0
    %3524 = vmatprep.subr.mxu0 0.0
    %3525 = vmatpush1.msra.mxu0 0.0
    %3526 = vmatprep.subr.mxu0 0.0
    %3527 = vmatpush1.msra.mxu0 0.0
    %3528 = vmatprep.subr.mxu0 0.0
    %3529 = vmatpush1.msra.mxu0 0.0
    %3530 = vmatprep.subr.mxu0 0.0
    %3531 = vmatpush1.msra.mxu0 0.0
    %3532 = vmatprep.subr.mxu0 0.0
    %3533 = vmatpush1.msra.mxu0 0.0
    %3534 = vmatprep.subr.mxu0 0.0
    %3535 = vmatpush1.msra.mxu0 0.0
    %3536 = vmatprep.subr.mxu0 0.0
    %3537 = vmatpush1.msra.mxu0 0.0
    %3538 = vmatprep.subr.mxu0 0.0
    %3539 = vmatpush1.msra.mxu0 0.0
    %3540 = vmatprep.subr.mxu0 0.0
    %3541 = vmatpush1.msra.mxu0 0.0
    %3542 = vmatprep.subr.mxu0 0.0
    %3543 = vmatpush1.msra.mxu0 0.0
    %3544 = vmatprep.subr.mxu0 0.0
    %3545 = vmatpush1.msra.mxu0 0.0
    %3546 = vmatprep.subr.mxu0 0.0
    %3547 = vmatpush1.msra.mxu0 0.0
    %3548 = vmatprep.subr.mxu0 0.0
    %3549 = vmatpush1.msra.mxu0 0.0
    %3550 = vmatprep.subr.mxu0 0.0
    %3551 = vmatpush1.msra.mxu0 0.0
    %3552 = vmatprep.mubr.f32.mxu0 0.0
    %3553 = vmatmul.mubr.f32.gmra.mrb[0].mxu0 %v2261
    %v3554 = vpop.f32.mrb[0].mxu0
    %v3555 = vadd.f32 0.0, %v3554
    %v3556 = vpop.f32.mrb[0].mxu0
    %3557 = vmatprep.mubr.f32.mxu0 0.0
    %3558 = vmatmul.mubr.f32.gmra.mrb[0].mxu0 %v2277
    %v3559 = vpop.f32.mrb[0].mxu0
    %v3560 = vadd.f32 0.0, %v3559
    %v3561 = vpop.f32.mrb[0].mxu0
    %3562 = vmatprep.mubr.f32.mxu0 0.0
    %3563 = vmatmul.mubr.f32.gmra.mrb[0].mxu0 %v2293
    %v3564 = vpop.f32.mrb[0].mxu0
    %v3565 = vadd.f32 0.0, %v3564
    %v3566 = vpop.f32.mrb[0].mxu0
    %3567 = vmatprep.mubr.f32.mxu0 0.0
    %3568 = vmatmul.mubr.f32.gmra.mrb[0].mxu0 %v2309
    %v3569 = vpop.f32.mrb[0].mxu0
    %v3570 = vadd.f32 0.0, %v3569
    %v3571 = vpop.f32.mrb[0].mxu0
    %3572 = vdwg.mxu0
    %v3573 = vadd.f32 %v3467, %v3555
    %v3574 = vadd.f32 %v3468, %v3560
    %v3575 = vadd.f32 %v3469, %v3565
    %v3576 = vadd.f32 %v3470, %v3570
    %s3577 = scalar_lea.vmem [#allocation5], 1536
    %v3578 = vld [vmem:[%s3577] sm:$0xff]
    %v3579 = vld [vmem:[%s3577 + $0x8] sm:$0xff]
    %v3580 = vld [vmem:[%s3577 + $0x10] sm:$0xff]
    %v3581 = vld [vmem:[%s3577 + $0x18] sm:$0xff]
    %v3582 = vld [vmem:[%s3577 + $0x20] sm:$0xff]
    %v3583 = vld [vmem:[%s3577 + $0x28] sm:$0xff]
    %v3584 = vld [vmem:[%s3577 + $0x30] sm:$0xff]
    %v3585 = vld [vmem:[%s3577 + $0x38] sm:$0xff]
    %v3586 = vld [vmem:[%s3577 + $0x40] sm:$0xff]
    %v3587 = vld [vmem:[%s3577 + $0x48] sm:$0xff]
    %v3588 = vld [vmem:[%s3577 + $0x50] sm:$0xff]
    %v3589 = vld [vmem:[%s3577 + $0x58] sm:$0xff]
    %v3590 = vld [vmem:[%s3577 + $0x60] sm:$0xff]
    %v3591 = vld [vmem:[%s3577 + $0x68] sm:$0xff]
    %v3592 = vld [vmem:[%s3577 + $0x70] sm:$0xff]
    %v3593 = vld [vmem:[%s3577 + $0x78] sm:$0xff]
    %3594 = vmatprep.subr.mxu0 0.0
    %3595 = vmatpush1.msra.mxu0 %v3578
    %3596 = vmatprep.subr.mxu0 0.0
    %3597 = vmatpush1.msra.mxu0 %v3579
    %3598 = vmatprep.subr.mxu0 0.0
    %3599 = vmatpush1.msra.mxu0 %v3580
    %3600 = vmatprep.subr.mxu0 0.0
    %3601 = vmatpush1.msra.mxu0 %v3581
    %3602 = vmatprep.subr.mxu0 0.0
    %3603 = vmatpush1.msra.mxu0 %v3582
    %3604 = vmatprep.subr.mxu0 0.0
    %3605 = vmatpush1.msra.mxu0 %v3583
    %3606 = vmatprep.subr.mxu0 0.0
    %3607 = vmatpush1.msra.mxu0 %v3584
    %3608 = vmatprep.subr.mxu0 0.0
    %3609 = vmatpush1.msra.mxu0 %v3585
    %3610 = vmatprep.subr.mxu0 0.0
    %3611 = vmatpush1.msra.mxu0 %v3586
    %3612 = vmatprep.subr.mxu0 0.0
    %3613 = vmatpush1.msra.mxu0 %v3587
    %3614 = vmatprep.subr.mxu0 0.0
    %3615 = vmatpush1.msra.mxu0 %v3588
    %3616 = vmatprep.subr.mxu0 0.0
    %3617 = vmatpush1.msra.mxu0 %v3589
    %3618 = vmatprep.subr.mxu0 0.0
    %3619 = vmatpush1.msra.mxu0 %v3590
    %3620 = vmatprep.subr.mxu0 0.0
    %3621 = vmatpush1.msra.mxu0 %v3591
    %3622 = vmatprep.subr.mxu0 0.0
    %3623 = vmatpush1.msra.mxu0 %v3592
    %3624 = vmatprep.subr.mxu0 0.0
    %3625 = vmatpush1.msra.mxu0 %v3593
    %3626 = vmatprep.subr.mxu0 0.0
    %3627 = vmatpush1.msra.mxu0 0.0
    %3628 = vmatprep.subr.mxu0 0.0
    %3629 = vmatpush1.msra.mxu0 0.0
    %3630 = vmatprep.subr.mxu0 0.0
    %3631 = vmatpush1.msra.mxu0 0.0
    %3632 = vmatprep.subr.mxu0 0.0
    %3633 = vmatpush1.msra.mxu0 0.0
    %3634 = vmatprep.subr.mxu0 0.0
    %3635 = vmatpush1.msra.mxu0 0.0
    %3636 = vmatprep.subr.mxu0 0.0
    %3637 = vmatpush1.msra.mxu0 0.0
    %3638 = vmatprep.subr.mxu0 0.0
    %3639 = vmatpush1.msra.mxu0 0.0
    %3640 = vmatprep.subr.mxu0 0.0
    %3641 = vmatpush1.msra.mxu0 0.0
    %3642 = vmatprep.subr.mxu0 0.0
    %3643 = vmatpush1.msra.mxu0 0.0
    %3644 = vmatprep.subr.mxu0 0.0
    %3645 = vmatpush1.msra.mxu0 0.0
    %3646 = vmatprep.subr.mxu0 0.0
    %3647 = vmatpush1.msra.mxu0 0.0
    %3648 = vmatprep.subr.mxu0 0.0
    %3649 = vmatpush1.msra.mxu0 0.0
    %3650 = vmatprep.subr.mxu0 0.0
    %3651 = vmatpush1.msra.mxu0 0.0
    %3652 = vmatprep.subr.mxu0 0.0
    %3653 = vmatpush1.msra.mxu0 0.0
    %3654 = vmatprep.subr.mxu0 0.0
    %3655 = vmatpush1.msra.mxu0 0.0
    %3656 = vmatprep.subr.mxu0 0.0
    %3657 = vmatpush1.msra.mxu0 0.0
    %3658 = vmatprep.mubr.f32.mxu0 0.0
    %3659 = vmatmul.mubr.f32.gmra.mrb[0].mxu0 %v2262
    %v3660 = vpop.f32.mrb[0].mxu0
    %v3661 = vadd.f32 0.0, %v3660
    %v3662 = vpop.f32.mrb[0].mxu0
    %3663 = vmatprep.mubr.f32.mxu0 0.0
    %3664 = vmatmul.mubr.f32.gmra.mrb[0].mxu0 %v2278
    %v3665 = vpop.f32.mrb[0].mxu0
    %v3666 = vadd.f32 0.0, %v3665
    %v3667 = vpop.f32.mrb[0].mxu0
    %3668 = vmatprep.mubr.f32.mxu0 0.0
    %3669 = vmatmul.mubr.f32.gmra.mrb[0].mxu0 %v2294
    %v3670 = vpop.f32.mrb[0].mxu0
    %v3671 = vadd.f32 0.0, %v3670
    %v3672 = vpop.f32.mrb[0].mxu0
    %3673 = vmatprep.mubr.f32.mxu0 0.0
    %3674 = vmatmul.mubr.f32.gmra.mrb[0].mxu0 %v2310
    %v3675 = vpop.f32.mrb[0].mxu0
    %v3676 = vadd.f32 0.0, %v3675
    %v3677 = vpop.f32.mrb[0].mxu0
    %3678 = vdwg.mxu0
    %v3679 = vadd.f32 %v3573, %v3661
    %v3680 = vadd.f32 %v3574, %v3666
    %v3681 = vadd.f32 %v3575, %v3671
    %v3682 = vadd.f32 %v3576, %v3676
    %s3683 = scalar_lea.vmem [#allocation5], 1664
    %v3684 = vld [vmem:[%s3683] sm:$0xff]
    %v3685 = vld [vmem:[%s3683 + $0x8] sm:$0xff]
    %v3686 = vld [vmem:[%s3683 + $0x10] sm:$0xff]
    %v3687 = vld [vmem:[%s3683 + $0x18] sm:$0xff]
    %v3688 = vld [vmem:[%s3683 + $0x20] sm:$0xff]
    %v3689 = vld [vmem:[%s3683 + $0x28] sm:$0xff]
    %v3690 = vld [vmem:[%s3683 + $0x30] sm:$0xff]
    %v3691 = vld [vmem:[%s3683 + $0x38] sm:$0xff]
    %v3692 = vld [vmem:[%s3683 + $0x40] sm:$0xff]
    %v3693 = vld [vmem:[%s3683 + $0x48] sm:$0xff]
    %v3694 = vld [vmem:[%s3683 + $0x50] sm:$0xff]
    %v3695 = vld [vmem:[%s3683 + $0x58] sm:$0xff]
    %v3696 = vld [vmem:[%s3683 + $0x60] sm:$0xff]
    %v3697 = vld [vmem:[%s3683 + $0x68] sm:$0xff]
    %v3698 = vld [vmem:[%s3683 + $0x70] sm:$0xff]
    %v3699 = vld [vmem:[%s3683 + $0x78] sm:$0xff]
    %3700 = vmatprep.subr.mxu0 0.0
    %3701 = vmatpush1.msra.mxu0 %v3684
    %3702 = vmatprep.subr.mxu0 0.0
    %3703 = vmatpush1.msra.mxu0 %v3685
    %3704 = vmatprep.subr.mxu0 0.0
    %3705 = vmatpush1.msra.mxu0 %v3686
    %3706 = vmatprep.subr.mxu0 0.0
    %3707 = vmatpush1.msra.mxu0 %v3687
    %3708 = vmatprep.subr.mxu0 0.0
    %3709 = vmatpush1.msra.mxu0 %v3688
    %3710 = vmatprep.subr.mxu0 0.0
    %3711 = vmatpush1.msra.mxu0 %v3689
    %3712 = vmatprep.subr.mxu0 0.0
    %3713 = vmatpush1.msra.mxu0 %v3690
    %3714 = vmatprep.subr.mxu0 0.0
    %3715 = vmatpush1.msra.mxu0 %v3691
    %3716 = vmatprep.subr.mxu0 0.0
    %3717 = vmatpush1.msra.mxu0 %v3692
    %3718 = vmatprep.subr.mxu0 0.0
    %3719 = vmatpush1.msra.mxu0 %v3693
    %3720 = vmatprep.subr.mxu0 0.0
    %3721 = vmatpush1.msra.mxu0 %v3694
    %3722 = vmatprep.subr.mxu0 0.0
    %3723 = vmatpush1.msra.mxu0 %v3695
    %3724 = vmatprep.subr.mxu0 0.0
    %3725 = vmatpush1.msra.mxu0 %v3696
    %3726 = vmatprep.subr.mxu0 0.0
    %3727 = vmatpush1.msra.mxu0 %v3697
    %3728 = vmatprep.subr.mxu0 0.0
    %3729 = vmatpush1.msra.mxu0 %v3698
    %3730 = vmatprep.subr.mxu0 0.0
    %3731 = vmatpush1.msra.mxu0 %v3699
    %3732 = vmatprep.subr.mxu0 0.0
    %3733 = vmatpush1.msra.mxu0 0.0
    %3734 = vmatprep.subr.mxu0 0.0
    %3735 = vmatpush1.msra.mxu0 0.0
    %3736 = vmatprep.subr.mxu0 0.0
    %3737 = vmatpush1.msra.mxu0 0.0
    %3738 = vmatprep.subr.mxu0 0.0
    %3739 = vmatpush1.msra.mxu0 0.0
    %3740 = vmatprep.subr.mxu0 0.0
    %3741 = vmatpush1.msra.mxu0 0.0
    %3742 = vmatprep.subr.mxu0 0.0
    %3743 = vmatpush1.msra.mxu0 0.0
    %3744 = vmatprep.subr.mxu0 0.0
    %3745 = vmatpush1.msra.mxu0 0.0
    %3746 = vmatprep.subr.mxu0 0.0
    %3747 = vmatpush1.msra.mxu0 0.0
    %3748 = vmatprep.subr.mxu0 0.0
    %3749 = vmatpush1.msra.mxu0 0.0
    %3750 = vmatprep.subr.mxu0 0.0
    %3751 = vmatpush1.msra.mxu0 0.0
    %3752 = vmatprep.subr.mxu0 0.0
    %3753 = vmatpush1.msra.mxu0 0.0
    %3754 = vmatprep.subr.mxu0 0.0
    %3755 = vmatpush1.msra.mxu0 0.0
    %3756 = vmatprep.subr.mxu0 0.0
    %3757 = vmatpush1.msra.mxu0 0.0
    %3758 = vmatprep.subr.mxu0 0.0
    %3759 = vmatpush1.msra.mxu0 0.0
    %3760 = vmatprep.subr.mxu0 0.0
    %3761 = vmatpush1.msra.mxu0 0.0
    %3762 = vmatprep.subr.mxu0 0.0
    %3763 = vmatpush1.msra.mxu0 0.0
    %3764 = vmatprep.mubr.f32.mxu0 0.0
    %3765 = vmatmul.mubr.f32.gmra.mrb[0].mxu0 %v2263
    %v3766 = vpop.f32.mrb[0].mxu0
    %v3767 = vadd.f32 0.0, %v3766
    %v3768 = vpop.f32.mrb[0].mxu0
    %3769 = vmatprep.mubr.f32.mxu0 0.0
    %3770 = vmatmul.mubr.f32.gmra.mrb[0].mxu0 %v2279
    %v3771 = vpop.f32.mrb[0].mxu0
    %v3772 = vadd.f32 0.0, %v3771
    %v3773 = vpop.f32.mrb[0].mxu0
    %3774 = vmatprep.mubr.f32.mxu0 0.0
    %3775 = vmatmul.mubr.f32.gmra.mrb[0].mxu0 %v2295
    %v3776 = vpop.f32.mrb[0].mxu0
    %v3777 = vadd.f32 0.0, %v3776
    %v3778 = vpop.f32.mrb[0].mxu0
    %3779 = vmatprep.mubr.f32.mxu0 0.0
    %3780 = vmatmul.mubr.f32.gmra.mrb[0].mxu0 %v2311
    %v3781 = vpop.f32.mrb[0].mxu0
    %v3782 = vadd.f32 0.0, %v3781
    %v3783 = vpop.f32.mrb[0].mxu0
    %3784 = vdwg.mxu0
    %v3785 = vadd.f32 %v3679, %v3767
    %v3786 = vadd.f32 %v3680, %v3772
    %v3787 = vadd.f32 %v3681, %v3777
    %v3788 = vadd.f32 %v3682, %v3782
    %s3789 = scalar_lea.vmem [#allocation5], 1792
    %v3790 = vld [vmem:[%s3789] sm:$0xff]
    %v3791 = vld [vmem:[%s3789 + $0x8] sm:$0xff]
    %v3792 = vld [vmem:[%s3789 + $0x10] sm:$0xff]
    %v3793 = vld [vmem:[%s3789 + $0x18] sm:$0xff]
    %v3794 = vld [vmem:[%s3789 + $0x20] sm:$0xff]
    %v3795 = vld [vmem:[%s3789 + $0x28] sm:$0xff]
    %v3796 = vld [vmem:[%s3789 + $0x30] sm:$0xff]
    %v3797 = vld [vmem:[%s3789 + $0x38] sm:$0xff]
    %v3798 = vld [vmem:[%s3789 + $0x40] sm:$0xff]
    %v3799 = vld [vmem:[%s3789 + $0x48] sm:$0xff]
    %v3800 = vld [vmem:[%s3789 + $0x50] sm:$0xff]
    %v3801 = vld [vmem:[%s3789 + $0x58] sm:$0xff]
    %v3802 = vld [vmem:[%s3789 + $0x60] sm:$0xff]
    %v3803 = vld [vmem:[%s3789 + $0x68] sm:$0xff]
    %v3804 = vld [vmem:[%s3789 + $0x70] sm:$0xff]
    %v3805 = vld [vmem:[%s3789 + $0x78] sm:$0xff]
    %3806 = vmatprep.subr.mxu0 0.0
    %3807 = vmatpush1.msra.mxu0 %v3790
    %3808 = vmatprep.subr.mxu0 0.0
    %3809 = vmatpush1.msra.mxu0 %v3791
    %3810 = vmatprep.subr.mxu0 0.0
    %3811 = vmatpush1.msra.mxu0 %v3792
    %3812 = vmatprep.subr.mxu0 0.0
    %3813 = vmatpush1.msra.mxu0 %v3793
    %3814 = vmatprep.subr.mxu0 0.0
    %3815 = vmatpush1.msra.mxu0 %v3794
    %3816 = vmatprep.subr.mxu0 0.0
    %3817 = vmatpush1.msra.mxu0 %v3795
    %3818 = vmatprep.subr.mxu0 0.0
    %3819 = vmatpush1.msra.mxu0 %v3796
    %3820 = vmatprep.subr.mxu0 0.0
    %3821 = vmatpush1.msra.mxu0 %v3797
    %3822 = vmatprep.subr.mxu0 0.0
    %3823 = vmatpush1.msra.mxu0 %v3798
    %3824 = vmatprep.subr.mxu0 0.0
    %3825 = vmatpush1.msra.mxu0 %v3799
    %3826 = vmatprep.subr.mxu0 0.0
    %3827 = vmatpush1.msra.mxu0 %v3800
    %3828 = vmatprep.subr.mxu0 0.0
    %3829 = vmatpush1.msra.mxu0 %v3801
    %3830 = vmatprep.subr.mxu0 0.0
    %3831 = vmatpush1.msra.mxu0 %v3802
    %3832 = vmatprep.subr.mxu0 0.0
    %3833 = vmatpush1.msra.mxu0 %v3803
    %3834 = vmatprep.subr.mxu0 0.0
    %3835 = vmatpush1.msra.mxu0 %v3804
    %3836 = vmatprep.subr.mxu0 0.0
    %3837 = vmatpush1.msra.mxu0 %v3805
    %3838 = vmatprep.subr.mxu0 0.0
    %3839 = vmatpush1.msra.mxu0 0.0
    %3840 = vmatprep.subr.mxu0 0.0
    %3841 = vmatpush1.msra.mxu0 0.0
    %3842 = vmatprep.subr.mxu0 0.0
    %3843 = vmatpush1.msra.mxu0 0.0
    %3844 = vmatprep.subr.mxu0 0.0
    %3845 = vmatpush1.msra.mxu0 0.0
    %3846 = vmatprep.subr.mxu0 0.0
    %3847 = vmatpush1.msra.mxu0 0.0
    %3848 = vmatprep.subr.mxu0 0.0
    %3849 = vmatpush1.msra.mxu0 0.0
    %3850 = vmatprep.subr.mxu0 0.0
    %3851 = vmatpush1.msra.mxu0 0.0
    %3852 = vmatprep.subr.mxu0 0.0
    %3853 = vmatpush1.msra.mxu0 0.0
    %3854 = vmatprep.subr.mxu0 0.0
    %3855 = vmatpush1.msra.mxu0 0.0
    %3856 = vmatprep.subr.mxu0 0.0
    %3857 = vmatpush1.msra.mxu0 0.0
    %3858 = vmatprep.subr.mxu0 0.0
    %3859 = vmatpush1.msra.mxu0 0.0
    %3860 = vmatprep.subr.mxu0 0.0
    %3861 = vmatpush1.msra.mxu0 0.0
    %3862 = vmatprep.subr.mxu0 0.0
    %3863 = vmatpush1.msra.mxu0 0.0
    %3864 = vmatprep.subr.mxu0 0.0
    %3865 = vmatpush1.msra.mxu0 0.0
    %3866 = vmatprep.subr.mxu0 0.0
    %3867 = vmatpush1.msra.mxu0 0.0
    %3868 = vmatprep.subr.mxu0 0.0
    %3869 = vmatpush1.msra.mxu0 0.0
    %3870 = vmatprep.mubr.f32.mxu0 0.0
    %3871 = vmatmul.mubr.f32.gmra.mrb[0].mxu0 %v2264
    %v3872 = vpop.f32.mrb[0].mxu0
    %v3873 = vadd.f32 0.0, %v3872
    %v3874 = vpop.f32.mrb[0].mxu0
    %3875 = vmatprep.mubr.f32.mxu0 0.0
    %3876 = vmatmul.mubr.f32.gmra.mrb[0].mxu0 %v2280
    %v3877 = vpop.f32.mrb[0].mxu0
    %v3878 = vadd.f32 0.0, %v3877
    %v3879 = vpop.f32.mrb[0].mxu0
    %3880 = vmatprep.mubr.f32.mxu0 0.0
    %3881 = vmatmul.mubr.f32.gmra.mrb[0].mxu0 %v2296
    %v3882 = vpop.f32.mrb[0].mxu0
    %v3883 = vadd.f32 0.0, %v3882
    %v3884 = vpop.f32.mrb[0].mxu0
    %3885 = vmatprep.mubr.f32.mxu0 0.0
    %3886 = vmatmul.mubr.f32.gmra.mrb[0].mxu0 %v2312
    %v3887 = vpop.f32.mrb[0].mxu0
    %v3888 = vadd.f32 0.0, %v3887
    %v3889 = vpop.f32.mrb[0].mxu0
    %3890 = vdwg.mxu0
    %v3891 = vadd.f32 %v3785, %v3873
    %v3892 = vadd.f32 %v3786, %v3878
    %v3893 = vadd.f32 %v3787, %v3883
    %v3894 = vadd.f32 %v3788, %v3888
    %s3895 = scalar_lea.vmem [#allocation5], 1920
    %v3896 = vld [vmem:[%s3895] sm:$0xff]
    %v3897 = vld [vmem:[%s3895 + $0x8] sm:$0xff]
    %v3898 = vld [vmem:[%s3895 + $0x10] sm:$0xff]
    %v3899 = vld [vmem:[%s3895 + $0x18] sm:$0xff]
    %v3900 = vld [vmem:[%s3895 + $0x20] sm:$0xff]
    %v3901 = vld [vmem:[%s3895 + $0x28] sm:$0xff]
    %v3902 = vld [vmem:[%s3895 + $0x30] sm:$0xff]
    %v3903 = vld [vmem:[%s3895 + $0x38] sm:$0xff]
    %v3904 = vld [vmem:[%s3895 + $0x40] sm:$0xff]
    %v3905 = vld [vmem:[%s3895 + $0x48] sm:$0xff]
    %v3906 = vld [vmem:[%s3895 + $0x50] sm:$0xff]
    %v3907 = vld [vmem:[%s3895 + $0x58] sm:$0xff]
    %v3908 = vld [vmem:[%s3895 + $0x60] sm:$0xff]
    %v3909 = vld [vmem:[%s3895 + $0x68] sm:$0xff]
    %v3910 = vld [vmem:[%s3895 + $0x70] sm:$0xff]
    %v3911 = vld [vmem:[%s3895 + $0x78] sm:$0xff]
    %3912 = vmatprep.subr.mxu0 0.0
    %3913 = vmatpush1.msra.mxu0 %v3896
    %3914 = vmatprep.subr.mxu0 0.0
    %3915 = vmatpush1.msra.mxu0 %v3897
    %3916 = vmatprep.subr.mxu0 0.0
    %3917 = vmatpush1.msra.mxu0 %v3898
    %3918 = vmatprep.subr.mxu0 0.0
    %3919 = vmatpush1.msra.mxu0 %v3899
    %3920 = vmatprep.subr.mxu0 0.0
    %3921 = vmatpush1.msra.mxu0 %v3900
    %3922 = vmatprep.subr.mxu0 0.0
    %3923 = vmatpush1.msra.mxu0 %v3901
    %3924 = vmatprep.subr.mxu0 0.0
    %3925 = vmatpush1.msra.mxu0 %v3902
    %3926 = vmatprep.subr.mxu0 0.0
    %3927 = vmatpush1.msra.mxu0 %v3903
    %3928 = vmatprep.subr.mxu0 0.0
    %3929 = vmatpush1.msra.mxu0 %v3904
    %3930 = vmatprep.subr.mxu0 0.0
    %3931 = vmatpush1.msra.mxu0 %v3905
    %3932 = vmatprep.subr.mxu0 0.0
    %3933 = vmatpush1.msra.mxu0 %v3906
    %3934 = vmatprep.subr.mxu0 0.0
    %3935 = vmatpush1.msra.mxu0 %v3907
    %3936 = vmatprep.subr.mxu0 0.0
    %3937 = vmatpush1.msra.mxu0 %v3908
    %3938 = vmatprep.subr.mxu0 0.0
    %3939 = vmatpush1.msra.mxu0 %v3909
    %3940 = vmatprep.subr.mxu0 0.0
    %3941 = vmatpush1.msra.mxu0 %v3910
    %3942 = vmatprep.subr.mxu0 0.0
    %3943 = vmatpush1.msra.mxu0 %v3911
    %3944 = vmatprep.subr.mxu0 0.0
    %3945 = vmatpush1.msra.mxu0 0.0
    %3946 = vmatprep.subr.mxu0 0.0
    %3947 = vmatpush1.msra.mxu0 0.0
    %3948 = vmatprep.subr.mxu0 0.0
    %3949 = vmatpush1.msra.mxu0 0.0
    %3950 = vmatprep.subr.mxu0 0.0
    %3951 = vmatpush1.msra.mxu0 0.0
    %3952 = vmatprep.subr.mxu0 0.0
    %3953 = vmatpush1.msra.mxu0 0.0
    %3954 = vmatprep.subr.mxu0 0.0
    %3955 = vmatpush1.msra.mxu0 0.0
    %3956 = vmatprep.subr.mxu0 0.0
    %3957 = vmatpush1.msra.mxu0 0.0
    %3958 = vmatprep.subr.mxu0 0.0
    %3959 = vmatpush1.msra.mxu0 0.0
    %3960 = vmatprep.subr.mxu0 0.0
    %3961 = vmatpush1.msra.mxu0 0.0
    %3962 = vmatprep.subr.mxu0 0.0
    %3963 = vmatpush1.msra.mxu0 0.0
    %3964 = vmatprep.subr.mxu0 0.0
    %3965 = vmatpush1.msra.mxu0 0.0
    %3966 = vmatprep.subr.mxu0 0.0
    %3967 = vmatpush1.msra.mxu0 0.0
    %3968 = vmatprep.subr.mxu0 0.0
    %3969 = vmatpush1.msra.mxu0 0.0
    %3970 = vmatprep.subr.mxu0 0.0
    %3971 = vmatpush1.msra.mxu0 0.0
    %3972 = vmatprep.subr.mxu0 0.0
    %3973 = vmatpush1.msra.mxu0 0.0
    %3974 = vmatprep.subr.mxu0 0.0
    %3975 = vmatpush1.msra.mxu0 0.0
    %3976 = vmatprep.mubr.f32.mxu0 0.0
    %3977 = vmatmul.mubr.f32.gmra.mrb[0].mxu0 %v2265
    %v3978 = vpop.f32.mrb[0].mxu0
    %v3979 = vadd.f32 0.0, %v3978
    %v3980 = vpop.f32.mrb[0].mxu0
    %3981 = vmatprep.mubr.f32.mxu0 0.0
    %3982 = vmatmul.mubr.f32.gmra.mrb[0].mxu0 %v2281
    %v3983 = vpop.f32.mrb[0].mxu0
    %v3984 = vadd.f32 0.0, %v3983
    %v3985 = vpop.f32.mrb[0].mxu0
    %3986 = vmatprep.mubr.f32.mxu0 0.0
    %3987 = vmatmul.mubr.f32.gmra.mrb[0].mxu0 %v2297
    %v3988 = vpop.f32.mrb[0].mxu0
    %v3989 = vadd.f32 0.0, %v3988
    %v3990 = vpop.f32.mrb[0].mxu0
    %3991 = vmatprep.mubr.f32.mxu0 0.0
    %3992 = vmatmul.mubr.f32.gmra.mrb[0].mxu0 %v2313
    %v3993 = vpop.f32.mrb[0].mxu0
    %v3994 = vadd.f32 0.0, %v3993
    %v3995 = vpop.f32.mrb[0].mxu0
    %3996 = vdwg.mxu0
    %v3997 = vadd.f32 %v3891, %v3979
    %v3998 = vadd.f32 %v3892, %v3984
    %v3999 = vadd.f32 %v3893, %v3989
    %v4000 = vadd.f32 %v3894, %v3994
    %v4001 = vld [vmem:[%s5] sm:$0x1]
    %v4003 = vlaneseq
    %v4004 = vshrl.u32 %v4003, 7
    %v4005 = vsub.s32 0, %v4004
    %v4006 = vrot.slane %v4001, %v4005
    %v4008 = vadd.f32 %v3997, %v4006
    %v4009 = vadd.f32 %v3998, %v4006
    %v4010 = vadd.f32 %v3999, %v4006
    %v4011 = vadd.f32 %v4000, %v4006
    %v4012 = vmax.f32 %v4008, 0.0
    %v4013 = vmax.f32 %v4009, 0.0
    %v4014 = vmax.f32 %v4010, 0.0
    %v4015 = vmax.f32 %v4011, 0.0
    %v4016 = vld [vmem:[%s6] sm:$0xff]
    %v4017 = vld [vmem:[%s6 + $0x8] sm:$0xff]
    %v4018 = vld [vmem:[%s6 + $0x10] sm:$0xff]
    %v4019 = vld [vmem:[%s6 + $0x18] sm:$0xff]
    %v4020 = vld [vmem:[%s6 + $0x20] sm:$0xff]
    %v4021 = vld [vmem:[%s6 + $0x28] sm:$0xff]
    %v4022 = vld [vmem:[%s6 + $0x30] sm:$0xff]
    %v4023 = vld [vmem:[%s6 + $0x38] sm:$0xff]
    %s4024 = scalar_lea.vmem %s6, 64
    %v4025 = vld [vmem:[%s4024] sm:$0xff]
    %v4026 = vld [vmem:[%s4024 + $0x8] sm:$0xff]
    %v4027 = vld [vmem:[%s4024 + $0x10] sm:$0xff]
    %v4028 = vld [vmem:[%s4024 + $0x18] sm:$0xff]
    %v4029 = vld [vmem:[%s4024 + $0x20] sm:$0xff]
    %v4030 = vld [vmem:[%s4024 + $0x28] sm:$0xff]
    %v4031 = vld [vmem:[%s4024 + $0x30] sm:$0xff]
    %v4032 = vld [vmem:[%s4024 + $0x38] sm:$0xff]
    %4035 = vrot.lane.b32.xlu0 %v4012, 64
    %v4036 = vpop.permute.xlu0 %4035
    %4037 = vrot.lane.b32.xlu0 %v4014, 64
    %v4038 = vpop.permute.xlu0 %4037
    %v4039 = vsel %vm329, %v4036, 0
    %v4041 = vsel %vm329, %v4038, 0
    %4043 = vmatprep.subr.mxu0 0.0
    %4044 = vmatpush1.msra.mxu0 %v4025
    %4045 = vmatprep.subr.mxu0 0.0
    %4046 = vmatpush1.msra.mxu0 %v4026
    %4047 = vmatprep.subr.mxu0 0.0
    %4048 = vmatpush1.msra.mxu0 %v4027
    %4049 = vmatprep.subr.mxu0 0.0
    %4050 = vmatpush1.msra.mxu0 %v4028
    %4051 = vmatprep.subr.mxu0 0.0
    %4052 = vmatpush1.msra.mxu0 %v4029
    %4053 = vmatprep.subr.mxu0 0.0
    %4054 = vmatpush1.msra.mxu0 %v4030
    %4055 = vmatprep.subr.mxu0 0.0
    %4056 = vmatpush1.msra.mxu0 %v4031
    %4057 = vmatprep.subr.mxu0 0.0
    %4058 = vmatpush1.msra.mxu0 %v4032
    %4059 = vmatprep.subr.mxu0 0.0
    %4060 = vmatpush1.msra.mxu0 0.0
    %4061 = vmatprep.subr.mxu0 0.0
    %4062 = vmatpush1.msra.mxu0 0.0
    %4063 = vmatprep.subr.mxu0 0.0
    %4064 = vmatpush1.msra.mxu0 0.0
    %4065 = vmatprep.subr.mxu0 0.0
    %4066 = vmatpush1.msra.mxu0 0.0
    %4067 = vmatprep.subr.mxu0 0.0
    %4068 = vmatpush1.msra.mxu0 0.0
    %4069 = vmatprep.subr.mxu0 0.0
    %4070 = vmatpush1.msra.mxu0 0.0
    %4071 = vmatprep.subr.mxu0 0.0
    %4072 = vmatpush1.msra.mxu0 0.0
    %4073 = vmatprep.subr.mxu0 0.0
    %4074 = vmatpush1.msra.mxu0 0.0
    %4075 = vmatprep.subr.mxu0 0.0
    %4076 = vmatpush1.msra.mxu0 0.0
    %4077 = vmatprep.subr.mxu0 0.0
    %4078 = vmatpush1.msra.mxu0 0.0
    %4079 = vmatprep.subr.mxu0 0.0
    %4080 = vmatpush1.msra.mxu0 0.0
    %4081 = vmatprep.subr.mxu0 0.0
    %4082 = vmatpush1.msra.mxu0 0.0
    %4083 = vmatprep.subr.mxu0 0.0
    %4084 = vmatpush1.msra.mxu0 0.0
    %4085 = vmatprep.subr.mxu0 0.0
    %4086 = vmatpush1.msra.mxu0 0.0
    %4087 = vmatprep.subr.mxu0 0.0
    %4088 = vmatpush1.msra.mxu0 0.0
    %4089 = vmatprep.subr.mxu0 0.0
    %4090 = vmatpush1.msra.mxu0 0.0
    %4091 = vmatprep.subr.mxu0 0.0
    %4092 = vmatpush1.msra.mxu0 0.0
    %4093 = vmatprep.subr.mxu0 0.0
    %4094 = vmatpush1.msra.mxu0 0.0
    %4095 = vmatprep.subr.mxu0 0.0
    %4096 = vmatpush1.msra.mxu0 0.0
    %4097 = vmatprep.subr.mxu0 0.0
    %4098 = vmatpush1.msra.mxu0 0.0
    %4099 = vmatprep.subr.mxu0 0.0
    %4100 = vmatpush1.msra.mxu0 0.0
    %4101 = vmatprep.subr.mxu0 0.0
    %4102 = vmatpush1.msra.mxu0 0.0
    %4103 = vmatprep.subr.mxu0 0.0
    %4104 = vmatpush1.msra.mxu0 0.0
    %4105 = vmatprep.subr.mxu0 0.0
    %4106 = vmatpush1.msra.mxu0 0.0
    %4107 = vmatprep.mubr.f32.mxu0 0.0
    %4108 = vmatmul.mubr.f32.gmra.mrb[0].mxu0 %v4039
    %v4109 = vpop.f32.mrb[0].mxu0
    %v4110 = vadd.f32 0.0, %v4109
    %v4111 = vpop.f32.mrb[0].mxu0
    %4112 = vmatprep.mubr.f32.mxu0 0.0
    %4113 = vmatmul.mubr.f32.gmra.mrb[0].mxu0 %v4041
    %v4114 = vpop.f32.mrb[0].mxu0
    %v4115 = vadd.f32 0.0, %v4114
    %v4116 = vpop.f32.mrb[0].mxu0
    %4117 = vdwg.mxu0
    %v4118 = vsel %vm329, %v4012, 0
    %v4120 = vsel %vm329, %v4014, 0
    %4122 = vmatprep.subr.mxu0 0.0
    %4123 = vmatpush1.msra.mxu0 %v4016
    %4124 = vmatprep.subr.mxu0 0.0
    %4125 = vmatpush1.msra.mxu0 %v4017
    %4126 = vmatprep.subr.mxu0 0.0
    %4127 = vmatpush1.msra.mxu0 %v4018
    %4128 = vmatprep.subr.mxu0 0.0
    %4129 = vmatpush1.msra.mxu0 %v4019
    %4130 = vmatprep.subr.mxu0 0.0
    %4131 = vmatpush1.msra.mxu0 %v4020
    %4132 = vmatprep.subr.mxu0 0.0
    %4133 = vmatpush1.msra.mxu0 %v4021
    %4134 = vmatprep.subr.mxu0 0.0
    %4135 = vmatpush1.msra.mxu0 %v4022
    %4136 = vmatprep.subr.mxu0 0.0
    %4137 = vmatpush1.msra.mxu0 %v4023
    %4138 = vmatprep.subr.mxu0 0.0
    %4139 = vmatpush1.msra.mxu0 0.0
    %4140 = vmatprep.subr.mxu0 0.0
    %4141 = vmatpush1.msra.mxu0 0.0
    %4142 = vmatprep.subr.mxu0 0.0
    %4143 = vmatpush1.msra.mxu0 0.0
    %4144 = vmatprep.subr.mxu0 0.0
    %4145 = vmatpush1.msra.mxu0 0.0
    %4146 = vmatprep.subr.mxu0 0.0
    %4147 = vmatpush1.msra.mxu0 0.0
    %4148 = vmatprep.subr.mxu0 0.0
    %4149 = vmatpush1.msra.mxu0 0.0
    %4150 = vmatprep.subr.mxu0 0.0
    %4151 = vmatpush1.msra.mxu0 0.0
    %4152 = vmatprep.subr.mxu0 0.0
    %4153 = vmatpush1.msra.mxu0 0.0
    %4154 = vmatprep.subr.mxu0 0.0
    %4155 = vmatpush1.msra.mxu0 0.0
    %4156 = vmatprep.subr.mxu0 0.0
    %4157 = vmatpush1.msra.mxu0 0.0
    %4158 = vmatprep.subr.mxu0 0.0
    %4159 = vmatpush1.msra.mxu0 0.0
    %4160 = vmatprep.subr.mxu0 0.0
    %4161 = vmatpush1.msra.mxu0 0.0
    %4162 = vmatprep.subr.mxu0 0.0
    %4163 = vmatpush1.msra.mxu0 0.0
    %4164 = vmatprep.subr.mxu0 0.0
    %4165 = vmatpush1.msra.mxu0 0.0
    %4166 = vmatprep.subr.mxu0 0.0
    %4167 = vmatpush1.msra.mxu0 0.0
    %4168 = vmatprep.subr.mxu0 0.0
    %4169 = vmatpush1.msra.mxu0 0.0
    %4170 = vmatprep.subr.mxu0 0.0
    %4171 = vmatpush1.msra.mxu0 0.0
    %4172 = vmatprep.subr.mxu0 0.0
    %4173 = vmatpush1.msra.mxu0 0.0
    %4174 = vmatprep.subr.mxu0 0.0
    %4175 = vmatpush1.msra.mxu0 0.0
    %4176 = vmatprep.subr.mxu0 0.0
    %4177 = vmatpush1.msra.mxu0 0.0
    %4178 = vmatprep.subr.mxu0 0.0
    %4179 = vmatpush1.msra.mxu0 0.0
    %4180 = vmatprep.subr.mxu0 0.0
    %4181 = vmatpush1.msra.mxu0 0.0
    %4182 = vmatprep.subr.mxu0 0.0
    %4183 = vmatpush1.msra.mxu0 0.0
    %4184 = vmatprep.subr.mxu0 0.0
    %4185 = vmatpush1.msra.mxu0 0.0
    %4186 = vmatprep.mubr.f32.mxu0 0.0
    %4187 = vmatmul.mubr.f32.gmra.mrb[0].mxu0 %v4118
    %v4188 = vpop.f32.mrb[0].mxu0
    %v4189 = vadd.f32 %v4110, %v4188
    %v4190 = vpop.f32.mrb[0].mxu0
    %4191 = vmatprep.mubr.f32.mxu0 0.0
    %4192 = vmatmul.mubr.f32.gmra.mrb[0].mxu0 %v4120
    %v4193 = vpop.f32.mrb[0].mxu0
    %v4194 = vadd.f32 %v4115, %v4193
    %v4195 = vpop.f32.mrb[0].mxu0
    %4196 = vdwg.mxu0
    %s4197 = scalar_lea.vmem %s6, 128
    %v4198 = vld [vmem:[%s4197] sm:$0xff]
    %v4199 = vld [vmem:[%s4197 + $0x8] sm:$0xff]
    %v4200 = vld [vmem:[%s4197 + $0x10] sm:$0xff]
    %v4201 = vld [vmem:[%s4197 + $0x18] sm:$0xff]
    %v4202 = vld [vmem:[%s4197 + $0x20] sm:$0xff]
    %v4203 = vld [vmem:[%s4197 + $0x28] sm:$0xff]
    %v4204 = vld [vmem:[%s4197 + $0x30] sm:$0xff]
    %v4205 = vld [vmem:[%s4197 + $0x38] sm:$0xff]
    %v4207 = vsel %vm329, %v4013, 0
    %v4210 = vsel %vm329, %v4015, 0
    %4212 = vmatprep.subr.mxu0 0.0
    %4213 = vmatpush1.msra.mxu0 %v4198
    %4214 = vmatprep.subr.mxu0 0.0
    %4215 = vmatpush1.msra.mxu0 %v4199
    %4216 = vmatprep.subr.mxu0 0.0
    %4217 = vmatpush1.msra.mxu0 %v4200
    %4218 = vmatprep.subr.mxu0 0.0
    %4219 = vmatpush1.msra.mxu0 %v4201
    %4220 = vmatprep.subr.mxu0 0.0
    %4221 = vmatpush1.msra.mxu0 %v4202
    %4222 = vmatprep.subr.mxu0 0.0
    %4223 = vmatpush1.msra.mxu0 %v4203
    %4224 = vmatprep.subr.mxu0 0.0
    %4225 = vmatpush1.msra.mxu0 %v4204
    %4226 = vmatprep.subr.mxu0 0.0
    %4227 = vmatpush1.msra.mxu0 %v4205
    %4228 = vmatprep.subr.mxu0 0.0
    %4229 = vmatpush1.msra.mxu0 0.0
    %4230 = vmatprep.subr.mxu0 0.0
    %4231 = vmatpush1.msra.mxu0 0.0
    %4232 = vmatprep.subr.mxu0 0.0
    %4233 = vmatpush1.msra.mxu0 0.0
    %4234 = vmatprep.subr.mxu0 0.0
    %4235 = vmatpush1.msra.mxu0 0.0
    %4236 = vmatprep.subr.mxu0 0.0
    %4237 = vmatpush1.msra.mxu0 0.0
    %4238 = vmatprep.subr.mxu0 0.0
    %4239 = vmatpush1.msra.mxu0 0.0
    %4240 = vmatprep.subr.mxu0 0.0
    %4241 = vmatpush1.msra.mxu0 0.0
    %4242 = vmatprep.subr.mxu0 0.0
    %4243 = vmatpush1.msra.mxu0 0.0
    %4244 = vmatprep.subr.mxu0 0.0
    %4245 = vmatpush1.msra.mxu0 0.0
    %4246 = vmatprep.subr.mxu0 0.0
    %4247 = vmatpush1.msra.mxu0 0.0
    %4248 = vmatprep.subr.mxu0 0.0
    %4249 = vmatpush1.msra.mxu0 0.0
    %4250 = vmatprep.subr.mxu0 0.0
    %4251 = vmatpush1.msra.mxu0 0.0
    %4252 = vmatprep.subr.mxu0 0.0
    %4253 = vmatpush1.msra.mxu0 0.0
    %4254 = vmatprep.subr.mxu0 0.0
    %4255 = vmatpush1.msra.mxu0 0.0
    %4256 = vmatprep.subr.mxu0 0.0
    %4257 = vmatpush1.msra.mxu0 0.0
    %4258 = vmatprep.subr.mxu0 0.0
    %4259 = vmatpush1.msra.mxu0 0.0
    %4260 = vmatprep.subr.mxu0 0.0
    %4261 = vmatpush1.msra.mxu0 0.0
    %4262 = vmatprep.subr.mxu0 0.0
    %4263 = vmatpush1.msra.mxu0 0.0
    %4264 = vmatprep.subr.mxu0 0.0
    %4265 = vmatpush1.msra.mxu0 0.0
    %4266 = vmatprep.subr.mxu0 0.0
    %4267 = vmatpush1.msra.mxu0 0.0
    %4268 = vmatprep.subr.mxu0 0.0
    %4269 = vmatpush1.msra.mxu0 0.0
    %4270 = vmatprep.subr.mxu0 0.0
    %4271 = vmatpush1.msra.mxu0 0.0
    %4272 = vmatprep.subr.mxu0 0.0
    %4273 = vmatpush1.msra.mxu0 0.0
    %4274 = vmatprep.subr.mxu0 0.0
    %4275 = vmatpush1.msra.mxu0 0.0
    %4276 = vmatprep.mubr.f32.mxu0 0.0
    %4277 = vmatmul.mubr.f32.gmra.mrb[0].mxu0 %v4207
    %v4278 = vpop.f32.mrb[0].mxu0
    %v4279 = vadd.f32 0.0, %v4278
    %v4280 = vpop.f32.mrb[0].mxu0
    %4281 = vmatprep.mubr.f32.mxu0 0.0
    %4282 = vmatmul.mubr.f32.gmra.mrb[0].mxu0 %v4210
    %v4283 = vpop.f32.mrb[0].mxu0
    %v4284 = vadd.f32 0.0, %v4283
    %v4285 = vpop.f32.mrb[0].mxu0
    %4286 = vdwg.mxu0
    %v4287 = vadd.f32 %v4189, %v4279
    %v4288 = vadd.f32 %v4194, %v4284
    %s4289 = scalar_lea.vmem %s6, 192
    %v4290 = vld [vmem:[%s4289] sm:$0xff]
    %v4291 = vld [vmem:[%s4289 + $0x8] sm:$0xff]
    %v4292 = vld [vmem:[%s4289 + $0x10] sm:$0xff]
    %v4293 = vld [vmem:[%s4289 + $0x18] sm:$0xff]
    %v4294 = vld [vmem:[%s4289 + $0x20] sm:$0xff]
    %v4295 = vld [vmem:[%s4289 + $0x28] sm:$0xff]
    %v4296 = vld [vmem:[%s4289 + $0x30] sm:$0xff]
    %v4297 = vld [vmem:[%s4289 + $0x38] sm:$0xff]
    %4298 = vrot.lane.b32.xlu0 %v4013, 64
    %v4299 = vpop.permute.xlu0 %4298
    %4300 = vrot.lane.b32.xlu0 %v4015, 64
    %v4301 = vpop.permute.xlu0 %4300
    %v4302 = vsel %vm329, %v4299, 0
    %v4304 = vsel %vm329, %v4301, 0
    %4306 = vmatprep.subr.mxu0 0.0
    %4307 = vmatpush1.msra.mxu0 %v4290
    %4308 = vmatprep.subr.mxu0 0.0
    %4309 = vmatpush1.msra.mxu0 %v4291
    %4310 = vmatprep.subr.mxu0 0.0
    %4311 = vmatpush1.msra.mxu0 %v4292
    %4312 = vmatprep.subr.mxu0 0.0
    %4313 = vmatpush1.msra.mxu0 %v4293
    %4314 = vmatprep.subr.mxu0 0.0
    %4315 = vmatpush1.msra.mxu0 %v4294
    %4316 = vmatprep.subr.mxu0 0.0
    %4317 = vmatpush1.msra.mxu0 %v4295
    %4318 = vmatprep.subr.mxu0 0.0
    %4319 = vmatpush1.msra.mxu0 %v4296
    %4320 = vmatprep.subr.mxu0 0.0
    %4321 = vmatpush1.msra.mxu0 %v4297
    %4322 = vmatprep.subr.mxu0 0.0
    %4323 = vmatpush1.msra.mxu0 0.0
    %4324 = vmatprep.subr.mxu0 0.0
    %4325 = vmatpush1.msra.mxu0 0.0
    %4326 = vmatprep.subr.mxu0 0.0
    %4327 = vmatpush1.msra.mxu0 0.0
    %4328 = vmatprep.subr.mxu0 0.0
    %4329 = vmatpush1.msra.mxu0 0.0
    %4330 = vmatprep.subr.mxu0 0.0
    %4331 = vmatpush1.msra.mxu0 0.0
    %4332 = vmatprep.subr.mxu0 0.0
    %4333 = vmatpush1.msra.mxu0 0.0
    %4334 = vmatprep.subr.mxu0 0.0
    %4335 = vmatpush1.msra.mxu0 0.0
    %4336 = vmatprep.subr.mxu0 0.0
    %4337 = vmatpush1.msra.mxu0 0.0
    %4338 = vmatprep.subr.mxu0 0.0
    %4339 = vmatpush1.msra.mxu0 0.0
    %4340 = vmatprep.subr.mxu0 0.0
    %4341 = vmatpush1.msra.mxu0 0.0
    %4342 = vmatprep.subr.mxu0 0.0
    %4343 = vmatpush1.msra.mxu0 0.0
    %4344 = vmatprep.subr.mxu0 0.0
    %4345 = vmatpush1.msra.mxu0 0.0
    %4346 = vmatprep.subr.mxu0 0.0
    %4347 = vmatpush1.msra.mxu0 0.0
    %4348 = vmatprep.subr.mxu0 0.0
    %4349 = vmatpush1.msra.mxu0 0.0
    %4350 = vmatprep.subr.mxu0 0.0
    %4351 = vmatpush1.msra.mxu0 0.0
    %4352 = vmatprep.subr.mxu0 0.0
    %4353 = vmatpush1.msra.mxu0 0.0
    %4354 = vmatprep.subr.mxu0 0.0
    %4355 = vmatpush1.msra.mxu0 0.0
    %4356 = vmatprep.subr.mxu0 0.0
    %4357 = vmatpush1.msra.mxu0 0.0
    %4358 = vmatprep.subr.mxu0 0.0
    %4359 = vmatpush1.msra.mxu0 0.0
    %4360 = vmatprep.subr.mxu0 0.0
    %4361 = vmatpush1.msra.mxu0 0.0
    %4362 = vmatprep.subr.mxu0 0.0
    %4363 = vmatpush1.msra.mxu0 0.0
    %4364 = vmatprep.subr.mxu0 0.0
    %4365 = vmatpush1.msra.mxu0 0.0
    %4366 = vmatprep.subr.mxu0 0.0
    %4367 = vmatpush1.msra.mxu0 0.0
    %4368 = vmatprep.subr.mxu0 0.0
    %4369 = vmatpush1.msra.mxu0 0.0
    %4370 = vmatprep.mubr.f32.mxu0 0.0
    %4371 = vmatmul.mubr.f32.gmra.mrb[0].mxu0 %v4302
    %v4372 = vpop.f32.mrb[0].mxu0
    %v4373 = vadd.f32 0.0, %v4372
    %v4374 = vpop.f32.mrb[0].mxu0
    %4375 = vmatprep.mubr.f32.mxu0 0.0
    %4376 = vmatmul.mubr.f32.gmra.mrb[0].mxu0 %v4304
    %v4377 = vpop.f32.mrb[0].mxu0
    %v4378 = vadd.f32 0.0, %v4377
    %v4379 = vpop.f32.mrb[0].mxu0
    %4380 = vdwg.mxu0
    %v4381 = vadd.f32 %v4287, %v4373
    %v4382 = vadd.f32 %v4288, %v4378
    %v4383 = vld [vmem:[%s7] sm:$0x1]
    %v4385 = vlaneseq
    %v4386 = vshrl.u32 %v4385, 7
    %v4387 = vsub.s32 0, %v4386
    %v4388 = vrot.slane %v4383, %v4387
    %v4390 = vadd.f32 %v4381, %v4388
    %v4391 = vadd.f32 %v4382, %v4388
    %v4392 = vmax.f32 %v4390, 0.0
    %v4393 = vmax.f32 %v4391, 0.0
    %v4394 = vld [vmem:[%s8] sm:$0xff]
    %v4395 = vld [vmem:[%s8 + $0x8] sm:$0xff]
    %v4396 = vld [vmem:[%s8 + $0x10] sm:$0xff]
    %v4397 = vld [vmem:[%s8 + $0x18] sm:$0xff]
    %s4398 = scalar_lea.vmem %s8, 32
    %v4399 = vld [vmem:[%s4398] sm:$0xff]
    %v4400 = vld [vmem:[%s4398 + $0x8] sm:$0xff]
    %v4401 = vld [vmem:[%s4398 + $0x10] sm:$0xff]
    %v4402 = vld [vmem:[%s4398 + $0x18] sm:$0xff]
    %4404 = vrot.lane.b32.xlu0 %v4392, 96
    %v4405 = vpop.permute.xlu0 %4404
    %vm4406 = vcmask 261120
    %v4407 = vsel %vm4406, %v4405, 0
    %4409 = vmatprep.subr.mxu0 0.0
    %4410 = vmatpush1.msra.mxu0 %v4399
    %4411 = vmatprep.subr.mxu0 0.0
    %4412 = vmatpush1.msra.mxu0 %v4400
    %4413 = vmatprep.subr.mxu0 0.0
    %4414 = vmatpush1.msra.mxu0 %v4401
    %4415 = vmatprep.subr.mxu0 0.0
    %4416 = vmatpush1.msra.mxu0 %v4402
    %4417 = vmatprep.subr.mxu0 0.0
    %4418 = vmatpush1.msra.mxu0 0.0
    %4419 = vmatprep.subr.mxu0 0.0
    %4420 = vmatpush1.msra.mxu0 0.0
    %4421 = vmatprep.subr.mxu0 0.0
    %4422 = vmatpush1.msra.mxu0 0.0
    %4423 = vmatprep.subr.mxu0 0.0
    %4424 = vmatpush1.msra.mxu0 0.0
    %4425 = vmatprep.subr.mxu0 0.0
    %4426 = vmatpush1.msra.mxu0 0.0
    %4427 = vmatprep.subr.mxu0 0.0
    %4428 = vmatpush1.msra.mxu0 0.0
    %4429 = vmatprep.subr.mxu0 0.0
    %4430 = vmatpush1.msra.mxu0 0.0
    %4431 = vmatprep.subr.mxu0 0.0
    %4432 = vmatpush1.msra.mxu0 0.0
    %4433 = vmatprep.subr.mxu0 0.0
    %4434 = vmatpush1.msra.mxu0 0.0
    %4435 = vmatprep.subr.mxu0 0.0
    %4436 = vmatpush1.msra.mxu0 0.0
    %4437 = vmatprep.subr.mxu0 0.0
    %4438 = vmatpush1.msra.mxu0 0.0
    %4439 = vmatprep.subr.mxu0 0.0
    %4440 = vmatpush1.msra.mxu0 0.0
    %4441 = vmatprep.subr.mxu0 0.0
    %4442 = vmatpush1.msra.mxu0 0.0
    %4443 = vmatprep.subr.mxu0 0.0
    %4444 = vmatpush1.msra.mxu0 0.0
    %4445 = vmatprep.subr.mxu0 0.0
    %4446 = vmatpush1.msra.mxu0 0.0
    %4447 = vmatprep.subr.mxu0 0.0
    %4448 = vmatpush1.msra.mxu0 0.0
    %4449 = vmatprep.subr.mxu0 0.0
    %4450 = vmatpush1.msra.mxu0 0.0
    %4451 = vmatprep.subr.mxu0 0.0
    %4452 = vmatpush1.msra.mxu0 0.0
    %4453 = vmatprep.subr.mxu0 0.0
    %4454 = vmatpush1.msra.mxu0 0.0
    %4455 = vmatprep.subr.mxu0 0.0
    %4456 = vmatpush1.msra.mxu0 0.0
    %4457 = vmatprep.subr.mxu0 0.0
    %4458 = vmatpush1.msra.mxu0 0.0
    %4459 = vmatprep.subr.mxu0 0.0
    %4460 = vmatpush1.msra.mxu0 0.0
    %4461 = vmatprep.subr.mxu0 0.0
    %4462 = vmatpush1.msra.mxu0 0.0
    %4463 = vmatprep.subr.mxu0 0.0
    %4464 = vmatpush1.msra.mxu0 0.0
    %4465 = vmatprep.subr.mxu0 0.0
    %4466 = vmatpush1.msra.mxu0 0.0
    %4467 = vmatprep.subr.mxu0 0.0
    %4468 = vmatpush1.msra.mxu0 0.0
    %4469 = vmatprep.subr.mxu0 0.0
    %4470 = vmatpush1.msra.mxu0 0.0
    %4471 = vmatprep.subr.mxu0 0.0
    %4472 = vmatpush1.msra.mxu0 0.0
    %4473 = vmatprep.mubr.f32.mxu0 0.0
    %4474 = vmatmul.mubr.f32.gmra.mrb[0].mxu0 %v4407
    %v4475 = vpop.f32.mrb[0].mxu0
    %v4476 = vadd.f32 0.0, %v4475
    %v4477 = vpop.f32.mrb[0].mxu0
    %4478 = vdwg.mxu0
    %v4479 = vsel %vm4406, %v4392, 0
    %4481 = vmatprep.subr.mxu0 0.0
    %4482 = vmatpush1.msra.mxu0 %v4394
    %4483 = vmatprep.subr.mxu0 0.0
    %4484 = vmatpush1.msra.mxu0 %v4395
    %4485 = vmatprep.subr.mxu0 0.0
    %4486 = vmatpush1.msra.mxu0 %v4396
    %4487 = vmatprep.subr.mxu0 0.0
    %4488 = vmatpush1.msra.mxu0 %v4397
    %4489 = vmatprep.subr.mxu0 0.0
    %4490 = vmatpush1.msra.mxu0 0.0
    %4491 = vmatprep.subr.mxu0 0.0
    %4492 = vmatpush1.msra.mxu0 0.0
    %4493 = vmatprep.subr.mxu0 0.0
    %4494 = vmatpush1.msra.mxu0 0.0
    %4495 = vmatprep.subr.mxu0 0.0
    %4496 = vmatpush1.msra.mxu0 0.0
    %4497 = vmatprep.subr.mxu0 0.0
    %4498 = vmatpush1.msra.mxu0 0.0
    %4499 = vmatprep.subr.mxu0 0.0
    %4500 = vmatpush1.msra.mxu0 0.0
    %4501 = vmatprep.subr.mxu0 0.0
    %4502 = vmatpush1.msra.mxu0 0.0
    %4503 = vmatprep.subr.mxu0 0.0
    %4504 = vmatpush1.msra.mxu0 0.0
    %4505 = vmatprep.subr.mxu0 0.0
    %4506 = vmatpush1.msra.mxu0 0.0
    %4507 = vmatprep.subr.mxu0 0.0
    %4508 = vmatpush1.msra.mxu0 0.0
    %4509 = vmatprep.subr.mxu0 0.0
    %4510 = vmatpush1.msra.mxu0 0.0
    %4511 = vmatprep.subr.mxu0 0.0
    %4512 = vmatpush1.msra.mxu0 0.0
    %4513 = vmatprep.subr.mxu0 0.0
    %4514 = vmatpush1.msra.mxu0 0.0
    %4515 = vmatprep.subr.mxu0 0.0
    %4516 = vmatpush1.msra.mxu0 0.0
    %4517 = vmatprep.subr.mxu0 0.0
    %4518 = vmatpush1.msra.mxu0 0.0
    %4519 = vmatprep.subr.mxu0 0.0
    %4520 = vmatpush1.msra.mxu0 0.0
    %4521 = vmatprep.subr.mxu0 0.0
    %4522 = vmatpush1.msra.mxu0 0.0
    %4523 = vmatprep.subr.mxu0 0.0
    %4524 = vmatpush1.msra.mxu0 0.0
    %4525 = vmatprep.subr.mxu0 0.0
    %4526 = vmatpush1.msra.mxu0 0.0
    %4527 = vmatprep.subr.mxu0 0.0
    %4528 = vmatpush1.msra.mxu0 0.0
    %4529 = vmatprep.subr.mxu0 0.0
    %4530 = vmatpush1.msra.mxu0 0.0
    %4531 = vmatprep.subr.mxu0 0.0
    %4532 = vmatpush1.msra.mxu0 0.0
    %4533 = vmatprep.subr.mxu0 0.0
    %4534 = vmatpush1.msra.mxu0 0.0
    %4535 = vmatprep.subr.mxu0 0.0
    %4536 = vmatpush1.msra.mxu0 0.0
    %4537 = vmatprep.subr.mxu0 0.0
    %4538 = vmatpush1.msra.mxu0 0.0
    %4539 = vmatprep.subr.mxu0 0.0
    %4540 = vmatpush1.msra.mxu0 0.0
    %4541 = vmatprep.subr.mxu0 0.0
    %4542 = vmatpush1.msra.mxu0 0.0
    %4543 = vmatprep.subr.mxu0 0.0
    %4544 = vmatpush1.msra.mxu0 0.0
    %4545 = vmatprep.mubr.f32.mxu0 0.0
    %4546 = vmatmul.mubr.f32.gmra.mrb[0].mxu0 %v4479
    %v4547 = vpop.f32.mrb[0].mxu0
    %v4548 = vadd.f32 %v4476, %v4547
    %v4549 = vpop.f32.mrb[0].mxu0
    %4550 = vdwg.mxu0
    %s4551 = scalar_lea.vmem %s8, 64
    %v4552 = vld [vmem:[%s4551] sm:$0xff]
    %v4553 = vld [vmem:[%s4551 + $0x8] sm:$0xff]
    %v4554 = vld [vmem:[%s4551 + $0x10] sm:$0xff]
    %v4555 = vld [vmem:[%s4551 + $0x18] sm:$0xff]
    %v4557 = vsel %vm4406, %v4393, 0
    %4559 = vmatprep.subr.mxu0 0.0
    %4560 = vmatpush1.msra.mxu0 %v4552
    %4561 = vmatprep.subr.mxu0 0.0
    %4562 = vmatpush1.msra.mxu0 %v4553
    %4563 = vmatprep.subr.mxu0 0.0
    %4564 = vmatpush1.msra.mxu0 %v4554
    %4565 = vmatprep.subr.mxu0 0.0
    %4566 = vmatpush1.msra.mxu0 %v4555
    %4567 = vmatprep.subr.mxu0 0.0
    %4568 = vmatpush1.msra.mxu0 0.0
    %4569 = vmatprep.subr.mxu0 0.0
    %4570 = vmatpush1.msra.mxu0 0.0
    %4571 = vmatprep.subr.mxu0 0.0
    %4572 = vmatpush1.msra.mxu0 0.0
    %4573 = vmatprep.subr.mxu0 0.0
    %4574 = vmatpush1.msra.mxu0 0.0
    %4575 = vmatprep.subr.mxu0 0.0
    %4576 = vmatpush1.msra.mxu0 0.0
    %4577 = vmatprep.subr.mxu0 0.0
    %4578 = vmatpush1.msra.mxu0 0.0
    %4579 = vmatprep.subr.mxu0 0.0
    %4580 = vmatpush1.msra.mxu0 0.0
    %4581 = vmatprep.subr.mxu0 0.0
    %4582 = vmatpush1.msra.mxu0 0.0
    %4583 = vmatprep.subr.mxu0 0.0
    %4584 = vmatpush1.msra.mxu0 0.0
    %4585 = vmatprep.subr.mxu0 0.0
    %4586 = vmatpush1.msra.mxu0 0.0
    %4587 = vmatprep.subr.mxu0 0.0
    %4588 = vmatpush1.msra.mxu0 0.0
    %4589 = vmatprep.subr.mxu0 0.0
    %4590 = vmatpush1.msra.mxu0 0.0
    %4591 = vmatprep.subr.mxu0 0.0
    %4592 = vmatpush1.msra.mxu0 0.0
    %4593 = vmatprep.subr.mxu0 0.0
    %4594 = vmatpush1.msra.mxu0 0.0
    %4595 = vmatprep.subr.mxu0 0.0
    %4596 = vmatpush1.msra.mxu0 0.0
    %4597 = vmatprep.subr.mxu0 0.0
    %4598 = vmatpush1.msra.mxu0 0.0
    %4599 = vmatprep.subr.mxu0 0.0
    %4600 = vmatpush1.msra.mxu0 0.0
    %4601 = vmatprep.subr.mxu0 0.0
    %4602 = vmatpush1.msra.mxu0 0.0
    %4603 = vmatprep.subr.mxu0 0.0
    %4604 = vmatpush1.msra.mxu0 0.0
    %4605 = vmatprep.subr.mxu0 0.0
    %4606 = vmatpush1.msra.mxu0 0.0
    %4607 = vmatprep.subr.mxu0 0.0
    %4608 = vmatpush1.msra.mxu0 0.0
    %4609 = vmatprep.subr.mxu0 0.0
    %4610 = vmatpush1.msra.mxu0 0.0
    %4611 = vmatprep.subr.mxu0 0.0
    %4612 = vmatpush1.msra.mxu0 0.0
    %4613 = vmatprep.subr.mxu0 0.0
    %4614 = vmatpush1.msra.mxu0 0.0
    %4615 = vmatprep.subr.mxu0 0.0
    %4616 = vmatpush1.msra.mxu0 0.0
    %4617 = vmatprep.subr.mxu0 0.0
    %4618 = vmatpush1.msra.mxu0 0.0
    %4619 = vmatprep.subr.mxu0 0.0
    %4620 = vmatpush1.msra.mxu0 0.0
    %4621 = vmatprep.subr.mxu0 0.0
    %4622 = vmatpush1.msra.mxu0 0.0
    %4623 = vmatprep.mubr.f32.mxu0 0.0
    %4624 = vmatmul.mubr.f32.gmra.mrb[0].mxu0 %v4557
    %v4625 = vpop.f32.mrb[0].mxu0
    %v4626 = vadd.f32 0.0, %v4625
    %v4627 = vpop.f32.mrb[0].mxu0
    %4628 = vdwg.mxu0
    %v4629 = vadd.f32 %v4548, %v4626
    %s4630 = scalar_lea.vmem %s8, 96
    %v4631 = vld [vmem:[%s4630] sm:$0xff]
    %v4632 = vld [vmem:[%s4630 + $0x8] sm:$0xff]
    %v4633 = vld [vmem:[%s4630 + $0x10] sm:$0xff]
    %v4634 = vld [vmem:[%s4630 + $0x18] sm:$0xff]
    %4635 = vrot.lane.b32.xlu0 %v4393, 96
    %v4636 = vpop.permute.xlu0 %4635
    %v4637 = vsel %vm4406, %v4636, 0
    %4639 = vmatprep.subr.mxu0 0.0
    %4640 = vmatpush1.msra.mxu0 %v4631
    %4641 = vmatprep.subr.mxu0 0.0
    %4642 = vmatpush1.msra.mxu0 %v4632
    %4643 = vmatprep.subr.mxu0 0.0
    %4644 = vmatpush1.msra.mxu0 %v4633
    %4645 = vmatprep.subr.mxu0 0.0
    %4646 = vmatpush1.msra.mxu0 %v4634
    %4647 = vmatprep.subr.mxu0 0.0
    %4648 = vmatpush1.msra.mxu0 0.0
    %4649 = vmatprep.subr.mxu0 0.0
    %4650 = vmatpush1.msra.mxu0 0.0
    %4651 = vmatprep.subr.mxu0 0.0
    %4652 = vmatpush1.msra.mxu0 0.0
    %4653 = vmatprep.subr.mxu0 0.0
    %4654 = vmatpush1.msra.mxu0 0.0
    %4655 = vmatprep.subr.mxu0 0.0
    %4656 = vmatpush1.msra.mxu0 0.0
    %4657 = vmatprep.subr.mxu0 0.0
    %4658 = vmatpush1.msra.mxu0 0.0
    %4659 = vmatprep.subr.mxu0 0.0
    %4660 = vmatpush1.msra.mxu0 0.0
    %4661 = vmatprep.subr.mxu0 0.0
    %4662 = vmatpush1.msra.mxu0 0.0
    %4663 = vmatprep.subr.mxu0 0.0
    %4664 = vmatpush1.msra.mxu0 0.0
    %4665 = vmatprep.subr.mxu0 0.0
    %4666 = vmatpush1.msra.mxu0 0.0
    %4667 = vmatprep.subr.mxu0 0.0
    %4668 = vmatpush1.msra.mxu0 0.0
    %4669 = vmatprep.subr.mxu0 0.0
    %4670 = vmatpush1.msra.mxu0 0.0
    %4671 = vmatprep.subr.mxu0 0.0
    %4672 = vmatpush1.msra.mxu0 0.0
    %4673 = vmatprep.subr.mxu0 0.0
    %4674 = vmatpush1.msra.mxu0 0.0
    %4675 = vmatprep.subr.mxu0 0.0
    %4676 = vmatpush1.msra.mxu0 0.0
    %4677 = vmatprep.subr.mxu0 0.0
    %4678 = vmatpush1.msra.mxu0 0.0
    %4679 = vmatprep.subr.mxu0 0.0
    %4680 = vmatpush1.msra.mxu0 0.0
    %4681 = vmatprep.subr.mxu0 0.0
    %4682 = vmatpush1.msra.mxu0 0.0
    %4683 = vmatprep.subr.mxu0 0.0
    %4684 = vmatpush1.msra.mxu0 0.0
    %4685 = vmatprep.subr.mxu0 0.0
    %4686 = vmatpush1.msra.mxu0 0.0
    %4687 = vmatprep.subr.mxu0 0.0
    %4688 = vmatpush1.msra.mxu0 0.0
    %4689 = vmatprep.subr.mxu0 0.0
    %4690 = vmatpush1.msra.mxu0 0.0
    %4691 = vmatprep.subr.mxu0 0.0
    %4692 = vmatpush1.msra.mxu0 0.0
    %4693 = vmatprep.subr.mxu0 0.0
    %4694 = vmatpush1.msra.mxu0 0.0
    %4695 = vmatprep.subr.mxu0 0.0
    %4696 = vmatpush1.msra.mxu0 0.0
    %4697 = vmatprep.subr.mxu0 0.0
    %4698 = vmatpush1.msra.mxu0 0.0
    %4699 = vmatprep.subr.mxu0 0.0
    %4700 = vmatpush1.msra.mxu0 0.0
    %4701 = vmatprep.subr.mxu0 0.0
    %4702 = vmatpush1.msra.mxu0 0.0
    %4703 = vmatprep.mubr.f32.mxu0 0.0
    %4704 = vmatmul.mubr.f32.gmra.mrb[0].mxu0 %v4637
    %v4705 = vpop.f32.mrb[0].mxu0
    %v4706 = vadd.f32 0.0, %v4705
    %v4707 = vpop.f32.mrb[0].mxu0
    %4708 = vdwg.mxu0
    %v4709 = vadd.f32 %v4629, %v4706
    %v4710 = vld [vmem:[%s9] sm:$0x1]
    %v4712 = vlaneseq
    %v4713 = vshrl.u32 %v4712, 7
    %v4714 = vsub.s32 0, %v4713
    %v4715 = vrot.slane %v4710, %v4714
    %v4717 = vadd.f32 %v4709, %v4715
    %v4718 = vmax.f32 %v4717, 0.0
    %v4719 = vld [vmem:[%s10] sm:$0x1]
    %v4721 = vlaneseq
    %v4722 = vshrl.u32 %v4721, 7
    %v4723 = vsub.s32 0, %v4722
    %v4724 = vrot.slane %v4719, %v4723
    %v4726 = vmul.f32 %v4718, %v4724
    %v4727 = vsel %vm4406, %v4726, 0.0
    %4728 = vadd.xlane.f32.xlu0 %v4727
    %v4729 = vpop.xlane.xlu0 %4728
    %v4730 = vld [vmem:[#allocation2] sm:$0x1]
    %v4732 = vlaneseq
    %v4733 = vshrl.u32 %v4732, 7
    %v4734 = vsub.s32 0, %v4733
    %v4735 = vrot.slane %v4730, %v4734
    %v4737 = vadd.f32 %v4729, %v4735
    %vm4738 = vcmask 7168
    %4739 = vst.msk [vmem:[%s12] sm:$0xff] %vm4738, %v4737
    // Predicated region
    $region58: #{convncf_forward.1} parent=1 // pred_check
      _
    $region59: #{convncf_forward.1} parent=1 // pred_check_branch
      %4741 = sbr.rel (0) target = $region61
    $region60: #{convncf_forward.1} parent=1 // pred_region
      _
    $region61: #{convncf_forward.1} parent=1 // pred_fallthru
      _
    // Predicated region
    $region62: #{convncf_forward.1} parent=1 // pred_check
      _
    $region63: #{convncf_forward.1} parent=1 // pred_check_branch
      %4743 = sbr.rel (0) target = $region65
    $region64: #{convncf_forward.1} parent=1 // pred_region
      _
    $region65: #{convncf_forward.1} parent=1 // pred_fallthru
      _
    %4744 = vsyncpa [#allocation4], 1
    %4745 = vsyncpa [#allocation6], 1

</llo_original>
